<compile_context>
chip_gen: v7x
topology: tpu7x:2x2x1
jax: 0.10.0
libtpu: 0.0.40
codegen_flags: <defaults>
</compile_context>

<pallas_src>
import jax
import jax.numpy as jnp
import numpy as np
from jax import lax
from jax.experimental import pallas as pl
from jax.experimental.pallas import tpu as pltpu

# ---------------- assumed config (config module not provided) ----------------
C3D_IN = 1
C3D_OUT = 8                      # config.frontend['3dCNN']['outputChannels']
C3D_KERNEL = (3, 5, 5)
C3D_STRIDE = (1, 2, 2)
C3D_PAD = (1, 2, 2)
POOL_KERNEL = (1, 3, 3)          # config.frontend['pool']['kernel']
POOL_STRIDE = (1, 2, 2)          # config.frontend['pool']['stride']
POOL_PAD = (0, 1, 1)             # config.frontend['pool']['padding']
RES_C = 8                        # ResNet trunk width
BN_EPS = 1e-5


# ------------------------------ tiling helpers --------------------------------
def _pick_row_tile(m, min_rows=8, max_rows=2048):
    """Largest multiple-of-8 row tile (prefers an exact divisor of m, grid >= 2)."""
    best = None
    for t in range(8, min(max_rows, max(8, m // 2)) + 1, 8):
        if m % t == 0 and t >= min_rows:
            best = t
    if best is None:
        best = 8 * ((max(min_rows, min(m, 512)) + 7) // 8)
    mr = best * (-(-m // best))
    return best, mr


def _frames_per_block(nt, cap=64):
    """Frames per grid step: divisor of nt, keeps grid >= 2, caps VMEM."""
    if nt <= 1:
        return max(nt, 1)
    best = 1
    for f in range(1, min(nt, cap) + 1):
        if nt % f == 0 and (nt // f) >= 2:
            best = f
    return best


# ------------------------------ Pallas kernels -------------------------------
def _matmul_stats_kernel(a_ref, w_ref, o_ref, sum_ref, sq_ref):
    """(tm,K)@(K,N) MXU matmul; also emits per-block sum / sum-of-squares so the
    BatchNorm batch statistics never require re-reading the output from HBM."""
    acc = jnp.dot(a_ref[...], w_ref[...], preferred_element_type=jnp.float32)
    o_ref[...] = acc.astype(o_ref.dtype)
    n = acc.shape[1]
    sum_ref[...] = jnp.sum(acc, axis=0, keepdims=True).reshape(1, 1, n)
    sq_ref[...] = jnp.sum(acc * acc, axis=0, keepdims=True).reshape(1, 1, n)


def _make_conv3x3_kernel(tm, wq, cin, cout):
    """3x3 / stride-1 / pad-1 conv on a flattened (rows, C) layout.
    im2col is done in VMEM: each of the 9 taps is a shifted row-slice of the
    3-block halo window (prev | cur | next).  Output rows at frame-padding /
    alignment positions are zeroed via the mask (they also stay out of the
    fused BatchNorm partial statistics)."""
    offs = [(kh - 1) * (wq + 2) + (kw - 1) for kh in range(3) for kw in range(3)]

    def kernel(prev_ref, cur_ref, nxt_ref, w_ref, m_ref, o_ref, sum_ref, sq_ref):
        big = jnp.concatenate([prev_ref[...], cur_ref[...], nxt_ref[...]], axis=0)
        w = w_ref[...]
        acc = jnp.zeros((tm, cout), jnp.float32)
        for t, d in enumerate(offs):
            tap = big[tm + d: 2 * tm + d, :]
            acc = acc + jnp.dot(tap, w[t * cin:(t + 1) * cin, :],
                                preferred_element_type=jnp.float32)
        acc = acc * m_ref[...]
        o_ref[...] = acc.astype(o_ref.dtype)
        sum_ref[...] = jnp.sum(acc, axis=0, keepdims=True).reshape(1, 1, cout)
        sq_ref[...] = jnp.sum(acc * acc, axis=0, keepdims=True).reshape(1, 1, cout)

    return kernel


def _make_bn_relu_maxpool_kernel(hq, wq):
    """Fused BatchNorm + ReLU + MaxPool(3x3, stride 2, pad 1).
    The stride-2 window max is computed from the four (h,w)-parity planes using
    only unit-offset slices (no strided ops or big taps tensor)."""

    def kernel(ee_ref, eo_ref, oe_ref, oo_ref, s_ref, b_ref, o_ref):
        s = s_ref[...]
        b = b_ref[...]

        def bn_relu(r):
            return jnp.maximum(r[...].astype(jnp.float32) * s + b, 0.0)

        ee = bn_relu(ee_ref)
        eo = bn_relu(eo_ref)
        oe = bn_relu(oe_ref)
        oo = bn_relu(oo_ref)
        # row 0 / col 0 of the even-parity planes are the pool padding: zero them
        # (post-ReLU data is >= 0, so a 0 never wins a real window max).
        ri = lax.broadcasted_iota(jnp.int32, ee.shape, 1)
        ci = lax.broadcasted_iota(jnp.int32, ee.shape, 2)
        ee = jnp.where(jnp.logical_and(ri >= 1, ci >= 1), ee, 0.0)
        eo = jnp.where(lax.broadcasted_iota(jnp.int32, eo.shape, 1) >= 1, eo, 0.0)
        oe = jnp.where(lax.broadcasted_iota(jnp.int32, oe.shape, 2) >= 1, oe, 0.0)

        m = oo
        m = jnp.maximum(m, ee[:, 0:hq, 0:wq, :])
        m = jnp.maximum(m, ee[:, 0:hq, 1:wq + 1, :])
        m = jnp.maximum(m, ee[:, 1:hq + 1, 0:wq, :])
        m = jnp.maximum(m, ee[:, 1:hq + 1, 1:wq + 1, :])
        m = jnp.maximum(m, eo[:, 0:hq, :, :])
        m = jnp.maximum(m, eo[:, 1:hq + 1, :, :])
        m = jnp.maximum(m, oe[:, :, 0:wq, :])
        m = jnp.maximum(m, oe[:, :, 1:wq + 1, :])
        o_ref[...] = m.astype(o_ref.dtype)

    return kernel


def _bn_relu_mask_kernel(z_ref, s_ref, b_ref, m_ref, o_ref):
    """BN + ReLU; mask re-zeroes the conv frame-padding rows for the next conv."""
    z = z_ref[...].astype(jnp.float32)
    v = jnp.maximum(z * s_ref[...] + b_ref[...], 0.0) * m_ref[...]
    o_ref[...] = v.astype(o_ref.dtype)


def _make_tail_kernel(inv_hw):
    """Fused BN + residual add + ReLU + global average pool (per frame)."""

    def kernel(z_ref, skip_ref, s_ref, b_ref, m_ref, o_ref):
        z = z_ref[...].astype(jnp.float32)
        sk = skip_ref[...].astype(jnp.float32)
        v = jnp.maximum(z * s_ref[...] + b_ref[...] + sk, 0.0) * m_ref[...]
        o_ref[...] = jnp.sum(v, axis=1, keepdims=True) * inv_hw

    return kernel


# ------------------------------ Pallas wrappers -------------------------------
def conv_matmul_stats(a, w):
    """a: (M, K) bf16, w: (K, N) bf16 -> y (M', N) bf16 + per-block BN partials."""
    M, K = a.shape
    N = w.shape[1]
    tm, Mr = _pick_row_tile(M, min_rows=8)
    if Mr != M:
        a = jnp.pad(a, ((0, Mr - M), (0, 0)))
    G = Mr // tm
    return pl.pallas_call(
        _matmul_stats_kernel,
        out_shape=(jax.ShapeDtypeStruct((Mr, N), jnp.bfloat16),
                   jax.ShapeDtypeStruct((G, 1, N), jnp.float32),
                   jax.ShapeDtypeStruct((G, 1, N), jnp.float32)),
        grid=(G,),
        in_specs=[pl.BlockSpec((tm, K), lambda i: (i, 0)),
                  pl.BlockSpec((K, N), lambda i: (0, 0))],
        out_specs=(pl.BlockSpec((tm, N), lambda i: (i, 0)),
                   pl.BlockSpec((1, 1, N), lambda i: (i, 0, 0)),
                   pl.BlockSpec((1, 1, N), lambda i: (i, 0, 0))),
        compiler_params=pltpu.CompilerParams(dimension_semantics=("parallel",)),
    )(a, w)


def conv3x3_flat(a_guarded, w_flat, row_mask, tm, mr, wq):
    """a_guarded: (mr + 2*tm, C) bf16 (zero guards/pads), w_flat: (9*Cin, Cout)."""
    cin = a_guarded.shape[1]
    cout = w_flat.shape[1]
    G = mr // tm
    kern = _make_conv3x3_kernel(tm, wq, cin, cout)
    return pl.pallas_call(
        kern,
        out_shape=(jax.ShapeDtypeStruct((mr, cout), jnp.bfloat16),
                   jax.ShapeDtypeStruct((G, 1, cout), jnp.float32),
                   jax.ShapeDtypeStruct((G, 1, cout), jnp.float32)),
        grid=(G,),
        in_specs=[pl.BlockSpec((tm, cin), lambda i: (i, 0)),
                  pl.BlockSpec((tm, cin), lambda i: (i + 1, 0)),
                  pl.BlockSpec((tm, cin), lambda i: (i + 2, 0)),
                  pl.BlockSpec((9 * cin, cout), lambda i: (0, 0)),
                  pl.BlockSpec((tm, 1), lambda i: (i, 0))],
        out_specs=(pl.BlockSpec((tm, cout), lambda i: (i, 0)),
                   pl.BlockSpec((1, 1, cout), lambda i: (i, 0, 0)),
                   pl.BlockSpec((1, 1, cout), lambda i: (i, 0, 0))),
        compiler_params=pltpu.CompilerParams(dimension_semantics=("parallel",)),
    )(a_guarded, a_guarded, a_guarded, w_flat, row_mask)


def bn_relu_maxpool(y5, scale, shift, hq, wq):
    """y5: raw conv3d output (B, Do, Ho, Wo, C) bf16 -> pooled (NT, hq, wq, C) bf16."""
    B, Do, Ho, Wo, C = y5.shape
    NT = B * Do
    # only the top/left pool padding is ever used (kernel 3, stride 2, pad 1)
    yp = jnp.pad(y5, ((0, 0), (0, 0), (1, 0), (1, 0), (0, 0)))
    yp = yp.reshape(NT, Ho + 1, Wo + 1, C)
    ee = yp[:, 0::2, 0::2, :]        # (NT, hq+1, wq+1, C)
    eo = yp[:, 0::2, 1::2, :]        # (NT, hq+1, wq,   C)
    oe = yp[:, 1::2, 0::2, :]        # (NT, hq,   wq+1, C)
    oo = yp[:, 1::2, 1::2, :]        # (NT, hq,   wq,   C)
    F = _frames_per_block(NT)
    G = NT // F
    kern = _make_bn_relu_maxpool_kernel(hq, wq)
    s4 = scale.reshape(1, 1, 1, C).astype(jnp.float32)
    b4 = shift.reshape(1, 1, 1, C).astype(jnp.float32)
    return pl.pallas_call(
        kern,
        out_shape=jax.ShapeDtypeStruct((NT, hq, wq, C), jnp.bfloat16),
        grid=(G,),
        in_specs=[pl.BlockSpec((F, hq + 1, wq + 1, C), lambda i: (i, 0, 0, 0)),
                  pl.BlockSpec((F, hq + 1, wq, C), lambda i: (i, 0, 0, 0)),
                  pl.BlockSpec((F, hq, wq + 1, C), lambda i: (i, 0, 0, 0)),
                  pl.BlockSpec((F, hq, wq, C), lambda i: (i, 0, 0, 0)),
                  pl.BlockSpec((1, 1, 1, C), lambda i: (0, 0, 0, 0)),
                  pl.BlockSpec((1, 1, 1, C), lambda i: (0, 0, 0, 0))],
        out_specs=pl.BlockSpec((F, hq, wq, C), lambda i: (i, 0, 0, 0)),
        compiler_params=pltpu.CompilerParams(dimension_semantics=("parallel",)),
    )(ee, eo, oe, oo, s4, b4)


def bn_relu_mask(z3, scale, shift, frame_mask):
    """z3: (NT, S, C) bf16; output has zeros at conv frame-padding positions."""
    NT, S, C = z3.shape
    F = _frames_per_block(NT)
    G = NT // F
    return pl.pallas_call(
        _bn_relu_mask_kernel,
        out_shape=jax.ShapeDtypeStruct((NT, S, C), jnp.bfloat16),
        grid=(G,),
        in_specs=[pl.BlockSpec((F, S, C), lambda i: (i, 0, 0)),
                  pl.BlockSpec((1, 1, C), lambda i: (0, 0, 0)),
                  pl.BlockSpec((1, 1, C), lambda i: (0, 0, 0)),
                  pl.BlockSpec((1, S, 1), lambda i: (0, 0, 0))],
        out_specs=pl.BlockSpec((F, S, C), lambda i: (i, 0, 0)),
        compiler_params=pltpu.CompilerParams(dimension_semantics=("parallel",)),
    )(z3, scale.reshape(1, 1, C).astype(jnp.float32),
      shift.reshape(1, 1, C).astype(jnp.float32), frame_mask)


def bn_add_relu_avgpool(z3, scale, shift, skip3, frame_mask, hw):
    """Fused BN + residual add + ReLU + global average pool -> (NT, C) f32."""
    NT, S, C = z3.shape
    F = _frames_per_block(NT)
    G = NT // F
    kern = _make_tail_kernel(1.0 / float(hw))
    out = pl.pallas_call(
        kern,
        out_shape=jax.ShapeDtypeStruct((NT, 1, C), jnp.float32),
        grid=(G,),
        in_specs=[pl.BlockSpec((F, S, C), lambda i: (i, 0, 0)),
                  pl.BlockSpec((F, S, C), lambda i: (i, 0, 0)),
                  pl.BlockSpec((1, 1, C), lambda i: (0, 0, 0)),
                  pl.BlockSpec((1, 1, C), lambda i: (0, 0, 0)),
                  pl.BlockSpec((1, S, 1), lambda i: (0, 0, 0))],
        out_specs=pl.BlockSpec((F, 1, C), lambda i: (i, 0, 0)),
        compiler_params=pltpu.CompilerParams(dimension_semantics=("parallel",)),
    )(z3, skip3, scale.reshape(1, 1, C).astype(jnp.float32),
      shift.reshape(1, 1, C).astype(jnp.float32), frame_mask)
    return out[:, 0, :]


# ---------------------------------- glue --------------------------------------
def im2col_3d(x, ksize, stride, pad):
    """x: (B, Cin, D, H, W).  Columns ordered (Cin, kd, kh, kw).  bf16 patches."""
    kd, kh, kw = ksize
    sd, sh, sw = stride
    pd, ph, pw = pad
    xp = jnp.pad(x, ((0, 0), (0, 0), (pd, pd), (ph, ph), (pw, pw)))
    B, Cin, Dp, Hp, Wp = xp.shape
    Do = (Dp - kd) // sd + 1
    Ho = (Hp - kh) // sh + 1
    Wo = (Wp - kw) // sw + 1
    cols = []
    for c in range(Cin):
        for dd in range(kd):
            for hh in range(kh):
                for ww in range(kw):
                    cols.append(
                        xp[:, c,
                           dd:dd + (Do - 1) * sd + 1:sd,
                           hh:hh + (Ho - 1) * sh + 1:sh,
                           ww:ww + (Wo - 1) * sw + 1:sw])
    patches = jnp.stack(cols, axis=-1)                 # (B, Do, Ho, Wo, K)
    return patches.reshape(B * Do * Ho * Wo, -1), (B, Do, Ho, Wo)


def _conv_w_flat(w):
    """PyTorch (Cout, Cin, 3, 3) -> tap-major (9*Cin, Cout) bf16."""
    cout, cin, kh, kw = w.shape
    return jnp.transpose(w, (2, 3, 1, 0)).reshape(kh * kw * cin, cout).astype(jnp.bfloat16)


def _interior_masks(nt, hq, wq, mr):
    """Static masks: 1 at interior (non-conv-pad) positions, 0 elsewhere."""
    fm = np.zeros((hq + 2, wq + 2), np.float32)
    fm[1:hq + 1, 1:wq + 1] = 1.0
    frame_mask = jnp.asarray(fm.reshape(1, (hq + 2) * (wq + 2), 1))
    rm = np.zeros((mr, 1), np.float32)
    rm[:nt * (hq + 2) * (wq + 2), 0] = np.tile(fm.reshape(-1), nt)
    return jnp.asarray(rm), frame_mask


def finish_bn(sums, sqs, gamma, beta, count):
    """Training-mode BatchNorm scale/shift from fused partial sums (biased var)."""
    s = jnp.sum(sums, axis=(0, 1))
    q = jnp.sum(sqs, axis=(0, 1))
    mean = s / count
    var = jnp.maximum(q / count - mean * mean, 0.0)
    scale = gamma / jnp.sqrt(var + BN_EPS)
    shift = beta - mean * scale
    return scale, shift


# ------------------------------ Frontend forward ------------------------------
def frontend_forward(x, params):
    """x: (B, Cin, T, H, W) float32 (PyTorch NCDHW).  Returns (B, T, RES_C)."""
    assert POOL_KERNEL == (1, 3, 3) and POOL_STRIDE == (1, 2, 2) and POOL_PAD == (0, 1, 1)
    B = x.shape[0]
    C = C3D_OUT

    # --- Conv3d: im2col (plain-JAX glue, bf16) + Pallas MXU matmul with fused
    #     BatchNorm partial statistics.  No bias: it is cancelled exactly by the
    #     training-mode BatchNorm that follows. ---
    patches, (_, Do, Ho, Wo) = im2col_3d(x.astype(jnp.bfloat16),
                                         C3D_KERNEL, C3D_STRIDE, C3D_PAD)
    M = patches.shape[0]
    w3 = params['conv3d_w'].reshape(C, -1).T.astype(jnp.bfloat16)
    y, ysum, ysq = conv_matmul_stats(patches, w3)
    if y.shape[0] != M:
        y = y[:M]
    s0, b0 = finish_bn(ysum, ysq, params['bn1_g'], params['bn1_b'], M)

    # --- fused BatchNorm3d + ReLU + MaxPool3d (parity-plane window max) ---
    assert Ho % 2 == 0 and Wo % 2 == 0
    Hq, Wq = Ho // 2, Wo // 2
    pooled = bn_relu_maxpool(y.reshape(B, Do, Ho, Wo, C), s0, b0, Hq, Wq)

    # --- ResNet BasicBlock (per frame), im2col fused into the conv kernels ---
    NT = B * Do
    S = (Hq + 2) * (Wq + 2)
    Mp = NT * S
    tm, Mr = _pick_row_tile(Mp, min_rows=Wq + 3)
    row_mask, frame_mask = _interior_masks(NT, Hq, Wq, Mr)

    pooled_p = jnp.pad(pooled, ((0, 0), (1, 1), (1, 1), (0, 0)))   # conv zero-pad
    skip3 = pooled_p.reshape(NT, S, C)
    a0 = jnp.pad(pooled_p.reshape(Mp, C), ((tm, (Mr - Mp) + tm), (0, 0)))

    w1 = _conv_w_flat(params['res_w1'])
    z1, z1sum, z1sq = conv3x3_flat(a0, w1, row_mask, tm, Mr, Wq)
    s1, b1 = finish_bn(z1sum, z1sq, params['res_bn1_g'], params['res_bn1_b'],
                       NT * Hq * Wq)
    z1 = z1[:Mp] if Mr != Mp else z1
    a1 = bn_relu_mask(z1.reshape(NT, S, C), s1, b1, frame_mask)
    a1 = jnp.pad(a1.reshape(Mp, C), ((tm, (Mr - Mp) + tm), (0, 0)))

    w2 = _conv_w_flat(params['res_w2'])
    z2, z2sum, z2sq = conv3x3_flat(a1, w2, row_mask, tm, Mr, Wq)
    s2, b2 = finish_bn(z2sum, z2sq, params['res_bn2_g'], params['res_bn2_b'],
                       NT * Hq * Wq)
    z2 = z2[:Mp] if Mr != Mp else z2

    # --- fused BN + residual add + ReLU + global average pool ---
    out = bn_add_relu_avgpool(z2.reshape(NT, S, C), s2, b2, skip3, frame_mask,
                              Hq * Wq)
    return out.reshape(B, Do, C)


# ------------------------------ parameter init --------------------------------
def init_params(key):
    ks = jax.random.split(key, 3)
    kd, kh, kw = C3D_KERNEL
    # conv biases removed: conv3d bias is cancelled exactly by training-mode BN;
    # ResNet BasicBlock convs are bias-free.
    p = {
        'conv3d_w': 0.1 * jax.random.normal(ks[0], (C3D_OUT, C3D_IN, kd, kh, kw), jnp.float32),
        'bn1_g': jnp.ones((C3D_OUT,), jnp.float32),
        'bn1_b': jnp.zeros((C3D_OUT,), jnp.float32),
        'res_w1': 0.1 * jax.random.normal(ks[1], (RES_C, C3D_OUT, 3, 3), jnp.float32),
        'res_bn1_g': jnp.ones((RES_C,), jnp.float32),
        'res_bn1_b': jnp.zeros((RES_C,), jnp.float32),
        'res_w2': 0.1 * jax.random.normal(ks[2], (RES_C, RES_C, 3, 3), jnp.float32),
        'res_bn2_g': jnp.ones((RES_C,), jnp.float32),
        'res_bn2_b': jnp.zeros((RES_C,), jnp.float32),
    }
    return p


if __name__ == "__main__":
    key = jax.random.PRNGKey(0)
    pkey, xkey = jax.random.split(key)
    params = init_params(pkey)
    # video clip: batch=2, 1 channel, 4 frames, 16x16 pixels (NCDHW)
    x = jax.random.normal(xkey, (2, C3D_IN, 4, 16, 16), jnp.float32)

    fwd = jax.jit(frontend_forward)
    out = fwd(x, params)
    out = jax.block_until_ready(out)
    assert out.shape == (2, 4, RES_C), out.shape
    assert bool(jnp.all(jnp.isfinite(out)))
    print("KERNEL_OK")
</pallas_src>

<mosaic_0001>
module attributes {stable_mosaic.version = 11 : i64} {
  func.func @_matmul_stats_kernel(%arg0: i32, %arg1: memref<256x75xbf16, #tpu.memory_space<vmem>>, %arg2: memref<75x8xbf16, #tpu.memory_space<vmem>>, %arg3: memref<256x8xbf16, #tpu.memory_space<vmem>>, %arg4: memref<1x1x8xf32, #tpu.memory_space<vmem>>, %arg5: memref<1x1x8xf32, #tpu.memory_space<vmem>>) attributes {dimension_semantics = [#tpu.dimension_semantics<parallel>], iteration_bounds = array<i64: 2>, scalar_prefetch = 0 : i64, scratch_operands = 0 : i64, tpu.core_type = #tpu.core_type<tc>, window_params = [{transform_indices = @transform_0, window_bounds = array<i64: 256, 75>}, {pipeline_mode = #tpu.pipeline_mode<synchronous>, transform_indices = @transform_1, window_bounds = array<i64: 75, 8>}, {transform_indices = @transform_2, window_bounds = array<i64: 256, 8>}, {transform_indices = @transform_3, window_bounds = array<i64: 1, 1, 8>}, {transform_indices = @transform_4, window_bounds = array<i64: 1, 1, 8>}]} {
    %c0 = arith.constant 0 : index
    %c0_0 = arith.constant 0 : index
    %0 = vector.load %arg1[%c0, %c0_0] : memref<256x75xbf16, #tpu.memory_space<vmem>>, vector<256x75xbf16>
    %c0_1 = arith.constant 0 : index
    %c0_2 = arith.constant 0 : index
    %1 = vector.load %arg2[%c0_1, %c0_2] : memref<75x8xbf16, #tpu.memory_space<vmem>>, vector<75x8xbf16>
    %cst = arith.constant dense<0.000000e+00> : vector<256x8xf32>
    %2 = tpu.matmul %0, %1, %cst {dimension_numbers = #tpu.dot_dimension_numbers<[1], [0], [0], [1], [0, 0, 1, 1], [], []>} : vector<256x75xbf16>, vector<75x8xbf16>, vector<256x8xf32> -> vector<256x8xf32>
    %3 = arith.truncf %2 : vector<256x8xf32> to vector<256x8xbf16>
    %c0_3 = arith.constant 0 : index
    %c0_4 = arith.constant 0 : index
    %4 = vector.load %arg3[%c0_3, %c0_4] : memref<256x8xbf16, #tpu.memory_space<vmem>>, vector<256x8xbf16>
    tpu.vector_store %arg3[%c0_3, %c0_4], %3 {strides = array<i32>} : memref<256x8xbf16, #tpu.memory_space<vmem>>, vector<256x8xbf16>,
    %cst_5 = arith.constant dense<0.000000e+00> : vector<8xf32>
    %5 = vector.multi_reduction <add>, %2, %cst_5 [0] : vector<256x8xf32> to vector<8xf32>
    %6 = vector.shape_cast %5 : vector<8xf32> to vector<1x8xf32>
    %7 = vector.shape_cast %6 : vector<1x8xf32> to vector<1x1x8xf32>
    %c0_6 = arith.constant 0 : index
    %c0_7 = arith.constant 0 : index
    %c0_8 = arith.constant 0 : index
    %8 = vector.load %arg4[%c0_6, %c0_7, %c0_8] : memref<1x1x8xf32, #tpu.memory_space<vmem>>, vector<1x1x8xf32>
    tpu.vector_store %arg4[%c0_6, %c0_7, %c0_8], %7 {strides = array<i32>} : memref<1x1x8xf32, #tpu.memory_space<vmem>>, vector<1x1x8xf32>,
    %9 = arith.mulf %2, %2 : vector<256x8xf32>
    %cst_9 = arith.constant dense<0.000000e+00> : vector<8xf32>
    %10 = vector.multi_reduction <add>, %9, %cst_9 [0] : vector<256x8xf32> to vector<8xf32>
    %11 = vector.shape_cast %10 : vector<8xf32> to vector<1x8xf32>
    %12 = vector.shape_cast %11 : vector<1x8xf32> to vector<1x1x8xf32>
    %c0_10 = arith.constant 0 : index
    %c0_11 = arith.constant 0 : index
    %c0_12 = arith.constant 0 : index
    %13 = vector.load %arg5[%c0_10, %c0_11, %c0_12] : memref<1x1x8xf32, #tpu.memory_space<vmem>>, vector<1x1x8xf32>
    tpu.vector_store %arg5[%c0_10, %c0_11, %c0_12], %12 {strides = array<i32>} : memref<1x1x8xf32, #tpu.memory_space<vmem>>, vector<1x1x8xf32>,
    return
  }
  func.func @transform_0(%arg0: i32) -> (i32, i32) {
    %c0_i32 = arith.constant 0 : i32
    %c0_i32_0 = arith.constant 0 : i32
    return %arg0, %c0_i32 : i32, i32
  }
  func.func @transform_1(%arg0: i32) -> (i32, i32) {
    %c0_i32 = arith.constant 0 : i32
    %c0_i32_0 = arith.constant 0 : i32
    %c0_i32_1 = arith.constant 0 : i32
    return %c0_i32, %c0_i32_0 : i32, i32
  }
  func.func @transform_2(%arg0: i32) -> (i32, i32) {
    %c0_i32 = arith.constant 0 : i32
    %c0_i32_0 = arith.constant 0 : i32
    return %arg0, %c0_i32 : i32, i32
  }
  func.func @transform_3(%arg0: i32) -> (i32, i32, i32) {
    %c0_i32 = arith.constant 0 : i32
    %c0_i32_0 = arith.constant 0 : i32
    %c0_i32_1 = arith.constant 0 : i32
    return %arg0, %c0_i32, %c0_i32_0 : i32, i32, i32
  }
  func.func @transform_4(%arg0: i32) -> (i32, i32, i32) {
    %c0_i32 = arith.constant 0 : i32
    %c0_i32_0 = arith.constant 0 : i32
    %c0_i32_1 = arith.constant 0 : i32
    return %arg0, %c0_i32, %c0_i32_0 : i32, i32, i32
  }
}

module attributes {stable_mosaic.version = 11 : i64} {
  func.func @kernel(%arg0: i32, %arg1: memref<4x5x5x8xbf16, #tpu.memory_space<vmem>>, %arg2: memref<4x5x4x8xbf16, #tpu.memory_space<vmem>>, %arg3: memref<4x4x5x8xbf16, #tpu.memory_space<vmem>>, %arg4: memref<4x4x4x8xbf16, #tpu.memory_space<vmem>>, %arg5: memref<1x1x1x8xf32, #tpu.memory_space<vmem>>, %arg6: memref<1x1x1x8xf32, #tpu.memory_space<vmem>>, %arg7: memref<4x4x4x8xbf16, #tpu.memory_space<vmem>>) attributes {dimension_semantics = [#tpu.dimension_semantics<parallel>], iteration_bounds = array<i64: 2>, scalar_prefetch = 0 : i64, scratch_operands = 0 : i64, tpu.core_type = #tpu.core_type<tc>, window_params = [{transform_indices = @transform_0, window_bounds = array<i64: 4, 5, 5, 8>}, {transform_indices = @transform_1, window_bounds = array<i64: 4, 5, 4, 8>}, {transform_indices = @transform_2, window_bounds = array<i64: 4, 4, 5, 8>}, {transform_indices = @transform_3, window_bounds = array<i64: 4, 4, 4, 8>}, {pipeline_mode = #tpu.pipeline_mode<synchronous>, transform_indices = @transform_4, window_bounds = array<i64: 1, 1, 1, 8>}, {pipeline_mode = #tpu.pipeline_mode<synchronous>, transform_indices = @transform_5, window_bounds = array<i64: 1, 1, 1, 8>}, {transform_indices = @transform_6, window_bounds = array<i64: 4, 4, 4, 8>}]} {
    %c0 = arith.constant 0 : index
    %c0_0 = arith.constant 0 : index
    %c0_1 = arith.constant 0 : index
    %c0_2 = arith.constant 0 : index
    %0 = vector.load %arg5[%c0, %c0_0, %c0_1, %c0_2] : memref<1x1x1x8xf32, #tpu.memory_space<vmem>>, vector<1x1x1x8xf32>
    %c0_3 = arith.constant 0 : index
    %c0_4 = arith.constant 0 : index
    %c0_5 = arith.constant 0 : index
    %c0_6 = arith.constant 0 : index
    %1 = vector.load %arg6[%c0_3, %c0_4, %c0_5, %c0_6] : memref<1x1x1x8xf32, #tpu.memory_space<vmem>>, vector<1x1x1x8xf32>
    %c0_7 = arith.constant 0 : index
    %c0_8 = arith.constant 0 : index
    %c0_9 = arith.constant 0 : index
    %c0_10 = arith.constant 0 : index
    %2 = vector.load %arg1[%c0_7, %c0_8, %c0_9, %c0_10] : memref<4x5x5x8xbf16, #tpu.memory_space<vmem>>, vector<4x5x5x8xbf16>
    %3 = arith.extf %2 : vector<4x5x5x8xbf16> to vector<4x5x5x8xf32>
    %4 = vector.broadcast %0 : vector<1x1x1x8xf32> to vector<4x5x5x8xf32>
    %5 = arith.mulf %3, %4 : vector<4x5x5x8xf32>
    %6 = vector.broadcast %1 : vector<1x1x1x8xf32> to vector<4x5x5x8xf32>
    %7 = arith.addf %5, %6 : vector<4x5x5x8xf32>
    %cst = arith.constant 0.000000e+00 : f32
    %8 = vector.broadcast %cst : f32 to vector<4x5x5x8xf32>
    %9 = arith.maximumf %7, %8 : vector<4x5x5x8xf32>
    %c0_11 = arith.constant 0 : index
    %c0_12 = arith.constant 0 : index
    %c0_13 = arith.constant 0 : index
    %c0_14 = arith.constant 0 : index
    %10 = vector.load %arg2[%c0_11, %c0_12, %c0_13, %c0_14] : memref<4x5x4x8xbf16, #tpu.memory_space<vmem>>, vector<4x5x4x8xbf16>
    %11 = arith.extf %10 : vector<4x5x4x8xbf16> to vector<4x5x4x8xf32>
    %12 = vector.broadcast %0 : vector<1x1x1x8xf32> to vector<4x5x4x8xf32>
    %13 = arith.mulf %11, %12 : vector<4x5x4x8xf32>
    %14 = vector.broadcast %1 : vector<1x1x1x8xf32> to vector<4x5x4x8xf32>
    %15 = arith.addf %13, %14 : vector<4x5x4x8xf32>
    %cst_15 = arith.constant 0.000000e+00 : f32
    %16 = vector.broadcast %cst_15 : f32 to vector<4x5x4x8xf32>
    %17 = arith.maximumf %15, %16 : vector<4x5x4x8xf32>
    %c0_16 = arith.constant 0 : index
    %c0_17 = arith.constant 0 : index
    %c0_18 = arith.constant 0 : index
    %c0_19 = arith.constant 0 : index
    %18 = vector.load %arg3[%c0_16, %c0_17, %c0_18, %c0_19] : memref<4x4x5x8xbf16, #tpu.memory_space<vmem>>, vector<4x4x5x8xbf16>
    %19 = arith.extf %18 : vector<4x4x5x8xbf16> to vector<4x4x5x8xf32>
    %20 = vector.broadcast %0 : vector<1x1x1x8xf32> to vector<4x4x5x8xf32>
    %21 = arith.mulf %19, %20 : vector<4x4x5x8xf32>
    %22 = vector.broadcast %1 : vector<1x1x1x8xf32> to vector<4x4x5x8xf32>
    %23 = arith.addf %21, %22 : vector<4x4x5x8xf32>
    %cst_20 = arith.constant 0.000000e+00 : f32
    %24 = vector.broadcast %cst_20 : f32 to vector<4x4x5x8xf32>
    %25 = arith.maximumf %23, %24 : vector<4x4x5x8xf32>
    %c0_21 = arith.constant 0 : index
    %c0_22 = arith.constant 0 : index
    %c0_23 = arith.constant 0 : index
    %c0_24 = arith.constant 0 : index
    %26 = vector.load %arg4[%c0_21, %c0_22, %c0_23, %c0_24] : memref<4x4x4x8xbf16, #tpu.memory_space<vmem>>, vector<4x4x4x8xbf16>
    %27 = arith.extf %26 : vector<4x4x4x8xbf16> to vector<4x4x4x8xf32>
    %28 = vector.broadcast %0 : vector<1x1x1x8xf32> to vector<4x4x4x8xf32>
    %29 = arith.mulf %27, %28 : vector<4x4x4x8xf32>
    %30 = vector.broadcast %1 : vector<1x1x1x8xf32> to vector<4x4x4x8xf32>
    %31 = arith.addf %29, %30 : vector<4x4x4x8xf32>
    %cst_25 = arith.constant 0.000000e+00 : f32
    %32 = vector.broadcast %cst_25 : f32 to vector<4x4x4x8xf32>
    %33 = arith.maximumf %31, %32 : vector<4x4x4x8xf32>
    %34 = tpu.iota {dimensions = array<i32: 1>} : vector<4x5x5x8xi32>
    %35 = tpu.iota {dimensions = array<i32: 2>} : vector<4x5x5x8xi32>
    %c1_i32 = arith.constant 1 : i32
    %36 = vector.broadcast %c1_i32 : i32 to vector<4x5x5x8xi32>
    %37 = arith.cmpi sge, %34, %36 : vector<4x5x5x8xi32>
    %c1_i32_26 = arith.constant 1 : i32
    %38 = vector.broadcast %c1_i32_26 : i32 to vector<4x5x5x8xi32>
    %39 = arith.cmpi sge, %35, %38 : vector<4x5x5x8xi32>
    %40 = arith.andi %37, %39 : vector<4x5x5x8xi1>
    %cst_27 = arith.constant 0.000000e+00 : f32
    %41 = vector.broadcast %cst_27 : f32 to vector<4x5x5x8xf32>
    %42 = arith.select %40, %9, %41 : vector<4x5x5x8xi1>, vector<4x5x5x8xf32>
    %43 = tpu.iota {dimensions = array<i32: 1>} : vector<4x5x4x8xi32>
    %c1_i32_28 = arith.constant 1 : i32
    %44 = vector.broadcast %c1_i32_28 : i32 to vector<4x5x4x8xi32>
    %45 = arith.cmpi sge, %43, %44 : vector<4x5x4x8xi32>
    %cst_29 = arith.constant 0.000000e+00 : f32
    %46 = vector.broadcast %cst_29 : f32 to vector<4x5x4x8xf32>
    %47 = arith.select %45, %17, %46 : vector<4x5x4x8xi1>, vector<4x5x4x8xf32>
    %48 = tpu.iota {dimensions = array<i32: 2>} : vector<4x4x5x8xi32>
    %c1_i32_30 = arith.constant 1 : i32
    %49 = vector.broadcast %c1_i32_30 : i32 to vector<4x4x5x8xi32>
    %50 = arith.cmpi sge, %48, %49 : vector<4x4x5x8xi32>
    %cst_31 = arith.constant 0.000000e+00 : f32
    %51 = vector.broadcast %cst_31 : f32 to vector<4x4x5x8xf32>
    %52 = arith.select %50, %25, %51 : vector<4x4x5x8xi1>, vector<4x4x5x8xf32>
    %53 = vector.extract_strided_slice %42 {offsets = [0, 0, 0, 0], sizes = [4, 4, 4, 8], strides = [1, 1, 1, 1]} : vector<4x5x5x8xf32> to vector<4x4x4x8xf32>
    %54 = arith.maximumf %33, %53 : vector<4x4x4x8xf32>
    %55 = vector.extract_strided_slice %42 {offsets = [0, 0, 1, 0], sizes = [4, 4, 4, 8], strides = [1, 1, 1, 1]} : vector<4x5x5x8xf32> to vector<4x4x4x8xf32>
    %56 = arith.maximumf %54, %55 : vector<4x4x4x8xf32>
    %57 = vector.extract_strided_slice %42 {offsets = [0, 1, 0, 0], sizes = [4, 4, 4, 8], strides = [1, 1, 1, 1]} : vector<4x5x5x8xf32> to vector<4x4x4x8xf32>
    %58 = arith.maximumf %56, %57 : vector<4x4x4x8xf32>
    %59 = vector.extract_strided_slice %42 {offsets = [0, 1, 1, 0], sizes = [4, 4, 4, 8], strides = [1, 1, 1, 1]} : vector<4x5x5x8xf32> to vector<4x4x4x8xf32>
    %60 = arith.maximumf %58, %59 : vector<4x4x4x8xf32>
    %61 = vector.extract_strided_slice %47 {offsets = [0, 0, 0, 0], sizes = [4, 4, 4, 8], strides = [1, 1, 1, 1]} : vector<4x5x4x8xf32> to vector<4x4x4x8xf32>
    %62 = arith.maximumf %60, %61 : vector<4x4x4x8xf32>
    %63 = vector.extract_strided_slice %47 {offsets = [0, 1, 0, 0], sizes = [4, 4, 4, 8], strides = [1, 1, 1, 1]} : vector<4x5x4x8xf32> to vector<4x4x4x8xf32>
    %64 = arith.maximumf %62, %63 : vector<4x4x4x8xf32>
    %65 = vector.extract_strided_slice %52 {offsets = [0, 0, 0, 0], sizes = [4, 4, 4, 8], strides = [1, 1, 1, 1]} : vector<4x4x5x8xf32> to vector<4x4x4x8xf32>
    %66 = arith.maximumf %64, %65 : vector<4x4x4x8xf32>
    %67 = vector.extract_strided_slice %52 {offsets = [0, 0, 1, 0], sizes = [4, 4, 4, 8], strides = [1, 1, 1, 1]} : vector<4x4x5x8xf32> to vector<4x4x4x8xf32>
    %68 = arith.maximumf %66, %67 : vector<4x4x4x8xf32>
    %69 = arith.truncf %68 : vector<4x4x4x8xf32> to vector<4x4x4x8xbf16>
    %c0_32 = arith.constant 0 : index
    %c0_33 = arith.constant 0 : index
    %c0_34 = arith.constant 0 : index
    %c0_35 = arith.constant 0 : index
    %70 = vector.load %arg7[%c0_32, %c0_33, %c0_34, %c0_35] : memref<4x4x4x8xbf16, #tpu.memory_space<vmem>>, vector<4x4x4x8xbf16>
    tpu.vector_store %arg7[%c0_32, %c0_33, %c0_34, %c0_35], %69 {strides = array<i32>} : memref<4x4x4x8xbf16, #tpu.memory_space<vmem>>, vector<4x4x4x8xbf16>,
    return
  }
  func.func @transform_0(%arg0: i32) -> (i32, i32, i32, i32) {
    %c0_i32 = arith.constant 0 : i32
    %c0_i32_0 = arith.constant 0 : i32
    %c0_i32_1 = arith.constant 0 : i32
    %c0_i32_2 = arith.constant 0 : i32
    return %arg0, %c0_i32, %c0_i32_0, %c0_i32_1 : i32, i32, i32, i32
  }
  func.func @transform_1(%arg0: i32) -> (i32, i32, i32, i32) {
    %c0_i32 = arith.constant 0 : i32
    %c0_i32_0 = arith.constant 0 : i32
    %c0_i32_1 = arith.constant 0 : i32
    %c0_i32_2 = arith.constant 0 : i32
    return %arg0, %c0_i32, %c0_i32_0, %c0_i32_1 : i32, i32, i32, i32
  }
  func.func @transform_2(%arg0: i32) -> (i32, i32, i32, i32) {
    %c0_i32 = arith.constant 0 : i32
    %c0_i32_0 = arith.constant 0 : i32
    %c0_i32_1 = arith.constant 0 : i32
    %c0_i32_2 = arith.constant 0 : i32
    return %arg0, %c0_i32, %c0_i32_0, %c0_i32_1 : i32, i32, i32, i32
  }
  func.func @transform_3(%arg0: i32) -> (i32, i32, i32, i32) {
    %c0_i32 = arith.constant 0 : i32
    %c0_i32_0 = arith.constant 0 : i32
    %c0_i32_1 = arith.constant 0 : i32
    %c0_i32_2 = arith.constant 0 : i32
    return %arg0, %c0_i32, %c0_i32_0, %c0_i32_1 : i32, i32, i32, i32
  }
  func.func @transform_4(%arg0: i32) -> (i32, i32, i32, i32) {
    %c0_i32 = arith.constant 0 : i32
    %c0_i32_0 = arith.constant 0 : i32
    %c0_i32_1 = arith.constant 0 : i32
    %c0_i32_2 = arith.constant 0 : i32
    %c0_i32_3 = arith.constant 0 : i32
    return %c0_i32, %c0_i32_0, %c0_i32_1, %c0_i32_2 : i32, i32, i32, i32
  }
  func.func @transform_5(%arg0: i32) -> (i32, i32, i32, i32) {
    %c0_i32 = arith.constant 0 : i32
    %c0_i32_0 = arith.constant 0 : i32
    %c0_i32_1 = arith.constant 0 : i32
    %c0_i32_2 = arith.constant 0 : i32
    %c0_i32_3 = arith.constant 0 : i32
    return %c0_i32, %c0_i32_0, %c0_i32_1, %c0_i32_2 : i32, i32, i32, i32
  }
  func.func @transform_6(%arg0: i32) -> (i32, i32, i32, i32) {
    %c0_i32 = arith.constant 0 : i32
    %c0_i32_0 = arith.constant 0 : i32
    %c0_i32_1 = arith.constant 0 : i32
    %c0_i32_2 = arith.constant 0 : i32
    return %arg0, %c0_i32, %c0_i32_0, %c0_i32_1 : i32, i32, i32, i32
  }
}

module attributes {stable_mosaic.version = 11 : i64} {
  func.func @_bn_relu_mask_kernel(%arg0: i32, %arg1: memref<4x36x8xbf16, #tpu.memory_space<vmem>>, %arg2: memref<1x1x8xf32, #tpu.memory_space<vmem>>, %arg3: memref<1x1x8xf32, #tpu.memory_space<vmem>>, %arg4: memref<1x36x1xf32, #tpu.memory_space<vmem>>, %arg5: memref<4x36x8xbf16, #tpu.memory_space<vmem>>) attributes {dimension_semantics = [#tpu.dimension_semantics<parallel>], iteration_bounds = array<i64: 2>, scalar_prefetch = 0 : i64, scratch_operands = 0 : i64, tpu.core_type = #tpu.core_type<tc>, window_params = [{transform_indices = @transform_0, window_bounds = array<i64: 4, 36, 8>}, {pipeline_mode = #tpu.pipeline_mode<synchronous>, transform_indices = @transform_1, window_bounds = array<i64: 1, 1, 8>}, {pipeline_mode = #tpu.pipeline_mode<synchronous>, transform_indices = @transform_2, window_bounds = array<i64: 1, 1, 8>}, {pipeline_mode = #tpu.pipeline_mode<synchronous>, transform_indices = @transform_3, window_bounds = array<i64: 1, 36, 1>}, {transform_indices = @transform_4, window_bounds = array<i64: 4, 36, 8>}]} {
    %c0 = arith.constant 0 : index
    %c0_0 = arith.constant 0 : index
    %c0_1 = arith.constant 0 : index
    %0 = vector.load %arg1[%c0, %c0_0, %c0_1] : memref<4x36x8xbf16, #tpu.memory_space<vmem>>, vector<4x36x8xbf16>
    %1 = arith.extf %0 : vector<4x36x8xbf16> to vector<4x36x8xf32>
    %c0_2 = arith.constant 0 : index
    %c0_3 = arith.constant 0 : index
    %c0_4 = arith.constant 0 : index
    %2 = vector.load %arg2[%c0_2, %c0_3, %c0_4] : memref<1x1x8xf32, #tpu.memory_space<vmem>>, vector<1x1x8xf32>
    %3 = vector.broadcast %2 : vector<1x1x8xf32> to vector<4x36x8xf32>
    %4 = arith.mulf %1, %3 : vector<4x36x8xf32>
    %c0_5 = arith.constant 0 : index
    %c0_6 = arith.constant 0 : index
    %c0_7 = arith.constant 0 : index
    %5 = vector.load %arg3[%c0_5, %c0_6, %c0_7] : memref<1x1x8xf32, #tpu.memory_space<vmem>>, vector<1x1x8xf32>
    %6 = vector.broadcast %5 : vector<1x1x8xf32> to vector<4x36x8xf32>
    %7 = arith.addf %4, %6 : vector<4x36x8xf32>
    %cst = arith.constant 0.000000e+00 : f32
    %8 = vector.broadcast %cst : f32 to vector<4x36x8xf32>
    %9 = arith.maximumf %7, %8 : vector<4x36x8xf32>
    %c0_8 = arith.constant 0 : index
    %c0_9 = arith.constant 0 : index
    %c0_10 = arith.constant 0 : index
    %10 = vector.load %arg4[%c0_8, %c0_9, %c0_10] : memref<1x36x1xf32, #tpu.memory_space<vmem>>, vector<1x36x1xf32>
    %11 = vector.broadcast %10 : vector<1x36x1xf32> to vector<4x36x8xf32>
    %12 = arith.mulf %9, %11 : vector<4x36x8xf32>
    %13 = arith.truncf %12 : vector<4x36x8xf32> to vector<4x36x8xbf16>
    %c0_11 = arith.constant 0 : index
    %c0_12 = arith.constant 0 : index
    %c0_13 = arith.constant 0 : index
    %14 = vector.load %arg5[%c0_11, %c0_12, %c0_13] : memref<4x36x8xbf16, #tpu.memory_space<vmem>>, vector<4x36x8xbf16>
    tpu.vector_store %arg5[%c0_11, %c0_12, %c0_13], %13 {strides = array<i32>} : memref<4x36x8xbf16, #tpu.memory_space<vmem>>, vector<4x36x8xbf16>,
    return
  }
  func.func @transform_0(%arg0: i32) -> (i32, i32, i32) {
    %c0_i32 = arith.constant 0 : i32
    %c0_i32_0 = arith.constant 0 : i32
    %c0_i32_1 = arith.constant 0 : i32
    return %arg0, %c0_i32, %c0_i32_0 : i32, i32, i32
  }
  func.func @transform_1(%arg0: i32) -> (i32, i32, i32) {
    %c0_i32 = arith.constant 0 : i32
    %c0_i32_0 = arith.constant 0 : i32
    %c0_i32_1 = arith.constant 0 : i32
    %c0_i32_2 = arith.constant 0 : i32
    return %c0_i32, %c0_i32_0, %c0_i32_1 : i32, i32, i32
  }
  func.func @transform_2(%arg0: i32) -> (i32, i32, i32) {
    %c0_i32 = arith.constant 0 : i32
    %c0_i32_0 = arith.constant 0 : i32
    %c0_i32_1 = arith.constant 0 : i32
    %c0_i32_2 = arith.constant 0 : i32
    return %c0_i32, %c0_i32_0, %c0_i32_1 : i32, i32, i32
  }
  func.func @transform_3(%arg0: i32) -> (i32, i32, i32) {
    %c0_i32 = arith.constant 0 : i32
    %c0_i32_0 = arith.constant 0 : i32
    %c0_i32_1 = arith.constant 0 : i32
    %c0_i32_2 = arith.constant 0 : i32
    return %c0_i32, %c0_i32_0, %c0_i32_1 : i32, i32, i32
  }
  func.func @transform_4(%arg0: i32) -> (i32, i32, i32) {
    %c0_i32 = arith.constant 0 : i32
    %c0_i32_0 = arith.constant 0 : i32
    %c0_i32_1 = arith.constant 0 : i32
    return %arg0, %c0_i32, %c0_i32_0 : i32, i32, i32
  }
}

module attributes {stable_mosaic.version = 11 : i64} {
  func.func @kernel(%arg0: i32, %arg1: memref<144x8xbf16, #tpu.memory_space<vmem>>, %arg2: memref<144x8xbf16, #tpu.memory_space<vmem>>, %arg3: memref<144x8xbf16, #tpu.memory_space<vmem>>, %arg4: memref<72x8xbf16, #tpu.memory_space<vmem>>, %arg5: memref<144x1xf32, #tpu.memory_space<vmem>>, %arg6: memref<144x8xbf16, #tpu.memory_space<vmem>>, %arg7: memref<1x1x8xf32, #tpu.memory_space<vmem>>, %arg8: memref<1x1x8xf32, #tpu.memory_space<vmem>>) attributes {dimension_semantics = [#tpu.dimension_semantics<parallel>], iteration_bounds = array<i64: 2>, scalar_prefetch = 0 : i64, scratch_operands = 0 : i64, tpu.core_type = #tpu.core_type<tc>, window_params = [{transform_indices = @transform_0, window_bounds = array<i64: 144, 8>}, {transform_indices = @transform_1, window_bounds = array<i64: 144, 8>}, {transform_indices = @transform_2, window_bounds = array<i64: 144, 8>}, {pipeline_mode = #tpu.pipeline_mode<synchronous>, transform_indices = @transform_3, window_bounds = array<i64: 72, 8>}, {transform_indices = @transform_4, window_bounds = array<i64: 144, 1>}, {transform_indices = @transform_5, window_bounds = array<i64: 144, 8>}, {transform_indices = @transform_6, window_bounds = array<i64: 1, 1, 8>}, {transform_indices = @transform_7, window_bounds = array<i64: 1, 1, 8>}]} {
    %c0 = arith.constant 0 : index
    %c0_0 = arith.constant 0 : index
    %0 = vector.load %arg1[%c0, %c0_0] : memref<144x8xbf16, #tpu.memory_space<vmem>>, vector<144x8xbf16>
    %c0_1 = arith.constant 0 : index
    %c0_2 = arith.constant 0 : index
    %1 = vector.load %arg2[%c0_1, %c0_2] : memref<144x8xbf16, #tpu.memory_space<vmem>>, vector<144x8xbf16>
    %c0_3 = arith.constant 0 : index
    %c0_4 = arith.constant 0 : index
    %2 = vector.load %arg3[%c0_3, %c0_4] : memref<144x8xbf16, #tpu.memory_space<vmem>>, vector<144x8xbf16>
    %3 = tpu.concatenate %0, %1, %2 in 0 : vector<144x8xbf16>, vector<144x8xbf16>, vector<144x8xbf16> -> vector<432x8xbf16>
    %c0_5 = arith.constant 0 : index
    %c0_6 = arith.constant 0 : index
    %4 = vector.load %arg4[%c0_5, %c0_6] : memref<72x8xbf16, #tpu.memory_space<vmem>>, vector<72x8xbf16>
    %cst = arith.constant 0.000000e+00 : f32
    %5 = vector.broadcast %cst : f32 to vector<144x8xf32>
    %6 = vector.extract_strided_slice %3 {offsets = [137, 0], sizes = [144, 8], strides = [1, 1]} : vector<432x8xbf16> to vector<144x8xbf16>
    %7 = vector.extract_strided_slice %4 {offsets = [0, 0], sizes = [8, 8], strides = [1, 1]} : vector<72x8xbf16> to vector<8x8xbf16>
    %cst_7 = arith.constant dense<0.000000e+00> : vector<144x8xf32>
    %8 = tpu.matmul %6, %7, %cst_7 {dimension_numbers = #tpu.dot_dimension_numbers<[1], [0], [0], [1], [0, 0, 1, 1], [], []>} : vector<144x8xbf16>, vector<8x8xbf16>, vector<144x8xf32> -> vector<144x8xf32>
    %9 = arith.addf %5, %8 : vector<144x8xf32>
    %10 = vector.extract_strided_slice %3 {offsets = [138, 0], sizes = [144, 8], strides = [1, 1]} : vector<432x8xbf16> to vector<144x8xbf16>
    %11 = vector.extract_strided_slice %4 {offsets = [8, 0], sizes = [8, 8], strides = [1, 1]} : vector<72x8xbf16> to vector<8x8xbf16>
    %cst_8 = arith.constant dense<0.000000e+00> : vector<144x8xf32>
    %12 = tpu.matmul %10, %11, %cst_8 {dimension_numbers = #tpu.dot_dimension_numbers<[1], [0], [0], [1], [0, 0, 1, 1], [], []>} : vector<144x8xbf16>, vector<8x8xbf16>, vector<144x8xf32> -> vector<144x8xf32>
    %13 = arith.addf %9, %12 : vector<144x8xf32>
    %14 = vector.extract_strided_slice %3 {offsets = [139, 0], sizes = [144, 8], strides = [1, 1]} : vector<432x8xbf16> to vector<144x8xbf16>
    %15 = vector.extract_strided_slice %4 {offsets = [16, 0], sizes = [8, 8], strides = [1, 1]} : vector<72x8xbf16> to vector<8x8xbf16>
    %cst_9 = arith.constant dense<0.000000e+00> : vector<144x8xf32>
    %16 = tpu.matmul %14, %15, %cst_9 {dimension_numbers = #tpu.dot_dimension_numbers<[1], [0], [0], [1], [0, 0, 1, 1], [], []>} : vector<144x8xbf16>, vector<8x8xbf16>, vector<144x8xf32> -> vector<144x8xf32>
    %17 = arith.addf %13, %16 : vector<144x8xf32>
    %18 = vector.extract_strided_slice %3 {offsets = [143, 0], sizes = [144, 8], strides = [1, 1]} : vector<432x8xbf16> to vector<144x8xbf16>
    %19 = vector.extract_strided_slice %4 {offsets = [24, 0], sizes = [8, 8], strides = [1, 1]} : vector<72x8xbf16> to vector<8x8xbf16>
    %cst_10 = arith.constant dense<0.000000e+00> : vector<144x8xf32>
    %20 = tpu.matmul %18, %19, %cst_10 {dimension_numbers = #tpu.dot_dimension_numbers<[1], [0], [0], [1], [0, 0, 1, 1], [], []>} : vector<144x8xbf16>, vector<8x8xbf16>, vector<144x8xf32> -> vector<144x8xf32>
    %21 = arith.addf %17, %20 : vector<144x8xf32>
    %22 = vector.extract_strided_slice %3 {offsets = [144, 0], sizes = [144, 8], strides = [1, 1]} : vector<432x8xbf16> to vector<144x8xbf16>
    %23 = vector.extract_strided_slice %4 {offsets = [32, 0], sizes = [8, 8], strides = [1, 1]} : vector<72x8xbf16> to vector<8x8xbf16>
    %cst_11 = arith.constant dense<0.000000e+00> : vector<144x8xf32>
    %24 = tpu.matmul %22, %23, %cst_11 {dimension_numbers = #tpu.dot_dimension_numbers<[1], [0], [0], [1], [0, 0, 1, 1], [], []>} : vector<144x8xbf16>, vector<8x8xbf16>, vector<144x8xf32> -> vector<144x8xf32>
    %25 = arith.addf %21, %24 : vector<144x8xf32>
    %26 = vector.extract_strided_slice %3 {offsets = [145, 0], sizes = [144, 8], strides = [1, 1]} : vector<432x8xbf16> to vector<144x8xbf16>
    %27 = vector.extract_strided_slice %4 {offsets = [40, 0], sizes = [8, 8], strides = [1, 1]} : vector<72x8xbf16> to vector<8x8xbf16>
    %cst_12 = arith.constant dense<0.000000e+00> : vector<144x8xf32>
    %28 = tpu.matmul %26, %27, %cst_12 {dimension_numbers = #tpu.dot_dimension_numbers<[1], [0], [0], [1], [0, 0, 1, 1], [], []>} : vector<144x8xbf16>, vector<8x8xbf16>, vector<144x8xf32> -> vector<144x8xf32>
    %29 = arith.addf %25, %28 : vector<144x8xf32>
    %30 = vector.extract_strided_slice %3 {offsets = [149, 0], sizes = [144, 8], strides = [1, 1]} : vector<432x8xbf16> to vector<144x8xbf16>
    %31 = vector.extract_strided_slice %4 {offsets = [48, 0], sizes = [8, 8], strides = [1, 1]} : vector<72x8xbf16> to vector<8x8xbf16>
    %cst_13 = arith.constant dense<0.000000e+00> : vector<144x8xf32>
    %32 = tpu.matmul %30, %31, %cst_13 {dimension_numbers = #tpu.dot_dimension_numbers<[1], [0], [0], [1], [0, 0, 1, 1], [], []>} : vector<144x8xbf16>, vector<8x8xbf16>, vector<144x8xf32> -> vector<144x8xf32>
    %33 = arith.addf %29, %32 : vector<144x8xf32>
    %34 = vector.extract_strided_slice %3 {offsets = [150, 0], sizes = [144, 8], strides = [1, 1]} : vector<432x8xbf16> to vector<144x8xbf16>
    %35 = vector.extract_strided_slice %4 {offsets = [56, 0], sizes = [8, 8], strides = [1, 1]} : vector<72x8xbf16> to vector<8x8xbf16>
    %cst_14 = arith.constant dense<0.000000e+00> : vector<144x8xf32>
    %36 = tpu.matmul %34, %35, %cst_14 {dimension_numbers = #tpu.dot_dimension_numbers<[1], [0], [0], [1], [0, 0, 1, 1], [], []>} : vector<144x8xbf16>, vector<8x8xbf16>, vector<144x8xf32> -> vector<144x8xf32>
    %37 = arith.addf %33, %36 : vector<144x8xf32>
    %38 = vector.extract_strided_slice %3 {offsets = [151, 0], sizes = [144, 8], strides = [1, 1]} : vector<432x8xbf16> to vector<144x8xbf16>
    %39 = vector.extract_strided_slice %4 {offsets = [64, 0], sizes = [8, 8], strides = [1, 1]} : vector<72x8xbf16> to vector<8x8xbf16>
    %cst_15 = arith.constant dense<0.000000e+00> : vector<144x8xf32>
    %40 = tpu.matmul %38, %39, %cst_15 {dimension_numbers = #tpu.dot_dimension_numbers<[1], [0], [0], [1], [0, 0, 1, 1], [], []>} : vector<144x8xbf16>, vector<8x8xbf16>, vector<144x8xf32> -> vector<144x8xf32>
    %41 = arith.addf %37, %40 : vector<144x8xf32>
    %c0_16 = arith.constant 0 : index
    %c0_17 = arith.constant 0 : index
    %42 = vector.load %arg5[%c0_16, %c0_17] : memref<144x1xf32, #tpu.memory_space<vmem>>, vector<144x1xf32>
    %43 = vector.broadcast %42 : vector<144x1xf32> to vector<144x8xf32>
    %44 = arith.mulf %41, %43 : vector<144x8xf32>
    %45 = arith.truncf %44 : vector<144x8xf32> to vector<144x8xbf16>
    %c0_18 = arith.constant 0 : index
    %c0_19 = arith.constant 0 : index
    %46 = vector.load %arg6[%c0_18, %c0_19] : memref<144x8xbf16, #tpu.memory_space<vmem>>, vector<144x8xbf16>
    tpu.vector_store %arg6[%c0_18, %c0_19], %45 {strides = array<i32>} : memref<144x8xbf16, #tpu.memory_space<vmem>>, vector<144x8xbf16>,
    %cst_20 = arith.constant dense<0.000000e+00> : vector<8xf32>
    %47 = vector.multi_reduction <add>, %44, %cst_20 [0] : vector<144x8xf32> to vector<8xf32>
    %48 = vector.shape_cast %47 : vector<8xf32> to vector<1x8xf32>
    %49 = vector.shape_cast %48 : vector<1x8xf32> to vector<1x1x8xf32>
    %c0_21 = arith.constant 0 : index
    %c0_22 = arith.constant 0 : index
    %c0_23 = arith.constant 0 : index
    %50 = vector.load %arg7[%c0_21, %c0_22, %c0_23] : memref<1x1x8xf32, #tpu.memory_space<vmem>>, vector<1x1x8xf32>
    tpu.vector_store %arg7[%c0_21, %c0_22, %c0_23], %49 {strides = array<i32>} : memref<1x1x8xf32, #tpu.memory_space<vmem>>, vector<1x1x8xf32>,
    %51 = arith.mulf %44, %44 : vector<144x8xf32>
    %cst_24 = arith.constant dense<0.000000e+00> : vector<8xf32>
    %52 = vector.multi_reduction <add>, %51, %cst_24 [0] : vector<144x8xf32> to vector<8xf32>
    %53 = vector.shape_cast %52 : vector<8xf32> to vector<1x8xf32>
    %54 = vector.shape_cast %53 : vector<1x8xf32> to vector<1x1x8xf32>
    %c0_25 = arith.constant 0 : index
    %c0_26 = arith.constant 0 : index
    %c0_27 = arith.constant 0 : index
    %55 = vector.load %arg8[%c0_25, %c0_26, %c0_27] : memref<1x1x8xf32, #tpu.memory_space<vmem>>, vector<1x1x8xf32>
    tpu.vector_store %arg8[%c0_25, %c0_26, %c0_27], %54 {strides = array<i32>} : memref<1x1x8xf32, #tpu.memory_space<vmem>>, vector<1x1x8xf32>,
    return
  }
  func.func @transform_0(%arg0: i32) -> (i32, i32) {
    %c0_i32 = arith.constant 0 : i32
    %c0_i32_0 = arith.constant 0 : i32
    return %arg0, %c0_i32 : i32, i32
  }
  func.func @transform_1(%arg0: i32) -> (i32, i32) {
    %c1_i32 = arith.constant 1 : i32
    %0 = arith.addi %arg0, %c1_i32 : i32
    %c0_i32 = arith.constant 0 : i32
    %c0_i32_0 = arith.constant 0 : i32
    return %0, %c0_i32 : i32, i32
  }
  func.func @transform_2(%arg0: i32) -> (i32, i32) {
    %c2_i32 = arith.constant 2 : i32
    %0 = arith.addi %arg0, %c2_i32 : i32
    %c0_i32 = arith.constant 0 : i32
    %c0_i32_0 = arith.constant 0 : i32
    return %0, %c0_i32 : i32, i32
  }
  func.func @transform_3(%arg0: i32) -> (i32, i32) {
    %c0_i32 = arith.constant 0 : i32
    %c0_i32_0 = arith.constant 0 : i32
    %c0_i32_1 = arith.constant 0 : i32
    return %c0_i32, %c0_i32_0 : i32, i32
  }
  func.func @transform_4(%arg0: i32) -> (i32, i32) {
    %c0_i32 = arith.constant 0 : i32
    %c0_i32_0 = arith.constant 0 : i32
    return %arg0, %c0_i32 : i32, i32
  }
  func.func @transform_5(%arg0: i32) -> (i32, i32) {
    %c0_i32 = arith.constant 0 : i32
    %c0_i32_0 = arith.constant 0 : i32
    return %arg0, %c0_i32 : i32, i32
  }
  func.func @transform_6(%arg0: i32) -> (i32, i32, i32) {
    %c0_i32 = arith.constant 0 : i32
    %c0_i32_0 = arith.constant 0 : i32
    %c0_i32_1 = arith.constant 0 : i32
    return %arg0, %c0_i32, %c0_i32_0 : i32, i32, i32
  }
  func.func @transform_7(%arg0: i32) -> (i32, i32, i32) {
    %c0_i32 = arith.constant 0 : i32
    %c0_i32_0 = arith.constant 0 : i32
    %c0_i32_1 = arith.constant 0 : i32
    return %arg0, %c0_i32, %c0_i32_0 : i32, i32, i32
  }
}

module attributes {stable_mosaic.version = 11 : i64} {
  func.func @kernel(%arg0: i32, %arg1: memref<4x36x8xbf16, #tpu.memory_space<vmem>>, %arg2: memref<4x36x8xbf16, #tpu.memory_space<vmem>>, %arg3: memref<1x1x8xf32, #tpu.memory_space<vmem>>, %arg4: memref<1x1x8xf32, #tpu.memory_space<vmem>>, %arg5: memref<1x36x1xf32, #tpu.memory_space<vmem>>, %arg6: memref<4x1x8xf32, #tpu.memory_space<vmem>>) attributes {dimension_semantics = [#tpu.dimension_semantics<parallel>], iteration_bounds = array<i64: 2>, scalar_prefetch = 0 : i64, scratch_operands = 0 : i64, tpu.core_type = #tpu.core_type<tc>, window_params = [{transform_indices = @transform_0, window_bounds = array<i64: 4, 36, 8>}, {transform_indices = @transform_1, window_bounds = array<i64: 4, 36, 8>}, {pipeline_mode = #tpu.pipeline_mode<synchronous>, transform_indices = @transform_2, window_bounds = array<i64: 1, 1, 8>}, {pipeline_mode = #tpu.pipeline_mode<synchronous>, transform_indices = @transform_3, window_bounds = array<i64: 1, 1, 8>}, {pipeline_mode = #tpu.pipeline_mode<synchronous>, transform_indices = @transform_4, window_bounds = array<i64: 1, 36, 1>}, {transform_indices = @transform_5, window_bounds = array<i64: 4, 1, 8>}]} {
    %c0 = arith.constant 0 : index
    %c0_0 = arith.constant 0 : index
    %c0_1 = arith.constant 0 : index
    %0 = vector.load %arg1[%c0, %c0_0, %c0_1] : memref<4x36x8xbf16, #tpu.memory_space<vmem>>, vector<4x36x8xbf16>
    %1 = arith.extf %0 : vector<4x36x8xbf16> to vector<4x36x8xf32>
    %c0_2 = arith.constant 0 : index
    %c0_3 = arith.constant 0 : index
    %c0_4 = arith.constant 0 : index
    %2 = vector.load %arg2[%c0_2, %c0_3, %c0_4] : memref<4x36x8xbf16, #tpu.memory_space<vmem>>, vector<4x36x8xbf16>
    %3 = arith.extf %2 : vector<4x36x8xbf16> to vector<4x36x8xf32>
    %c0_5 = arith.constant 0 : index
    %c0_6 = arith.constant 0 : index
    %c0_7 = arith.constant 0 : index
    %4 = vector.load %arg3[%c0_5, %c0_6, %c0_7] : memref<1x1x8xf32, #tpu.memory_space<vmem>>, vector<1x1x8xf32>
    %5 = vector.broadcast %4 : vector<1x1x8xf32> to vector<4x36x8xf32>
    %6 = arith.mulf %1, %5 : vector<4x36x8xf32>
    %c0_8 = arith.constant 0 : index
    %c0_9 = arith.constant 0 : index
    %c0_10 = arith.constant 0 : index
    %7 = vector.load %arg4[%c0_8, %c0_9, %c0_10] : memref<1x1x8xf32, #tpu.memory_space<vmem>>, vector<1x1x8xf32>
    %8 = vector.broadcast %7 : vector<1x1x8xf32> to vector<4x36x8xf32>
    %9 = arith.addf %6, %8 : vector<4x36x8xf32>
    %10 = arith.addf %9, %3 : vector<4x36x8xf32>
    %cst = arith.constant 0.000000e+00 : f32
    %11 = vector.broadcast %cst : f32 to vector<4x36x8xf32>
    %12 = arith.maximumf %10, %11 : vector<4x36x8xf32>
    %c0_11 = arith.constant 0 : index
    %c0_12 = arith.constant 0 : index
    %c0_13 = arith.constant 0 : index
    %13 = vector.load %arg5[%c0_11, %c0_12, %c0_13] : memref<1x36x1xf32, #tpu.memory_space<vmem>>, vector<1x36x1xf32>
    %14 = vector.broadcast %13 : vector<1x36x1xf32> to vector<4x36x8xf32>
    %15 = arith.mulf %12, %14 : vector<4x36x8xf32>
    %cst_14 = arith.constant dense<0.000000e+00> : vector<4x8xf32>
    %16 = vector.multi_reduction <add>, %15, %cst_14 [1] : vector<4x36x8xf32> to vector<4x8xf32>
    %17 = vector.shape_cast %16 : vector<4x8xf32> to vector<4x1x8xf32>
    %cst_15 = arith.constant 6.250000e-02 : f32
    %18 = vector.broadcast %cst_15 : f32 to vector<4x1x8xf32>
    %19 = arith.mulf %17, %18 : vector<4x1x8xf32>
    %c0_16 = arith.constant 0 : index
    %c0_17 = arith.constant 0 : index
    %c0_18 = arith.constant 0 : index
    %20 = vector.load %arg6[%c0_16, %c0_17, %c0_18] : memref<4x1x8xf32, #tpu.memory_space<vmem>>, vector<4x1x8xf32>
    tpu.vector_store %arg6[%c0_16, %c0_17, %c0_18], %19 {strides = array<i32>} : memref<4x1x8xf32, #tpu.memory_space<vmem>>, vector<4x1x8xf32>,
    return
  }
  func.func @transform_0(%arg0: i32) -> (i32, i32, i32) {
    %c0_i32 = arith.constant 0 : i32
    %c0_i32_0 = arith.constant 0 : i32
    %c0_i32_1 = arith.constant 0 : i32
    return %arg0, %c0_i32, %c0_i32_0 : i32, i32, i32
  }
  func.func @transform_1(%arg0: i32) -> (i32, i32, i32) {
    %c0_i32 = arith.constant 0 : i32
    %c0_i32_0 = arith.constant 0 : i32
    %c0_i32_1 = arith.constant 0 : i32
    return %arg0, %c0_i32, %c0_i32_0 : i32, i32, i32
  }
  func.func @transform_2(%arg0: i32) -> (i32, i32, i32) {
    %c0_i32 = arith.constant 0 : i32
    %c0_i32_0 = arith.constant 0 : i32
    %c0_i32_1 = arith.constant 0 : i32
    %c0_i32_2 = arith.constant 0 : i32
    return %c0_i32, %c0_i32_0, %c0_i32_1 : i32, i32, i32
  }
  func.func @transform_3(%arg0: i32) -> (i32, i32, i32) {
    %c0_i32 = arith.constant 0 : i32
    %c0_i32_0 = arith.constant 0 : i32
    %c0_i32_1 = arith.constant 0 : i32
    %c0_i32_2 = arith.constant 0 : i32
    return %c0_i32, %c0_i32_0, %c0_i32_1 : i32, i32, i32
  }
  func.func @transform_4(%arg0: i32) -> (i32, i32, i32) {
    %c0_i32 = arith.constant 0 : i32
    %c0_i32_0 = arith.constant 0 : i32
    %c0_i32_1 = arith.constant 0 : i32
    %c0_i32_2 = arith.constant 0 : i32
    return %c0_i32, %c0_i32_0, %c0_i32_1 : i32, i32, i32
  }
  func.func @transform_5(%arg0: i32) -> (i32, i32, i32) {
    %c0_i32 = arith.constant 0 : i32
    %c0_i32_0 = arith.constant 0 : i32
    %c0_i32_1 = arith.constant 0 : i32
    return %arg0, %c0_i32, %c0_i32_0 : i32, i32, i32
  }
}

</mosaic_0001>

<llo_original>
// kernel: frontend_forward.6
$region0: #{frontend_forward.6}
  #allocation0 [shape = 'u32[]', space=smem, size = 0x4, offset = 0x4, fixed_abs, tag = 'smem constant byte address 0x4 - core index']
  #allocation1 [shape = 'u32[144,128]{1,0:T(1,128)}', space=vmem, size = 0x12000, scoped, tag = 'internal scratch']
  %s0 = inlined_call_operand.vmem [shape: bf16[512,75], index: 0, kind: input, shape index: {}]
  %s1 = inlined_call_operand.vmem [shape: bf16[75,8], index: 1, kind: input, shape index: {}]
  %s2 = inlined_call_operand.vmem [shape: bf16[512,8], index: 2, kind: output, shape index: {0}]
  %s3 = inlined_call_operand.vmem [shape: f32[2,1,8], index: 3, kind: output, shape index: {1}]
  %s4 = inlined_call_operand.vmem [shape: f32[2,1,8], index: 4, kind: output, shape index: {2}]
  %5 = xla_tuple %s2, %s3, %s4
  %s6 = sld [smem:[#allocation0]]
  $region57: #{frontend_forward.6} parent=0
    _
  %s8 = ssub.s32 1, %s6
  %s9 = scalar_select 0, %s8, %s6
  loop: start=0, step=1, limit=4
  $region2: #{frontend_forward.6} parent=0 // loop_pre_header
    _
  $region3: #{frontend_forward.6} parent=0 // loop_header
    %s11 = sphi 0, %s15
    %p12 = scmp.ge.s32.totalorder %s11, 4
    %s21 = sphi 0, %s23
    %s24 = sphi 0, %s21
    %s25 = sphi 0, %s24
    %s41 = sphi 0, %s25
    %s45 = sphi 0, %s45
    %s47 = sphi 0, %s45
    %s48 = sphi 0, %s47
    %s62 = sphi 0, %s48
    %s68 = sphi 0, %s70
    %s71 = sphi 0, %s68
    %s72 = sphi 0, %s71
    %s88 = sphi 0, %s72
    %s94 = sphi 0, %s96
    %s97 = sphi 0, %s94
    %s98 = sphi 0, %s97
    %s114 = sphi 0, %s98
    %s120 = sphi 0, %s122
    %s123 = sphi 0, %s120
    %s124 = sphi 0, %s123
    %s140 = sphi 0, %s124
  $region4: #{frontend_forward.6} parent=0 // loop_header_branch
    %14 = sbr.rel (%p12) target = $region8
  $region5: #{frontend_forward.6} parent=0 // loop_body
    %s16 = ssub.s32 %s11, 1
    %s17 = ssub.s32 %s11, 2
    %s18 = sadd.s32 %s11, 1
    %s19 = ssub.s32 %s11, %s18
    %p20 = scmp.eq.s32.totalorder %s19, 0
    %s22 = sadd.s32 %s21, 1
    %s23 = scalar_select %p20, %s21, %s22
    %p26 = pneg %p20
    %p27 = scmp.eq.s32.totalorder %s11, 1
    %p28 = por %p26, %p27
    %p29 = scmp.ne.s32.totalorder %s21, %s24
    %p30 = scmp.eq.s32.totalorder %s11, 0
    %p31 = por %p29, %p30
    %p32 = scmp.ne.s32.totalorder %s21, %s24
    %p33 = scmp.eq.s32.totalorder %s16, 1
    %p34 = por %p32, %p33
    %p35 = scmp.ne.s32.totalorder %s24, %s25
    %p36 = scmp.eq.s32.totalorder %s16, 0
    %p37 = por %p35, %p36
    %p38 = scmp.ne.s32.totalorder %s24, %s25
    %p39 = scmp.eq.s32.totalorder %s17, 1
    %p40 = por %p38, %p39
    %p42 = scmp.ne.s32.totalorder %s25, %s41
    %p43 = scmp.eq.s32.totalorder %s17, 0
    %p44 = por %p42, %p43
    %s46 = sadd.s32 %s45, 1
    %p49 = scmp.eq.s32.totalorder %s11, 1
    %p50 = scmp.ne.s32.totalorder %s45, %s47
    %p51 = scmp.eq.s32.totalorder %s11, 0
    %p52 = por %p50, %p51
    %p53 = scmp.ne.s32.totalorder %s45, %s47
    %p54 = scmp.eq.s32.totalorder %s16, 1
    %p55 = por %p53, %p54
    %p56 = scmp.ne.s32.totalorder %s47, %s48
    %p57 = scmp.eq.s32.totalorder %s16, 0
    %p58 = por %p56, %p57
    %p59 = scmp.ne.s32.totalorder %s47, %s48
    %p60 = scmp.eq.s32.totalorder %s17, 1
    %p61 = por %p59, %p60
    %p63 = scmp.ne.s32.totalorder %s48, %s62
    %p64 = scmp.eq.s32.totalorder %s17, 0
    %p65 = por %p63, %p64
    %s66 = ssub.s32 %s11, %s18
    %p67 = scmp.eq.s32.totalorder %s66, 0
    %s69 = sadd.s32 %s68, 1
    %s70 = scalar_select %p67, %s68, %s69
    %p73 = pneg %p67
    %p74 = scmp.eq.s32.totalorder %s11, 1
    %p75 = por %p73, %p74
    %p76 = scmp.ne.s32.totalorder %s68, %s71
    %p77 = scmp.eq.s32.totalorder %s11, 0
    %p78 = por %p76, %p77
    %p79 = scmp.ne.s32.totalorder %s68, %s71
    %p80 = scmp.eq.s32.totalorder %s16, 1
    %p81 = por %p79, %p80
    %p82 = scmp.ne.s32.totalorder %s71, %s72
    %p83 = scmp.eq.s32.totalorder %s16, 0
    %p84 = por %p82, %p83
    %p85 = scmp.ne.s32.totalorder %s71, %s72
    %p86 = scmp.eq.s32.totalorder %s17, 1
    %p87 = por %p85, %p86
    %p89 = scmp.ne.s32.totalorder %s72, %s88
    %p90 = scmp.eq.s32.totalorder %s17, 0
    %p91 = por %p89, %p90
    %s92 = ssub.s32 %s11, %s18
    %p93 = scmp.eq.s32.totalorder %s92, 0
    %s95 = sadd.s32 %s94, 1
    %s96 = scalar_select %p93, %s94, %s95
    %p99 = pneg %p93
    %p100 = scmp.eq.s32.totalorder %s11, 1
    %p101 = por %p99, %p100
    %p102 = scmp.ne.s32.totalorder %s94, %s97
    %p103 = scmp.eq.s32.totalorder %s11, 0
    %p104 = por %p102, %p103
    %p105 = scmp.ne.s32.totalorder %s94, %s97
    %p106 = scmp.eq.s32.totalorder %s16, 1
    %p107 = por %p105, %p106
    %p108 = scmp.ne.s32.totalorder %s97, %s98
    %p109 = scmp.eq.s32.totalorder %s16, 0
    %p110 = por %p108, %p109
    %p111 = scmp.ne.s32.totalorder %s97, %s98
    %p112 = scmp.eq.s32.totalorder %s17, 1
    %p113 = por %p111, %p112
    %p115 = scmp.ne.s32.totalorder %s98, %s114
    %p116 = scmp.eq.s32.totalorder %s17, 0
    %p117 = por %p115, %p116
    %s118 = ssub.s32 %s11, %s18
    %p119 = scmp.eq.s32.totalorder %s118, 0
    %s121 = sadd.s32 %s120, 1
    %s122 = scalar_select %p119, %s120, %s121
    %p125 = pneg %p119
    %p126 = scmp.eq.s32.totalorder %s11, 1
    %p127 = por %p125, %p126
    %p128 = scmp.ne.s32.totalorder %s120, %s123
    %p129 = scmp.eq.s32.totalorder %s11, 0
    %p130 = por %p128, %p129
    %p131 = scmp.ne.s32.totalorder %s120, %s123
    %p132 = scmp.eq.s32.totalorder %s16, 1
    %p133 = por %p131, %p132
    %p134 = scmp.ne.s32.totalorder %s123, %s124
    %p135 = scmp.eq.s32.totalorder %s16, 0
    %p136 = por %p134, %p135
    %p137 = scmp.ne.s32.totalorder %s123, %s124
    %p138 = scmp.eq.s32.totalorder %s17, 1
    %p139 = por %p137, %p138
    %p141 = scmp.ne.s32.totalorder %s124, %s140
    %p142 = scmp.eq.s32.totalorder %s17, 0
    %p143 = por %p141, %p142
    %p144 = scmp.le.s32.totalorder 1, %s11
    %p145 = scmp.lt.s32.totalorder %s11, 3
    %p146 = pnand %p144, %p145
    %p147 = pneg %p146
    // Predicated region
    $region9: #{frontend_forward.6} parent=5 // pred_check
      _
    $region10: #{frontend_forward.6} parent=5 // pred_check_branch
      %149 = sbr.rel (%p146) target = $region12
    $region11: #{frontend_forward.6} parent=5 // pred_region
      %s150 = ssub.s32 %s11, 1
      // Predicated region
      $region13: #{frontend_forward.6} parent=11 // pred_check
        %p151 = pneg %p58
      $region14: #{frontend_forward.6} parent=11 // pred_check_branch
        %153 = sbr.rel (%p151) target = $region16
      $region15: #{frontend_forward.6} parent=11 // pred_region
        _
      $region16: #{frontend_forward.6} parent=11 // pred_fallthru
        _
    $region12: #{frontend_forward.6} parent=5 // pred_fallthru
      _
    %p154 = scmp.lt.s32.totalorder %s11, 2
    // Predicated region
    $region17: #{frontend_forward.6} parent=5 // pred_check
      %p155 = pneg %p154
    $region18: #{frontend_forward.6} parent=5 // pred_check_branch
      %157 = sbr.rel (%p155) target = $region20
    $region19: #{frontend_forward.6} parent=5 // pred_region
      // Predicated region
      $region21: #{frontend_forward.6} parent=19 // pred_check
        %p158 = pneg %p31
      $region22: #{frontend_forward.6} parent=19 // pred_check_branch
        %160 = sbr.rel (%p158) target = $region24
      $region23: #{frontend_forward.6} parent=19 // pred_region
        %s161 = smul.u32 32, %s11
        %p162 = scmp.lt.s32.totalorder %s161, 63
        %s163 = scalar_select %p162, %s161, 63
        %s164 = smul.addr %s163, 4
        %s165 = scalar_lea.vmem %s0, %s164
        %s166 = smul.u32 32, %s11
      $region24: #{frontend_forward.6} parent=19 // pred_fallthru
        _
    $region20: #{frontend_forward.6} parent=5 // pred_fallthru
      _
    %p167 = scmp.le.s32.totalorder 1, %s11
    %p168 = scmp.lt.s32.totalorder %s11, 3
    %p169 = pnand %p167, %p168
    %p170 = pneg %p169
    // Predicated region
    $region25: #{frontend_forward.6} parent=5 // pred_check
      _
    $region26: #{frontend_forward.6} parent=5 // pred_check_branch
      %172 = sbr.rel (%p169) target = $region28
    $region27: #{frontend_forward.6} parent=5 // pred_region
      %s173 = ssub.s32 %s11, 1
      %s174 = smul.u32 32, %s16
      %p175 = scmp.lt.s32.totalorder %s174, 63
      %s176 = scalar_select %p175, %s174, 63
      %s177 = smul.addr %s176, 4
      %s178 = scalar_lea.vmem %s0, %s177
      %p179 = pneg %p37
      %p180 = pneg %p34
      %p181 = pneg %p58
      %p182 = pneg %p55
      %p183 = pneg %p84
      %p184 = pneg %p81
      %s185 = smul.u32 32, %s16
      %p186 = scmp.lt.s32.totalorder %s185, 63
      %s187 = scalar_select %p186, %s185, 63
      %s188 = smul.addr %s187, 4
      %s189 = scalar_lea.vmem %s2, %s188
      %p190 = pneg %p110
      %p191 = pneg %p107
      %p192 = scmp.lt.s32.totalorder %s16, 1
      %s193 = scalar_select %p192, %s16, 1
      %s194 = scalar_lea.vmem %s3, %s193
      %p195 = pneg %p136
      %p196 = pneg %p133
      %p197 = scmp.lt.s32.totalorder %s16, 1
      %s198 = scalar_select %p197, %s16, 1
      %s199 = scalar_lea.vmem %s4, %s198
      %s200 = smul.u32 32, %s16
      %p201 = scmp.lt.s32.totalorder %s200, 63
      %s202 = scalar_select %p201, %s200, 63
      %s203 = smul.addr %s202, 4
      %s204 = scalar_lea.vmem %s0, %s203
      %s205 = smul.u32 32, %s16
      %s206 = smul.u32 32, %s16
      %p207 = scmp.lt.s32.totalorder %s206, 63
      %s208 = scalar_select %p207, %s206, 63
      %s209 = smul.addr %s208, 4
      %s210 = scalar_lea.vmem %s2, %s209
      %s211 = smul.u32 32, %s16
      %p212 = scmp.lt.s32.totalorder %s16, 1
      %s213 = scalar_select %p212, %s16, 1
      %s214 = scalar_lea.vmem %s3, %s213
      %p215 = scmp.lt.s32.totalorder %s16, 1
      %s216 = scalar_select %p215, %s16, 1
      %s217 = scalar_lea.vmem %s4, %s216
      %v219 = vld [vmem:[%s204] sm:$0xf]
      %v220 = vld [vmem:[%s204 + $0x4] sm:$0xf]
      %v221 = vld [vmem:[%s204 + $0x8] sm:$0xf]
      %v222 = vld [vmem:[%s204 + $0xc] sm:$0xf]
      %v223 = vld [vmem:[%s204 + $0x10] sm:$0xf]
      %v224 = vld [vmem:[%s204 + $0x14] sm:$0xf]
      %v225 = vld [vmem:[%s204 + $0x18] sm:$0xf]
      %v226 = vld [vmem:[%s204 + $0x1c] sm:$0xf]
      %v227 = vld [vmem:[%s204 + $0x20] sm:$0xf]
      %v228 = vld [vmem:[%s204 + $0x24] sm:$0xf]
      %v229 = vld [vmem:[%s204 + $0x28] sm:$0xf]
      %v230 = vld [vmem:[%s204 + $0x2c] sm:$0xf]
      %v231 = vld [vmem:[%s204 + $0x30] sm:$0xf]
      %v232 = vld [vmem:[%s204 + $0x34] sm:$0xf]
      %v233 = vld [vmem:[%s204 + $0x38] sm:$0xf]
      %v234 = vld [vmem:[%s204 + $0x3c] sm:$0xf]
      %v235 = vld [vmem:[%s204 + $0x40] sm:$0xf]
      %v236 = vld [vmem:[%s204 + $0x44] sm:$0xf]
      %v237 = vld [vmem:[%s204 + $0x48] sm:$0xf]
      %v238 = vld [vmem:[%s204 + $0x4c] sm:$0xf]
      %v239 = vld [vmem:[%s204 + $0x50] sm:$0xf]
      %v240 = vld [vmem:[%s204 + $0x54] sm:$0xf]
      %v241 = vld [vmem:[%s204 + $0x58] sm:$0xf]
      %v242 = vld [vmem:[%s204 + $0x5c] sm:$0xf]
      %v243 = vld [vmem:[%s204 + $0x60] sm:$0xf]
      %v244 = vld [vmem:[%s204 + $0x64] sm:$0xf]
      %v245 = vld [vmem:[%s204 + $0x68] sm:$0xf]
      %v246 = vld [vmem:[%s204 + $0x6c] sm:$0xf]
      %v247 = vld [vmem:[%s204 + $0x70] sm:$0xf]
      %v248 = vld [vmem:[%s204 + $0x74] sm:$0xf]
      %v249 = vld [vmem:[%s204 + $0x78] sm:$0xf]
      %v250 = vld [vmem:[%s204 + $0x7c] sm:$0xf]
      %v251 = vld [vmem:[%s1] sm:$0xf]
      %v252 = vld [vmem:[%s1 + $0x4] sm:$0xf]
      %v253 = vld [vmem:[%s1 + $0x8] sm:$0xf]
      %v254 = vld [vmem:[%s1 + $0xc] sm:$0xf]
      %v255 = vld [vmem:[%s1 + $0x10] sm:$0xf]
      %v256 = vld [vmem:[%s1 + $0x14] sm:$0xf]
      %v257 = vld [vmem:[%s1 + $0x18] sm:$0xf]
      %v258 = vld [vmem:[%s1 + $0x1c] sm:$0xf]
      %v259 = vld [vmem:[%s1 + $0x20] sm:$0xf]
      %v260 = vld [vmem:[%s1 + $0x24] sm:$0x3]
      %v293 = vunpack.c.l.b16 %v219
      %v294 = vunpack.c.l.b16 %v220
      %v295 = vunpack.c.l.b16 %v221
      %v296 = vunpack.c.l.b16 %v222
      %v297 = vunpack.c.l.b16 %v223
      %v298 = vunpack.c.l.b16 %v224
      %v299 = vunpack.c.l.b16 %v225
      %v300 = vunpack.c.l.b16 %v226
      %v301 = vunpack.c.l.b16 %v227
      %v302 = vunpack.c.l.b16 %v228
      %v303 = vunpack.c.l.b16 %v229
      %v304 = vunpack.c.l.b16 %v230
      %v305 = vunpack.c.l.b16 %v231
      %v306 = vunpack.c.l.b16 %v232
      %v307 = vunpack.c.l.b16 %v233
      %v308 = vunpack.c.l.b16 %v234
      %v309 = vunpack.c.l.b16 %v235
      %v310 = vunpack.c.l.b16 %v236
      %v311 = vunpack.c.l.b16 %v237
      %v312 = vunpack.c.l.b16 %v238
      %v313 = vunpack.c.l.b16 %v239
      %v314 = vunpack.c.l.b16 %v240
      %v315 = vunpack.c.l.b16 %v241
      %v316 = vunpack.c.l.b16 %v242
      %v317 = vunpack.c.l.b16 %v243
      %v318 = vunpack.c.l.b16 %v244
      %v319 = vunpack.c.l.b16 %v245
      %v320 = vunpack.c.l.b16 %v246
      %v321 = vunpack.c.l.b16 %v247
      %v322 = vunpack.c.l.b16 %v248
      %v323 = vunpack.c.l.b16 %v249
      %v324 = vunpack.c.l.b16 %v250
      %v325 = vpack.c.b16 %v294, %v293
      %v326 = vpack.c.b16 %v296, %v295
      %v327 = vpack.c.b16 %v298, %v297
      %v328 = vpack.c.b16 %v300, %v299
      %v329 = vpack.c.b16 %v302, %v301
      %v330 = vpack.c.b16 %v304, %v303
      %v331 = vpack.c.b16 %v306, %v305
      %v332 = vpack.c.b16 %v308, %v307
      %v333 = vpack.c.b16 %v310, %v309
      %v334 = vpack.c.b16 %v312, %v311
      %v335 = vpack.c.b16 %v314, %v313
      %v336 = vpack.c.b16 %v316, %v315
      %v337 = vpack.c.b16 %v318, %v317
      %v338 = vpack.c.b16 %v320, %v319
      %v339 = vpack.c.b16 %v322, %v321
      %v340 = vpack.c.b16 %v324, %v323
      %v351 = vunpack.c.l.b16 %v251
      %v352 = vunpack.c.l.b16 %v252
      %v353 = vunpack.c.l.b16 %v253
      %v354 = vunpack.c.l.b16 %v254
      %v355 = vunpack.c.l.b16 %v255
      %v356 = vunpack.c.l.b16 %v256
      %v357 = vunpack.c.l.b16 %v257
      %v358 = vunpack.c.l.b16 %v258
      %v359 = vunpack.c.l.b16 %v259
      %v360 = vunpack.c.l.b16 %v260
      %v361 = vpack.c.b16 %v352, %v351
      %v362 = vpack.c.b16 %v354, %v353
      %v363 = vpack.c.b16 %v356, %v355
      %v364 = vpack.c.b16 %v358, %v357
      %v365 = vpack.c.b16 %v360, %v359
      %vm370 = vcmask 613376
      %v372 = vsel %vm370, %v325, 0
      %v375 = vsel %vm370, %v326, 0
      %v378 = vsel %vm370, %v327, 0
      %v381 = vsel %vm370, %v328, 0
      %v384 = vsel %vm370, %v329, 0
      %v387 = vsel %vm370, %v330, 0
      %v390 = vsel %vm370, %v331, 0
      %v393 = vsel %vm370, %v332, 0
      %v396 = vsel %vm370, %v333, 0
      %v399 = vsel %vm370, %v334, 0
      %v402 = vsel %vm370, %v335, 0
      %v405 = vsel %vm370, %v336, 0
      %v408 = vsel %vm370, %v337, 0
      %v411 = vsel %vm370, %v338, 0
      %v414 = vsel %vm370, %v339, 0
      %v417 = vsel %vm370, %v340, 0
      %vm419 = vcmask 1044480
      %vm420 = vcmask 1045504
      %v421 = vsel %vm419, 4294967295, 65535
      %v422 = vsel %vm420, %v421, 0
      %v424 = vand.u32 %v365, %v422
      %426 = vmatprep.subr.bf16.mxu0 0
      %427 = vmatpush1.bf16.msra.mxu0 %v361
      %428 = vmatprep.subr.bf16.mxu0 0
      %429 = vmatpush1.bf16.msra.mxu0 %v362
      %430 = vmatprep.subr.bf16.mxu0 0
      %431 = vmatpush1.bf16.msra.mxu0 %v363
      %432 = vmatprep.subr.bf16.mxu0 0
      %433 = vmatpush1.bf16.msra.mxu0 %v364
      %434 = vmatprep.subr.bf16.mxu0 0
      %435 = vmatpush1.bf16.msra.mxu0 %v424
      %436 = vmatprep.subr.bf16.mxu0 0
      %437 = vmatpush1.bf16.msra.mxu0 0
      %438 = vmatprep.subr.bf16.mxu0 0
      %439 = vmatpush1.bf16.msra.mxu0 0
      %440 = vmatprep.subr.bf16.mxu0 0
      %441 = vmatpush1.bf16.msra.mxu0 0
      %442 = vmatprep.subr.bf16.mxu0 0
      %443 = vmatpush1.bf16.msra.mxu0 0
      %444 = vmatprep.subr.bf16.mxu0 0
      %445 = vmatpush1.bf16.msra.mxu0 0
      %446 = vmatprep.subr.bf16.mxu0 0
      %447 = vmatpush1.bf16.msra.mxu0 0
      %448 = vmatprep.subr.bf16.mxu0 0
      %449 = vmatpush1.bf16.msra.mxu0 0
      %450 = vmatprep.subr.bf16.mxu0 0
      %451 = vmatpush1.bf16.msra.mxu0 0
      %452 = vmatprep.subr.bf16.mxu0 0
      %453 = vmatpush1.bf16.msra.mxu0 0
      %454 = vmatprep.subr.bf16.mxu0 0
      %455 = vmatpush1.bf16.msra.mxu0 0
      %456 = vmatprep.subr.bf16.mxu0 0
      %457 = vmatpush1.bf16.msra.mxu0 0
      %458 = vmatprep.mubr.bf16.mxu0 0
      %459 = vmatmul.mubr.bf16.gmra.mrb[0].mxu0 %v372
      %v460 = vpop.f32.mrb[0].mxu0
      %v461 = vadd.f32 0.0, %v460
      %v462 = vpop.f32.mrb[0].mxu0
      %v463 = vpop.f32.mrb[0].mxu0
      %v464 = vadd.f32 0.0, %v463
      %v465 = vpop.f32.mrb[0].mxu0
      %466 = vmatprep.mubr.bf16.mxu0 0
      %467 = vmatmul.mubr.bf16.gmra.mrb[0].mxu0 %v375
      %v468 = vpop.f32.mrb[0].mxu0
      %v469 = vadd.f32 0.0, %v468
      %v470 = vpop.f32.mrb[0].mxu0
      %v471 = vpop.f32.mrb[0].mxu0
      %v472 = vadd.f32 0.0, %v471
      %v473 = vpop.f32.mrb[0].mxu0
      %474 = vmatprep.mubr.bf16.mxu0 0
      %475 = vmatmul.mubr.bf16.gmra.mrb[0].mxu0 %v378
      %v476 = vpop.f32.mrb[0].mxu0
      %v477 = vadd.f32 0.0, %v476
      %v478 = vpop.f32.mrb[0].mxu0
      %v479 = vpop.f32.mrb[0].mxu0
      %v480 = vadd.f32 0.0, %v479
      %v481 = vpop.f32.mrb[0].mxu0
      %482 = vmatprep.mubr.bf16.mxu0 0
      %483 = vmatmul.mubr.bf16.gmra.mrb[0].mxu0 %v381
      %v484 = vpop.f32.mrb[0].mxu0
      %v485 = vadd.f32 0.0, %v484
      %v486 = vpop.f32.mrb[0].mxu0
      %v487 = vpop.f32.mrb[0].mxu0
      %v488 = vadd.f32 0.0, %v487
      %v489 = vpop.f32.mrb[0].mxu0
      %490 = vmatprep.mubr.bf16.mxu0 0
      %491 = vmatmul.mubr.bf16.gmra.mrb[0].mxu0 %v384
      %v492 = vpop.f32.mrb[0].mxu0
      %v493 = vadd.f32 0.0, %v492
      %v494 = vpop.f32.mrb[0].mxu0
      %v495 = vpop.f32.mrb[0].mxu0
      %v496 = vadd.f32 0.0, %v495
      %v497 = vpop.f32.mrb[0].mxu0
      %498 = vmatprep.mubr.bf16.mxu0 0
      %499 = vmatmul.mubr.bf16.gmra.mrb[0].mxu0 %v387
      %v500 = vpop.f32.mrb[0].mxu0
      %v501 = vadd.f32 0.0, %v500
      %v502 = vpop.f32.mrb[0].mxu0
      %v503 = vpop.f32.mrb[0].mxu0
      %v504 = vadd.f32 0.0, %v503
      %v505 = vpop.f32.mrb[0].mxu0
      %506 = vmatprep.mubr.bf16.mxu0 0
      %507 = vmatmul.mubr.bf16.gmra.mrb[0].mxu0 %v390
      %v508 = vpop.f32.mrb[0].mxu0
      %v509 = vadd.f32 0.0, %v508
      %v510 = vpop.f32.mrb[0].mxu0
      %v511 = vpop.f32.mrb[0].mxu0
      %v512 = vadd.f32 0.0, %v511
      %v513 = vpop.f32.mrb[0].mxu0
      %514 = vmatprep.mubr.bf16.mxu0 0
      %515 = vmatmul.mubr.bf16.gmra.mrb[0].mxu0 %v393
      %v516 = vpop.f32.mrb[0].mxu0
      %v517 = vadd.f32 0.0, %v516
      %v518 = vpop.f32.mrb[0].mxu0
      %v519 = vpop.f32.mrb[0].mxu0
      %v520 = vadd.f32 0.0, %v519
      %v521 = vpop.f32.mrb[0].mxu0
      %522 = vmatprep.mubr.bf16.mxu0 0
      %523 = vmatmul.mubr.bf16.gmra.mrb[0].mxu0 %v396
      %v524 = vpop.f32.mrb[0].mxu0
      %v525 = vadd.f32 0.0, %v524
      %v526 = vpop.f32.mrb[0].mxu0
      %v527 = vpop.f32.mrb[0].mxu0
      %v528 = vadd.f32 0.0, %v527
      %v529 = vpop.f32.mrb[0].mxu0
      %530 = vmatprep.mubr.bf16.mxu0 0
      %531 = vmatmul.mubr.bf16.gmra.mrb[0].mxu0 %v399
      %v532 = vpop.f32.mrb[0].mxu0
      %v533 = vadd.f32 0.0, %v532
      %v534 = vpop.f32.mrb[0].mxu0
      %v535 = vpop.f32.mrb[0].mxu0
      %v536 = vadd.f32 0.0, %v535
      %v537 = vpop.f32.mrb[0].mxu0
      %538 = vmatprep.mubr.bf16.mxu0 0
      %539 = vmatmul.mubr.bf16.gmra.mrb[0].mxu0 %v402
      %v540 = vpop.f32.mrb[0].mxu0
      %v541 = vadd.f32 0.0, %v540
      %v542 = vpop.f32.mrb[0].mxu0
      %v543 = vpop.f32.mrb[0].mxu0
      %v544 = vadd.f32 0.0, %v543
      %v545 = vpop.f32.mrb[0].mxu0
      %546 = vmatprep.mubr.bf16.mxu0 0
      %547 = vmatmul.mubr.bf16.gmra.mrb[0].mxu0 %v405
      %v548 = vpop.f32.mrb[0].mxu0
      %v549 = vadd.f32 0.0, %v548
      %v550 = vpop.f32.mrb[0].mxu0
      %v551 = vpop.f32.mrb[0].mxu0
      %v552 = vadd.f32 0.0, %v551
      %v553 = vpop.f32.mrb[0].mxu0
      %554 = vmatprep.mubr.bf16.mxu0 0
      %555 = vmatmul.mubr.bf16.gmra.mrb[0].mxu0 %v408
      %v556 = vpop.f32.mrb[0].mxu0
      %v557 = vadd.f32 0.0, %v556
      %v558 = vpop.f32.mrb[0].mxu0
      %v559 = vpop.f32.mrb[0].mxu0
      %v560 = vadd.f32 0.0, %v559
      %v561 = vpop.f32.mrb[0].mxu0
      %562 = vmatprep.mubr.bf16.mxu0 0
      %563 = vmatmul.mubr.bf16.gmra.mrb[0].mxu0 %v411
      %v564 = vpop.f32.mrb[0].mxu0
      %v565 = vadd.f32 0.0, %v564
      %v566 = vpop.f32.mrb[0].mxu0
      %v567 = vpop.f32.mrb[0].mxu0
      %v568 = vadd.f32 0.0, %v567
      %v569 = vpop.f32.mrb[0].mxu0
      %570 = vmatprep.mubr.bf16.mxu0 0
      %571 = vmatmul.mubr.bf16.gmra.mrb[0].mxu0 %v414
      %v572 = vpop.f32.mrb[0].mxu0
      %v573 = vadd.f32 0.0, %v572
      %v574 = vpop.f32.mrb[0].mxu0
      %v575 = vpop.f32.mrb[0].mxu0
      %v576 = vadd.f32 0.0, %v575
      %v577 = vpop.f32.mrb[0].mxu0
      %578 = vmatprep.mubr.bf16.mxu0 0
      %579 = vmatmul.mubr.bf16.gmra.mrb[0].mxu0 %v417
      %v580 = vpop.f32.mrb[0].mxu0
      %v581 = vadd.f32 0.0, %v580
      %v582 = vpop.f32.mrb[0].mxu0
      %v583 = vpop.f32.mrb[0].mxu0
      %v584 = vadd.f32 0.0, %v583
      %v585 = vpop.f32.mrb[0].mxu0
      %586 = vdwg.mxu0
      %v587 = vpack.c.bf16 %v464, %v461
      %v588 = vpack.c.bf16 %v472, %v469
      %v589 = vpack.c.bf16 %v480, %v477
      %v590 = vpack.c.bf16 %v488, %v485
      %v591 = vpack.c.bf16 %v496, %v493
      %v592 = vpack.c.bf16 %v504, %v501
      %v593 = vpack.c.bf16 %v512, %v509
      %v594 = vpack.c.bf16 %v520, %v517
      %v595 = vpack.c.bf16 %v528, %v525
      %v596 = vpack.c.bf16 %v536, %v533
      %v597 = vpack.c.bf16 %v544, %v541
      %v598 = vpack.c.bf16 %v552, %v549
      %v599 = vpack.c.bf16 %v560, %v557
      %v600 = vpack.c.bf16 %v568, %v565
      %v601 = vpack.c.bf16 %v576, %v573
      %v602 = vpack.c.bf16 %v584, %v581
      %v619 = vunpack.c.l.b16 %v587
      %v620 = vunpack.c.h.b16 %v587
      %v621 = vunpack.c.l.b16 %v588
      %v622 = vunpack.c.h.b16 %v588
      %v623 = vunpack.c.l.b16 %v589
      %v624 = vunpack.c.h.b16 %v589
      %v625 = vunpack.c.l.b16 %v590
      %v626 = vunpack.c.h.b16 %v590
      %v627 = vunpack.c.l.b16 %v591
      %v628 = vunpack.c.h.b16 %v591
      %v629 = vunpack.c.l.b16 %v592
      %v630 = vunpack.c.h.b16 %v592
      %v631 = vunpack.c.l.b16 %v593
      %v632 = vunpack.c.h.b16 %v593
      %v633 = vunpack.c.l.b16 %v594
      %v634 = vunpack.c.h.b16 %v594
      %v635 = vunpack.c.l.b16 %v595
      %v636 = vunpack.c.h.b16 %v595
      %v637 = vunpack.c.l.b16 %v596
      %v638 = vunpack.c.h.b16 %v596
      %v639 = vunpack.c.l.b16 %v597
      %v640 = vunpack.c.h.b16 %v597
      %v641 = vunpack.c.l.b16 %v598
      %v642 = vunpack.c.h.b16 %v598
      %v643 = vunpack.c.l.b16 %v599
      %v644 = vunpack.c.h.b16 %v599
      %v645 = vunpack.c.l.b16 %v600
      %v646 = vunpack.c.h.b16 %v600
      %v647 = vunpack.c.l.b16 %v601
      %v648 = vunpack.c.h.b16 %v601
      %v649 = vunpack.c.l.b16 %v602
      %v650 = vunpack.c.h.b16 %v602
      %v651 = vpack.c.b16 %v619, %v619
      %v652 = vpack.c.b16 %v620, %v620
      %v653 = vpack.c.b16 %v621, %v621
      %v654 = vpack.c.b16 %v622, %v622
      %v655 = vpack.c.b16 %v623, %v623
      %v656 = vpack.c.b16 %v624, %v624
      %v657 = vpack.c.b16 %v625, %v625
      %v658 = vpack.c.b16 %v626, %v626
      %v659 = vpack.c.b16 %v627, %v627
      %v660 = vpack.c.b16 %v628, %v628
      %v661 = vpack.c.b16 %v629, %v629
      %v662 = vpack.c.b16 %v630, %v630
      %v663 = vpack.c.b16 %v631, %v631
      %v664 = vpack.c.b16 %v632, %v632
      %v665 = vpack.c.b16 %v633, %v633
      %v666 = vpack.c.b16 %v634, %v634
      %v667 = vpack.c.b16 %v635, %v635
      %v668 = vpack.c.b16 %v636, %v636
      %v669 = vpack.c.b16 %v637, %v637
      %v670 = vpack.c.b16 %v638, %v638
      %v671 = vpack.c.b16 %v639, %v639
      %v672 = vpack.c.b16 %v640, %v640
      %v673 = vpack.c.b16 %v641, %v641
      %v674 = vpack.c.b16 %v642, %v642
      %v675 = vpack.c.b16 %v643, %v643
      %v676 = vpack.c.b16 %v644, %v644
      %v677 = vpack.c.b16 %v645, %v645
      %v678 = vpack.c.b16 %v646, %v646
      %v679 = vpack.c.b16 %v647, %v647
      %v680 = vpack.c.b16 %v648, %v648
      %v681 = vpack.c.b16 %v649, %v649
      %v682 = vpack.c.b16 %v650, %v650
      %vm715 = vcmask 60416
      %716 = vst.msk [vmem:[%s210] sm:$0xf] %vm715, %v651
      %717 = vst.msk [vmem:[%s210 + $0x4] sm:$0xf] %vm715, %v652
      %718 = vst.msk [vmem:[%s210 + $0x8] sm:$0xf] %vm715, %v653
      %719 = vst.msk [vmem:[%s210 + $0xc] sm:$0xf] %vm715, %v654
      %720 = vst.msk [vmem:[%s210 + $0x10] sm:$0xf] %vm715, %v655
      %721 = vst.msk [vmem:[%s210 + $0x14] sm:$0xf] %vm715, %v656
      %722 = vst.msk [vmem:[%s210 + $0x18] sm:$0xf] %vm715, %v657
      %723 = vst.msk [vmem:[%s210 + $0x1c] sm:$0xf] %vm715, %v658
      %724 = vst.msk [vmem:[%s210 + $0x20] sm:$0xf] %vm715, %v659
      %725 = vst.msk [vmem:[%s210 + $0x24] sm:$0xf] %vm715, %v660
      %726 = vst.msk [vmem:[%s210 + $0x28] sm:$0xf] %vm715, %v661
      %727 = vst.msk [vmem:[%s210 + $0x2c] sm:$0xf] %vm715, %v662
      %728 = vst.msk [vmem:[%s210 + $0x30] sm:$0xf] %vm715, %v663
      %729 = vst.msk [vmem:[%s210 + $0x34] sm:$0xf] %vm715, %v664
      %730 = vst.msk [vmem:[%s210 + $0x38] sm:$0xf] %vm715, %v665
      %731 = vst.msk [vmem:[%s210 + $0x3c] sm:$0xf] %vm715, %v666
      %732 = vst.msk [vmem:[%s210 + $0x40] sm:$0xf] %vm715, %v667
      %733 = vst.msk [vmem:[%s210 + $0x44] sm:$0xf] %vm715, %v668
      %734 = vst.msk [vmem:[%s210 + $0x48] sm:$0xf] %vm715, %v669
      %735 = vst.msk [vmem:[%s210 + $0x4c] sm:$0xf] %vm715, %v670
      %736 = vst.msk [vmem:[%s210 + $0x50] sm:$0xf] %vm715, %v671
      %737 = vst.msk [vmem:[%s210 + $0x54] sm:$0xf] %vm715, %v672
      %738 = vst.msk [vmem:[%s210 + $0x58] sm:$0xf] %vm715, %v673
      %739 = vst.msk [vmem:[%s210 + $0x5c] sm:$0xf] %vm715, %v674
      %740 = vst.msk [vmem:[%s210 + $0x60] sm:$0xf] %vm715, %v675
      %741 = vst.msk [vmem:[%s210 + $0x64] sm:$0xf] %vm715, %v676
      %742 = vst.msk [vmem:[%s210 + $0x68] sm:$0xf] %vm715, %v677
      %743 = vst.msk [vmem:[%s210 + $0x6c] sm:$0xf] %vm715, %v678
      %744 = vst.msk [vmem:[%s210 + $0x70] sm:$0xf] %vm715, %v679
      %745 = vst.msk [vmem:[%s210 + $0x74] sm:$0xf] %vm715, %v680
      %746 = vst.msk [vmem:[%s210 + $0x78] sm:$0xf] %vm715, %v681
      %747 = vst.msk [vmem:[%s210 + $0x7c] sm:$0xf] %vm715, %v682
      %vm748 = vcmask 64512
      %v749 = vsel %vm748, %v461, 0.0
      %v750 = vsel %vm748, %v464, 0.0
      %v751 = vadd.f32 %v749, %v750
      %v752 = vsel %vm748, %v469, 0.0
      %v753 = vadd.f32 %v751, %v752
      %v754 = vsel %vm748, %v472, 0.0
      %v755 = vadd.f32 %v753, %v754
      %v756 = vsel %vm748, %v477, 0.0
      %v757 = vadd.f32 %v755, %v756
      %v758 = vsel %vm748, %v480, 0.0
      %v759 = vadd.f32 %v757, %v758
      %v760 = vsel %vm748, %v485, 0.0
      %v761 = vadd.f32 %v759, %v760
      %v762 = vsel %vm748, %v488, 0.0
      %v763 = vadd.f32 %v761, %v762
      %v764 = vsel %vm748, %v493, 0.0
      %v765 = vadd.f32 %v763, %v764
      %v766 = vsel %vm748, %v496, 0.0
      %v767 = vadd.f32 %v765, %v766
      %v768 = vsel %vm748, %v501, 0.0
      %v769 = vadd.f32 %v767, %v768
      %v770 = vsel %vm748, %v504, 0.0
      %v771 = vadd.f32 %v769, %v770
      %v772 = vsel %vm748, %v509, 0.0
      %v773 = vadd.f32 %v771, %v772
      %v774 = vsel %vm748, %v512, 0.0
      %v775 = vadd.f32 %v773, %v774
      %v776 = vsel %vm748, %v517, 0.0
      %v777 = vadd.f32 %v775, %v776
      %v778 = vsel %vm748, %v520, 0.0
      %v779 = vadd.f32 %v777, %v778
      %v780 = vsel %vm748, %v525, 0.0
      %v781 = vadd.f32 %v779, %v780
      %v782 = vsel %vm748, %v528, 0.0
      %v783 = vadd.f32 %v781, %v782
      %v784 = vsel %vm748, %v533, 0.0
      %v785 = vadd.f32 %v783, %v784
      %v786 = vsel %vm748, %v536, 0.0
      %v787 = vadd.f32 %v785, %v786
      %v788 = vsel %vm748, %v541, 0.0
      %v789 = vadd.f32 %v787, %v788
      %v790 = vsel %vm748, %v544, 0.0
      %v791 = vadd.f32 %v789, %v790
      %v792 = vsel %vm748, %v549, 0.0
      %v793 = vadd.f32 %v791, %v792
      %v794 = vsel %vm748, %v552, 0.0
      %v795 = vadd.f32 %v793, %v794
      %v796 = vsel %vm748, %v557, 0.0
      %v797 = vadd.f32 %v795, %v796
      %v798 = vsel %vm748, %v560, 0.0
      %v799 = vadd.f32 %v797, %v798
      %v800 = vsel %vm748, %v565, 0.0
      %v801 = vadd.f32 %v799, %v800
      %v802 = vsel %vm748, %v568, 0.0
      %v803 = vadd.f32 %v801, %v802
      %v804 = vsel %vm748, %v573, 0.0
      %v805 = vadd.f32 %v803, %v804
      %v806 = vsel %vm748, %v576, 0.0
      %v807 = vadd.f32 %v805, %v806
      %v808 = vsel %vm748, %v581, 0.0
      %v809 = vadd.f32 %v807, %v808
      %v810 = vsel %vm748, %v584, 0.0
      %v811 = vadd.f32 %v809, %v810
      %v812 = vrot.slane %v811, 4
      %v813 = vadd.f32 %v811, %v812
      %v814 = vrot.slane %v813, 2
      %v815 = vadd.f32 %v813, %v814
      %v816 = vrot.slane %v815, 1
      %v817 = vadd.f32 %v815, %v816
      %vm818 = vcmask 57344
      %819 = vst.msk [vmem:[%s214] sm:$0x1] %vm818, %v817
      %v820 = vmul.f32 %v461, %v461
      %v821 = vmul.f32 %v464, %v464
      %v822 = vmul.f32 %v469, %v469
      %v823 = vmul.f32 %v472, %v472
      %v824 = vmul.f32 %v477, %v477
      %v825 = vmul.f32 %v480, %v480
      %v826 = vmul.f32 %v485, %v485
      %v827 = vmul.f32 %v488, %v488
      %v828 = vmul.f32 %v493, %v493
      %v829 = vmul.f32 %v496, %v496
      %v830 = vmul.f32 %v501, %v501
      %v831 = vmul.f32 %v504, %v504
      %v832 = vmul.f32 %v509, %v509
      %v833 = vmul.f32 %v512, %v512
      %v834 = vmul.f32 %v517, %v517
      %v835 = vmul.f32 %v520, %v520
      %v836 = vmul.f32 %v525, %v525
      %v837 = vmul.f32 %v528, %v528
      %v838 = vmul.f32 %v533, %v533
      %v839 = vmul.f32 %v536, %v536
      %v840 = vmul.f32 %v541, %v541
      %v841 = vmul.f32 %v544, %v544
      %v842 = vmul.f32 %v549, %v549
      %v843 = vmul.f32 %v552, %v552
      %v844 = vmul.f32 %v557, %v557
      %v845 = vmul.f32 %v560, %v560
      %v846 = vmul.f32 %v565, %v565
      %v847 = vmul.f32 %v568, %v568
      %v848 = vmul.f32 %v573, %v573
      %v849 = vmul.f32 %v576, %v576
      %v850 = vmul.f32 %v581, %v581
      %v851 = vmul.f32 %v584, %v584
      %v852 = vsel %vm748, %v820, 0.0
      %v853 = vsel %vm748, %v821, 0.0
      %v854 = vadd.f32 %v852, %v853
      %v855 = vsel %vm748, %v822, 0.0
      %v856 = vadd.f32 %v854, %v855
      %v857 = vsel %vm748, %v823, 0.0
      %v858 = vadd.f32 %v856, %v857
      %v859 = vsel %vm748, %v824, 0.0
      %v860 = vadd.f32 %v858, %v859
      %v861 = vsel %vm748, %v825, 0.0
      %v862 = vadd.f32 %v860, %v861
      %v863 = vsel %vm748, %v826, 0.0
      %v864 = vadd.f32 %v862, %v863
      %v865 = vsel %vm748, %v827, 0.0
      %v866 = vadd.f32 %v864, %v865
      %v867 = vsel %vm748, %v828, 0.0
      %v868 = vadd.f32 %v866, %v867
      %v869 = vsel %vm748, %v829, 0.0
      %v870 = vadd.f32 %v868, %v869
      %v871 = vsel %vm748, %v830, 0.0
      %v872 = vadd.f32 %v870, %v871
      %v873 = vsel %vm748, %v831, 0.0
      %v874 = vadd.f32 %v872, %v873
      %v875 = vsel %vm748, %v832, 0.0
      %v876 = vadd.f32 %v874, %v875
      %v877 = vsel %vm748, %v833, 0.0
      %v878 = vadd.f32 %v876, %v877
      %v879 = vsel %vm748, %v834, 0.0
      %v880 = vadd.f32 %v878, %v879
      %v881 = vsel %vm748, %v835, 0.0
      %v882 = vadd.f32 %v880, %v881
      %v883 = vsel %vm748, %v836, 0.0
      %v884 = vadd.f32 %v882, %v883
      %v885 = vsel %vm748, %v837, 0.0
      %v886 = vadd.f32 %v884, %v885
      %v887 = vsel %vm748, %v838, 0.0
      %v888 = vadd.f32 %v886, %v887
      %v889 = vsel %vm748, %v839, 0.0
      %v890 = vadd.f32 %v888, %v889
      %v891 = vsel %vm748, %v840, 0.0
      %v892 = vadd.f32 %v890, %v891
      %v893 = vsel %vm748, %v841, 0.0
      %v894 = vadd.f32 %v892, %v893
      %v895 = vsel %vm748, %v842, 0.0
      %v896 = vadd.f32 %v894, %v895
      %v897 = vsel %vm748, %v843, 0.0
      %v898 = vadd.f32 %v896, %v897
      %v899 = vsel %vm748, %v844, 0.0
      %v900 = vadd.f32 %v898, %v899
      %v901 = vsel %vm748, %v845, 0.0
      %v902 = vadd.f32 %v900, %v901
      %v903 = vsel %vm748, %v846, 0.0
      %v904 = vadd.f32 %v902, %v903
      %v905 = vsel %vm748, %v847, 0.0
      %v906 = vadd.f32 %v904, %v905
      %v907 = vsel %vm748, %v848, 0.0
      %v908 = vadd.f32 %v906, %v907
      %v909 = vsel %vm748, %v849, 0.0
      %v910 = vadd.f32 %v908, %v909
      %v911 = vsel %vm748, %v850, 0.0
      %v912 = vadd.f32 %v910, %v911
      %v913 = vsel %vm748, %v851, 0.0
      %v914 = vadd.f32 %v912, %v913
      %v915 = vrot.slane %v914, 4
      %v916 = vadd.f32 %v914, %v915
      %v917 = vrot.slane %v916, 2
      %v918 = vadd.f32 %v916, %v917
      %v919 = vrot.slane %v918, 1
      %v920 = vadd.f32 %v918, %v919
      %921 = vst.msk [vmem:[%s217] sm:$0x1] %vm818, %v920
      %s922 = smul.u32 32, %s16
      %p923 = scmp.lt.s32.totalorder %s922, 63
      %s924 = scalar_select %p923, %s922, 63
      %s925 = smul.addr %s924, 4
      %s926 = scalar_lea.vmem %s2, %s925
      %p927 = scmp.lt.s32.totalorder %s16, 1
      %s928 = scalar_select %p927, %s16, 1
      %s929 = scalar_lea.vmem %s3, %s928
      %p930 = scmp.lt.s32.totalorder %s16, 1
      %s931 = scalar_select %p930, %s16, 1
      %s932 = scalar_lea.vmem %s4, %s931
      // Predicated region
      $region29: #{frontend_forward.6} parent=27 // pred_check
        %p933 = pneg %p81
      $region30: #{frontend_forward.6} parent=27 // pred_check_branch
        %935 = sbr.rel (%p933) target = $region32
      $region31: #{frontend_forward.6} parent=27 // pred_region
        %s936 = smul.u32 32, %s16
      $region32: #{frontend_forward.6} parent=27 // pred_fallthru
        _
      // Predicated region
      $region33: #{frontend_forward.6} parent=27 // pred_check
        %p937 = pneg %p107
      $region34: #{frontend_forward.6} parent=27 // pred_check_branch
        %939 = sbr.rel (%p937) target = $region36
      $region35: #{frontend_forward.6} parent=27 // pred_region
        _
      $region36: #{frontend_forward.6} parent=27 // pred_fallthru
        _
      // Predicated region
      $region37: #{frontend_forward.6} parent=27 // pred_check
        %p940 = pneg %p133
      $region38: #{frontend_forward.6} parent=27 // pred_check_branch
        %942 = sbr.rel (%p940) target = $region40
      $region39: #{frontend_forward.6} parent=27 // pred_region
        _
      $region40: #{frontend_forward.6} parent=27 // pred_fallthru
        _
    $region28: #{frontend_forward.6} parent=5 // pred_fallthru
      _
    %p943 = scmp.le.s32.totalorder 2, %s11
    // Predicated region
    $region41: #{frontend_forward.6} parent=5 // pred_check
      %p944 = pneg %p943
    $region42: #{frontend_forward.6} parent=5 // pred_check_branch
      %946 = sbr.rel (%p944) target = $region44
    $region43: #{frontend_forward.6} parent=5 // pred_region
      %s947 = ssub.s32 %s11, 2
      // Predicated region
      $region45: #{frontend_forward.6} parent=43 // pred_check
        %p948 = pneg %p87
      $region46: #{frontend_forward.6} parent=43 // pred_check_branch
        %950 = sbr.rel (%p948) target = $region48
      $region47: #{frontend_forward.6} parent=43 // pred_region
        %s951 = smul.u32 32, %s17
        %p952 = scmp.lt.s32.totalorder %s951, 63
        %s953 = scalar_select %p952, %s951, 63
        %s954 = smul.addr %s953, 4
        %s955 = scalar_lea.vmem %s2, %s954
      $region48: #{frontend_forward.6} parent=43 // pred_fallthru
        _
      // Predicated region
      $region49: #{frontend_forward.6} parent=43 // pred_check
        %p956 = pneg %p113
      $region50: #{frontend_forward.6} parent=43 // pred_check_branch
        %958 = sbr.rel (%p956) target = $region52
      $region51: #{frontend_forward.6} parent=43 // pred_region
        %p959 = scmp.lt.s32.totalorder %s17, 1
        %s960 = scalar_select %p959, %s17, 1
        %s961 = scalar_lea.vmem %s3, %s960
      $region52: #{frontend_forward.6} parent=43 // pred_fallthru
        _
      // Predicated region
      $region53: #{frontend_forward.6} parent=43 // pred_check
        %p962 = pneg %p139
      $region54: #{frontend_forward.6} parent=43 // pred_check_branch
        %964 = sbr.rel (%p962) target = $region56
      $region55: #{frontend_forward.6} parent=43 // pred_region
        %p965 = scmp.lt.s32.totalorder %s17, 1
        %s966 = scalar_select %p965, %s17, 1
        %s967 = scalar_lea.vmem %s4, %s966
      $region56: #{frontend_forward.6} parent=43 // pred_fallthru
        _
    $region44: #{frontend_forward.6} parent=5 // pred_fallthru
      _
  $region6: #{frontend_forward.6} parent=0 // loop_footer
    %s15 = sadd.s32 1, %s11
  $region7: #{frontend_forward.6} parent=0 // loop_footer_branch
    %10 = sbr.rel target = $region3
  $region8: #{frontend_forward.6} parent=0 // loop_exit
    _

// kernel: frontend_forward.7
$region0: #{frontend_forward.7}
  #allocation0 [shape = 'u32[]', space=smem, size = 0x4, offset = 0x4, fixed_abs, tag = 'smem constant byte address 0x4 - core index']
  #allocation1 [shape = 'u32[144,128]{1,0:T(1,128)}', space=vmem, size = 0x12000, scoped, tag = 'internal scratch']
  %s0 = inlined_call_operand.vmem [shape: bf16[8,5,5,8], index: 0, kind: input, shape index: {}]
  %s1 = inlined_call_operand.vmem [shape: bf16[8,5,4,8], index: 1, kind: input, shape index: {}]
  %s2 = inlined_call_operand.vmem [shape: bf16[8,4,5,8], index: 2, kind: input, shape index: {}]
  %s3 = inlined_call_operand.vmem [shape: bf16[8,4,4,8], index: 3, kind: input, shape index: {}]
  %s4 = inlined_call_operand.vmem [shape: f32[1,1,1,8], index: 4, kind: input, shape index: {}]
  %s5 = inlined_call_operand.vmem [shape: f32[1,1,1,8], index: 5, kind: input, shape index: {}]
  %s6 = inlined_call_operand.vmem [shape: bf16[8,4,4,8], index: 6, kind: output, shape index: {}]
  %s7 = sld [smem:[#allocation0]]
  $region57: #{frontend_forward.7} parent=0
    _
  %s9 = ssub.s32 1, %s7
  %s10 = scalar_select 0, %s9, %s7
  loop: start=0, step=1, limit=4
  $region2: #{frontend_forward.7} parent=0 // loop_pre_header
    _
  $region3: #{frontend_forward.7} parent=0 // loop_header
    %s12 = sphi 0, %s16
    %p13 = scmp.ge.s32.totalorder %s12, 4
    %s22 = sphi 0, %s24
    %s25 = sphi 0, %s22
    %s26 = sphi 0, %s25
    %s42 = sphi 0, %s26
    %s48 = sphi 0, %s50
    %s51 = sphi 0, %s48
    %s52 = sphi 0, %s51
    %s68 = sphi 0, %s52
    %s74 = sphi 0, %s76
    %s77 = sphi 0, %s74
    %s78 = sphi 0, %s77
    %s94 = sphi 0, %s78
    %s100 = sphi 0, %s102
    %s103 = sphi 0, %s100
    %s104 = sphi 0, %s103
    %s120 = sphi 0, %s104
    %s124 = sphi 0, %s124
    %s126 = sphi 0, %s124
    %s127 = sphi 0, %s126
    %s141 = sphi 0, %s127
    %s145 = sphi 0, %s145
    %s147 = sphi 0, %s145
    %s148 = sphi 0, %s147
    %s162 = sphi 0, %s148
    %s168 = sphi 0, %s170
    %s171 = sphi 0, %s168
    %s172 = sphi 0, %s171
    %s188 = sphi 0, %s172
  $region4: #{frontend_forward.7} parent=0 // loop_header_branch
    %15 = sbr.rel (%p13) target = $region8
  $region5: #{frontend_forward.7} parent=0 // loop_body
    %s17 = ssub.s32 %s12, 1
    %s18 = ssub.s32 %s12, 2
    %s19 = sadd.s32 %s12, 1
    %s20 = ssub.s32 %s12, %s19
    %p21 = scmp.eq.s32.totalorder %s20, 0
    %s23 = sadd.s32 %s22, 1
    %s24 = scalar_select %p21, %s22, %s23
    %p27 = pneg %p21
    %p28 = scmp.eq.s32.totalorder %s12, 1
    %p29 = por %p27, %p28
    %p30 = scmp.ne.s32.totalorder %s22, %s25
    %p31 = scmp.eq.s32.totalorder %s12, 0
    %p32 = por %p30, %p31
    %p33 = scmp.ne.s32.totalorder %s22, %s25
    %p34 = scmp.eq.s32.totalorder %s17, 1
    %p35 = por %p33, %p34
    %p36 = scmp.ne.s32.totalorder %s25, %s26
    %p37 = scmp.eq.s32.totalorder %s17, 0
    %p38 = por %p36, %p37
    %p39 = scmp.ne.s32.totalorder %s25, %s26
    %p40 = scmp.eq.s32.totalorder %s18, 1
    %p41 = por %p39, %p40
    %p43 = scmp.ne.s32.totalorder %s26, %s42
    %p44 = scmp.eq.s32.totalorder %s18, 0
    %p45 = por %p43, %p44
    %s46 = ssub.s32 %s12, %s19
    %p47 = scmp.eq.s32.totalorder %s46, 0
    %s49 = sadd.s32 %s48, 1
    %s50 = scalar_select %p47, %s48, %s49
    %p53 = pneg %p47
    %p54 = scmp.eq.s32.totalorder %s12, 1
    %p55 = por %p53, %p54
    %p56 = scmp.ne.s32.totalorder %s48, %s51
    %p57 = scmp.eq.s32.totalorder %s12, 0
    %p58 = por %p56, %p57
    %p59 = scmp.ne.s32.totalorder %s48, %s51
    %p60 = scmp.eq.s32.totalorder %s17, 1
    %p61 = por %p59, %p60
    %p62 = scmp.ne.s32.totalorder %s51, %s52
    %p63 = scmp.eq.s32.totalorder %s17, 0
    %p64 = por %p62, %p63
    %p65 = scmp.ne.s32.totalorder %s51, %s52
    %p66 = scmp.eq.s32.totalorder %s18, 1
    %p67 = por %p65, %p66
    %p69 = scmp.ne.s32.totalorder %s52, %s68
    %p70 = scmp.eq.s32.totalorder %s18, 0
    %p71 = por %p69, %p70
    %s72 = ssub.s32 %s12, %s19
    %p73 = scmp.eq.s32.totalorder %s72, 0
    %s75 = sadd.s32 %s74, 1
    %s76 = scalar_select %p73, %s74, %s75
    %p79 = pneg %p73
    %p80 = scmp.eq.s32.totalorder %s12, 1
    %p81 = por %p79, %p80
    %p82 = scmp.ne.s32.totalorder %s74, %s77
    %p83 = scmp.eq.s32.totalorder %s12, 0
    %p84 = por %p82, %p83
    %p85 = scmp.ne.s32.totalorder %s74, %s77
    %p86 = scmp.eq.s32.totalorder %s17, 1
    %p87 = por %p85, %p86
    %p88 = scmp.ne.s32.totalorder %s77, %s78
    %p89 = scmp.eq.s32.totalorder %s17, 0
    %p90 = por %p88, %p89
    %p91 = scmp.ne.s32.totalorder %s77, %s78
    %p92 = scmp.eq.s32.totalorder %s18, 1
    %p93 = por %p91, %p92
    %p95 = scmp.ne.s32.totalorder %s78, %s94
    %p96 = scmp.eq.s32.totalorder %s18, 0
    %p97 = por %p95, %p96
    %s98 = ssub.s32 %s12, %s19
    %p99 = scmp.eq.s32.totalorder %s98, 0
    %s101 = sadd.s32 %s100, 1
    %s102 = scalar_select %p99, %s100, %s101
    %p105 = pneg %p99
    %p106 = scmp.eq.s32.totalorder %s12, 1
    %p107 = por %p105, %p106
    %p108 = scmp.ne.s32.totalorder %s100, %s103
    %p109 = scmp.eq.s32.totalorder %s12, 0
    %p110 = por %p108, %p109
    %p111 = scmp.ne.s32.totalorder %s100, %s103
    %p112 = scmp.eq.s32.totalorder %s17, 1
    %p113 = por %p111, %p112
    %p114 = scmp.ne.s32.totalorder %s103, %s104
    %p115 = scmp.eq.s32.totalorder %s17, 0
    %p116 = por %p114, %p115
    %p117 = scmp.ne.s32.totalorder %s103, %s104
    %p118 = scmp.eq.s32.totalorder %s18, 1
    %p119 = por %p117, %p118
    %p121 = scmp.ne.s32.totalorder %s104, %s120
    %p122 = scmp.eq.s32.totalorder %s18, 0
    %p123 = por %p121, %p122
    %s125 = sadd.s32 %s124, 1
    %p128 = scmp.eq.s32.totalorder %s12, 1
    %p129 = scmp.ne.s32.totalorder %s124, %s126
    %p130 = scmp.eq.s32.totalorder %s12, 0
    %p131 = por %p129, %p130
    %p132 = scmp.ne.s32.totalorder %s124, %s126
    %p133 = scmp.eq.s32.totalorder %s17, 1
    %p134 = por %p132, %p133
    %p135 = scmp.ne.s32.totalorder %s126, %s127
    %p136 = scmp.eq.s32.totalorder %s17, 0
    %p137 = por %p135, %p136
    %p138 = scmp.ne.s32.totalorder %s126, %s127
    %p139 = scmp.eq.s32.totalorder %s18, 1
    %p140 = por %p138, %p139
    %p142 = scmp.ne.s32.totalorder %s127, %s141
    %p143 = scmp.eq.s32.totalorder %s18, 0
    %p144 = por %p142, %p143
    %s146 = sadd.s32 %s145, 1
    %p149 = scmp.eq.s32.totalorder %s12, 1
    %p150 = scmp.ne.s32.totalorder %s145, %s147
    %p151 = scmp.eq.s32.totalorder %s12, 0
    %p152 = por %p150, %p151
    %p153 = scmp.ne.s32.totalorder %s145, %s147
    %p154 = scmp.eq.s32.totalorder %s17, 1
    %p155 = por %p153, %p154
    %p156 = scmp.ne.s32.totalorder %s147, %s148
    %p157 = scmp.eq.s32.totalorder %s17, 0
    %p158 = por %p156, %p157
    %p159 = scmp.ne.s32.totalorder %s147, %s148
    %p160 = scmp.eq.s32.totalorder %s18, 1
    %p161 = por %p159, %p160
    %p163 = scmp.ne.s32.totalorder %s148, %s162
    %p164 = scmp.eq.s32.totalorder %s18, 0
    %p165 = por %p163, %p164
    %s166 = ssub.s32 %s12, %s19
    %p167 = scmp.eq.s32.totalorder %s166, 0
    %s169 = sadd.s32 %s168, 1
    %s170 = scalar_select %p167, %s168, %s169
    %p173 = pneg %p167
    %p174 = scmp.eq.s32.totalorder %s12, 1
    %p175 = por %p173, %p174
    %p176 = scmp.ne.s32.totalorder %s168, %s171
    %p177 = scmp.eq.s32.totalorder %s12, 0
    %p178 = por %p176, %p177
    %p179 = scmp.ne.s32.totalorder %s168, %s171
    %p180 = scmp.eq.s32.totalorder %s17, 1
    %p181 = por %p179, %p180
    %p182 = scmp.ne.s32.totalorder %s171, %s172
    %p183 = scmp.eq.s32.totalorder %s17, 0
    %p184 = por %p182, %p183
    %p185 = scmp.ne.s32.totalorder %s171, %s172
    %p186 = scmp.eq.s32.totalorder %s18, 1
    %p187 = por %p185, %p186
    %p189 = scmp.ne.s32.totalorder %s172, %s188
    %p190 = scmp.eq.s32.totalorder %s18, 0
    %p191 = por %p189, %p190
    %p192 = scmp.le.s32.totalorder 1, %s12
    %p193 = scmp.lt.s32.totalorder %s12, 3
    %p194 = pnand %p192, %p193
    %p195 = pneg %p194
    // Predicated region
    $region9: #{frontend_forward.7} parent=5 // pred_check
      _
    $region10: #{frontend_forward.7} parent=5 // pred_check_branch
      %197 = sbr.rel (%p194) target = $region12
    $region11: #{frontend_forward.7} parent=5 // pred_region
      %s198 = ssub.s32 %s12, 1
      // Predicated region
      $region13: #{frontend_forward.7} parent=11 // pred_check
        %p199 = pneg %p137
      $region14: #{frontend_forward.7} parent=11 // pred_check_branch
        %201 = sbr.rel (%p199) target = $region16
      $region15: #{frontend_forward.7} parent=11 // pred_region
        _
      $region16: #{frontend_forward.7} parent=11 // pred_fallthru
        _
      // Predicated region
      $region17: #{frontend_forward.7} parent=11 // pred_check
        %p202 = pneg %p158
      $region18: #{frontend_forward.7} parent=11 // pred_check_branch
        %204 = sbr.rel (%p202) target = $region20
      $region19: #{frontend_forward.7} parent=11 // pred_region
        _
      $region20: #{frontend_forward.7} parent=11 // pred_fallthru
        _
    $region12: #{frontend_forward.7} parent=5 // pred_fallthru
      _
    %p205 = scmp.lt.s32.totalorder %s12, 2
    // Predicated region
    $region21: #{frontend_forward.7} parent=5 // pred_check
      %p206 = pneg %p205
    $region22: #{frontend_forward.7} parent=5 // pred_check_branch
      %208 = sbr.rel (%p206) target = $region24
    $region23: #{frontend_forward.7} parent=5 // pred_region
      // Predicated region
      $region25: #{frontend_forward.7} parent=23 // pred_check
        %p209 = pneg %p32
      $region26: #{frontend_forward.7} parent=23 // pred_check_branch
        %211 = sbr.rel (%p209) target = $region28
      $region27: #{frontend_forward.7} parent=23 // pred_region
        %s212 = smul.u32 4, %s12
        %p213 = scmp.lt.s32.totalorder %s212, 7
        %s214 = scalar_select %p213, %s212, 7
        %s215 = smul.addr %s214, 5
        %s216 = smul.addr %s215, 4
        %s217 = scalar_lea.vmem %s0, %s216
        %s218 = smul.u32 4, %s12
      $region28: #{frontend_forward.7} parent=23 // pred_fallthru
        _
      // Predicated region
      $region29: #{frontend_forward.7} parent=23 // pred_check
        %p219 = pneg %p58
      $region30: #{frontend_forward.7} parent=23 // pred_check_branch
        %221 = sbr.rel (%p219) target = $region32
      $region31: #{frontend_forward.7} parent=23 // pred_region
        %s222 = smul.u32 4, %s12
        %p223 = scmp.lt.s32.totalorder %s222, 7
        %s224 = scalar_select %p223, %s222, 7
        %s225 = smul.addr %s224, 5
        %s226 = smul.addr %s225, 2
        %s227 = scalar_lea.vmem %s1, %s226
        %s228 = smul.u32 4, %s12
      $region32: #{frontend_forward.7} parent=23 // pred_fallthru
        _
      // Predicated region
      $region33: #{frontend_forward.7} parent=23 // pred_check
        %p229 = pneg %p84
      $region34: #{frontend_forward.7} parent=23 // pred_check_branch
        %231 = sbr.rel (%p229) target = $region36
      $region35: #{frontend_forward.7} parent=23 // pred_region
        %s232 = smul.u32 4, %s12
        %p233 = scmp.lt.s32.totalorder %s232, 7
        %s234 = scalar_select %p233, %s232, 7
        %s235 = smul.addr %s234, 4
        %s236 = smul.addr %s235, 4
        %s237 = scalar_lea.vmem %s2, %s236
        %s238 = smul.u32 4, %s12
      $region36: #{frontend_forward.7} parent=23 // pred_fallthru
        _
      // Predicated region
      $region37: #{frontend_forward.7} parent=23 // pred_check
        %p239 = pneg %p110
      $region38: #{frontend_forward.7} parent=23 // pred_check_branch
        %241 = sbr.rel (%p239) target = $region40
      $region39: #{frontend_forward.7} parent=23 // pred_region
        %s242 = smul.u32 4, %s12
        %p243 = scmp.lt.s32.totalorder %s242, 7
        %s244 = scalar_select %p243, %s242, 7
        %s245 = smul.addr %s244, 4
        %s246 = smul.addr %s245, 2
        %s247 = scalar_lea.vmem %s3, %s246
        %s248 = smul.u32 4, %s12
      $region40: #{frontend_forward.7} parent=23 // pred_fallthru
        _
    $region24: #{frontend_forward.7} parent=5 // pred_fallthru
      _
    %p249 = scmp.le.s32.totalorder 1, %s12
    %p250 = scmp.lt.s32.totalorder %s12, 3
    %p251 = pnand %p249, %p250
    %p252 = pneg %p251
    // Predicated region
    $region41: #{frontend_forward.7} parent=5 // pred_check
      _
    $region42: #{frontend_forward.7} parent=5 // pred_check_branch
      %254 = sbr.rel (%p251) target = $region44
    $region43: #{frontend_forward.7} parent=5 // pred_region
      %s255 = ssub.s32 %s12, 1
      %s256 = smul.u32 4, %s17
      %p257 = scmp.lt.s32.totalorder %s256, 7
      %s258 = scalar_select %p257, %s256, 7
      %s259 = smul.addr %s258, 5
      %s260 = smul.addr %s259, 4
      %s261 = scalar_lea.vmem %s0, %s260
      %p262 = pneg %p38
      %p263 = pneg %p35
      %s264 = smul.u32 4, %s17
      %p265 = scmp.lt.s32.totalorder %s264, 7
      %s266 = scalar_select %p265, %s264, 7
      %s267 = smul.addr %s266, 5
      %s268 = smul.addr %s267, 2
      %s269 = scalar_lea.vmem %s1, %s268
      %p270 = pneg %p64
      %p271 = pneg %p61
      %s272 = smul.u32 4, %s17
      %p273 = scmp.lt.s32.totalorder %s272, 7
      %s274 = scalar_select %p273, %s272, 7
      %s275 = smul.addr %s274, 4
      %s276 = smul.addr %s275, 4
      %s277 = scalar_lea.vmem %s2, %s276
      %p278 = pneg %p90
      %p279 = pneg %p87
      %s280 = smul.u32 4, %s17
      %p281 = scmp.lt.s32.totalorder %s280, 7
      %s282 = scalar_select %p281, %s280, 7
      %s283 = smul.addr %s282, 4
      %s284 = smul.addr %s283, 2
      %s285 = scalar_lea.vmem %s3, %s284
      %p286 = pneg %p116
      %p287 = pneg %p113
      %p288 = pneg %p137
      %p289 = pneg %p134
      %p290 = pneg %p158
      %p291 = pneg %p155
      %p292 = pneg %p184
      %p293 = pneg %p181
      %s294 = smul.u32 4, %s17
      %p295 = scmp.lt.s32.totalorder %s294, 7
      %s296 = scalar_select %p295, %s294, 7
      %s297 = smul.addr %s296, 4
      %s298 = smul.addr %s297, 2
      %s299 = scalar_lea.vmem %s6, %s298
      %s300 = smul.u32 4, %s17
      %p301 = scmp.lt.s32.totalorder %s300, 7
      %s302 = scalar_select %p301, %s300, 7
      %s303 = smul.addr %s302, 5
      %s304 = smul.addr %s303, 4
      %s305 = scalar_lea.vmem %s0, %s304
      %s306 = smul.u32 4, %s17
      %s307 = smul.u32 4, %s17
      %p308 = scmp.lt.s32.totalorder %s307, 7
      %s309 = scalar_select %p308, %s307, 7
      %s310 = smul.addr %s309, 5
      %s311 = smul.addr %s310, 2
      %s312 = scalar_lea.vmem %s1, %s311
      %s313 = smul.u32 4, %s17
      %s314 = smul.u32 4, %s17
      %p315 = scmp.lt.s32.totalorder %s314, 7
      %s316 = scalar_select %p315, %s314, 7
      %s317 = smul.addr %s316, 4
      %s318 = smul.addr %s317, 4
      %s319 = scalar_lea.vmem %s2, %s318
      %s320 = smul.u32 4, %s17
      %s321 = smul.u32 4, %s17
      %p322 = scmp.lt.s32.totalorder %s321, 7
      %s323 = scalar_select %p322, %s321, 7
      %s324 = smul.addr %s323, 4
      %s325 = smul.addr %s324, 2
      %s326 = scalar_lea.vmem %s3, %s325
      %s327 = smul.u32 4, %s17
      %s328 = smul.u32 4, %s17
      %p329 = scmp.lt.s32.totalorder %s328, 7
      %s330 = scalar_select %p329, %s328, 7
      %s331 = smul.addr %s330, 4
      %s332 = smul.addr %s331, 2
      %s333 = scalar_lea.vmem %s6, %s332
      %s334 = smul.u32 4, %s17
      %v335 = vld [vmem:[%s4] sm:$0x1]
      %v336 = vld [vmem:[%s5] sm:$0x1]
      %v337 = vld [vmem:[%s305] sm:$0x7]
      %v338 = vld [vmem:[%s305 + $0x4] sm:$0x7]
      %v339 = vld [vmem:[%s305 + $0x8] sm:$0x7]
      %v340 = vld [vmem:[%s305 + $0xc] sm:$0x7]
      %v341 = vld [vmem:[%s305 + $0x10] sm:$0x7]
      %v342 = vld [vmem:[%s305 + $0x14] sm:$0x7]
      %v343 = vld [vmem:[%s305 + $0x18] sm:$0x7]
      %v344 = vld [vmem:[%s305 + $0x1c] sm:$0x7]
      %v345 = vld [vmem:[%s305 + $0x20] sm:$0x7]
      %v346 = vld [vmem:[%s305 + $0x24] sm:$0x7]
      %v347 = vld [vmem:[%s305 + $0x28] sm:$0x7]
      %v348 = vld [vmem:[%s305 + $0x2c] sm:$0x7]
      %v349 = vld [vmem:[%s305 + $0x30] sm:$0x7]
      %v350 = vld [vmem:[%s305 + $0x34] sm:$0x7]
      %v351 = vld [vmem:[%s305 + $0x38] sm:$0x7]
      %v352 = vld [vmem:[%s305 + $0x3c] sm:$0x7]
      %v353 = vld [vmem:[%s305 + $0x40] sm:$0x7]
      %v354 = vld [vmem:[%s305 + $0x44] sm:$0x7]
      %v355 = vld [vmem:[%s305 + $0x48] sm:$0x7]
      %v356 = vld [vmem:[%s305 + $0x4c] sm:$0x7]
      %v357 = vunpack.c.l.bf16 %v337
      %v358 = vunpack.c.l.bf16 %v338
      %v359 = vunpack.c.l.bf16 %v339
      %v360 = vunpack.c.l.bf16 %v340
      %v361 = vunpack.c.l.bf16 %v341
      %v362 = vunpack.c.l.bf16 %v342
      %v363 = vunpack.c.l.bf16 %v343
      %v364 = vunpack.c.l.bf16 %v344
      %v365 = vunpack.c.l.bf16 %v345
      %v366 = vunpack.c.l.bf16 %v346
      %v367 = vunpack.c.l.bf16 %v347
      %v368 = vunpack.c.l.bf16 %v348
      %v369 = vunpack.c.l.bf16 %v349
      %v370 = vunpack.c.l.bf16 %v350
      %v371 = vunpack.c.l.bf16 %v351
      %v372 = vunpack.c.l.bf16 %v352
      %v373 = vunpack.c.l.bf16 %v353
      %v374 = vunpack.c.l.bf16 %v354
      %v375 = vunpack.c.l.bf16 %v355
      %v376 = vunpack.c.l.bf16 %v356
      %v378 = vlaneseq
      %v379 = vshrl.u32 %v378, 7
      %v380 = vsub.s32 0, %v379
      %v381 = vrot.slane %v335, %v380
      %v383 = vmul.f32 %v357, %v381
      %v384 = vmul.f32 %v358, %v381
      %v385 = vmul.f32 %v359, %v381
      %v386 = vmul.f32 %v360, %v381
      %v387 = vmul.f32 %v361, %v381
      %v388 = vmul.f32 %v362, %v381
      %v389 = vmul.f32 %v363, %v381
      %v390 = vmul.f32 %v364, %v381
      %v391 = vmul.f32 %v365, %v381
      %v392 = vmul.f32 %v366, %v381
      %v393 = vmul.f32 %v367, %v381
      %v394 = vmul.f32 %v368, %v381
      %v395 = vmul.f32 %v369, %v381
      %v396 = vmul.f32 %v370, %v381
      %v397 = vmul.f32 %v371, %v381
      %v398 = vmul.f32 %v372, %v381
      %v399 = vmul.f32 %v373, %v381
      %v400 = vmul.f32 %v374, %v381
      %v401 = vmul.f32 %v375, %v381
      %v402 = vmul.f32 %v376, %v381
      %v404 = vlaneseq
      %v405 = vshrl.u32 %v404, 7
      %v406 = vsub.s32 0, %v405
      %v407 = vrot.slane %v336, %v406
      %v409 = vadd.f32 %v383, %v407
      %v410 = vadd.f32 %v384, %v407
      %v411 = vadd.f32 %v385, %v407
      %v412 = vadd.f32 %v386, %v407
      %v413 = vadd.f32 %v387, %v407
      %v414 = vadd.f32 %v388, %v407
      %v415 = vadd.f32 %v389, %v407
      %v416 = vadd.f32 %v390, %v407
      %v417 = vadd.f32 %v391, %v407
      %v418 = vadd.f32 %v392, %v407
      %v419 = vadd.f32 %v393, %v407
      %v420 = vadd.f32 %v394, %v407
      %v421 = vadd.f32 %v395, %v407
      %v422 = vadd.f32 %v396, %v407
      %v423 = vadd.f32 %v397, %v407
      %v424 = vadd.f32 %v398, %v407
      %v425 = vadd.f32 %v399, %v407
      %v426 = vadd.f32 %v400, %v407
      %v427 = vadd.f32 %v401, %v407
      %v428 = vadd.f32 %v402, %v407
      %v429 = vmax.f32 %v409, 0.0
      %v430 = vmax.f32 %v410, 0.0
      %v431 = vmax.f32 %v411, 0.0
      %v432 = vmax.f32 %v412, 0.0
      %v433 = vmax.f32 %v413, 0.0
      %v434 = vmax.f32 %v414, 0.0
      %v435 = vmax.f32 %v415, 0.0
      %v436 = vmax.f32 %v416, 0.0
      %v437 = vmax.f32 %v417, 0.0
      %v438 = vmax.f32 %v418, 0.0
      %v439 = vmax.f32 %v419, 0.0
      %v440 = vmax.f32 %v420, 0.0
      %v441 = vmax.f32 %v421, 0.0
      %v442 = vmax.f32 %v422, 0.0
      %v443 = vmax.f32 %v423, 0.0
      %v444 = vmax.f32 %v424, 0.0
      %v445 = vmax.f32 %v425, 0.0
      %v446 = vmax.f32 %v426, 0.0
      %v447 = vmax.f32 %v427, 0.0
      %v448 = vmax.f32 %v428, 0.0
      %v449 = vld [vmem:[%s312] sm:$0x3]
      %v450 = vld [vmem:[%s312 + $0x2] sm:$0x3]
      %v451 = vld [vmem:[%s312 + $0x4] sm:$0x3]
      %v452 = vld [vmem:[%s312 + $0x6] sm:$0x3]
      %v453 = vld [vmem:[%s312 + $0x8] sm:$0x3]
      %v454 = vld [vmem:[%s312 + $0xa] sm:$0x3]
      %v455 = vld [vmem:[%s312 + $0xc] sm:$0x3]
      %v456 = vld [vmem:[%s312 + $0xe] sm:$0x3]
      %v457 = vld [vmem:[%s312 + $0x10] sm:$0x3]
      %v458 = vld [vmem:[%s312 + $0x12] sm:$0x3]
      %v459 = vld [vmem:[%s312 + $0x14] sm:$0x3]
      %v460 = vld [vmem:[%s312 + $0x16] sm:$0x3]
      %v461 = vld [vmem:[%s312 + $0x18] sm:$0x3]
      %v462 = vld [vmem:[%s312 + $0x1a] sm:$0x3]
      %v463 = vld [vmem:[%s312 + $0x1c] sm:$0x3]
      %v464 = vld [vmem:[%s312 + $0x1e] sm:$0x3]
      %v465 = vld [vmem:[%s312 + $0x20] sm:$0x3]
      %v466 = vld [vmem:[%s312 + $0x22] sm:$0x3]
      %v467 = vld [vmem:[%s312 + $0x24] sm:$0x3]
      %v468 = vld [vmem:[%s312 + $0x26] sm:$0x3]
      %v469 = vunpack.c.l.bf16 %v449
      %v470 = vunpack.c.l.bf16 %v450
      %v471 = vunpack.c.l.bf16 %v451
      %v472 = vunpack.c.l.bf16 %v452
      %v473 = vunpack.c.l.bf16 %v453
      %v474 = vunpack.c.l.bf16 %v454
      %v475 = vunpack.c.l.bf16 %v455
      %v476 = vunpack.c.l.bf16 %v456
      %v477 = vunpack.c.l.bf16 %v457
      %v478 = vunpack.c.l.bf16 %v458
      %v479 = vunpack.c.l.bf16 %v459
      %v480 = vunpack.c.l.bf16 %v460
      %v481 = vunpack.c.l.bf16 %v461
      %v482 = vunpack.c.l.bf16 %v462
      %v483 = vunpack.c.l.bf16 %v463
      %v484 = vunpack.c.l.bf16 %v464
      %v485 = vunpack.c.l.bf16 %v465
      %v486 = vunpack.c.l.bf16 %v466
      %v487 = vunpack.c.l.bf16 %v467
      %v488 = vunpack.c.l.bf16 %v468
      %v489 = vmul.f32 %v469, %v381
      %v490 = vmul.f32 %v470, %v381
      %v491 = vmul.f32 %v471, %v381
      %v492 = vmul.f32 %v472, %v381
      %v493 = vmul.f32 %v473, %v381
      %v494 = vmul.f32 %v474, %v381
      %v495 = vmul.f32 %v475, %v381
      %v496 = vmul.f32 %v476, %v381
      %v497 = vmul.f32 %v477, %v381
      %v498 = vmul.f32 %v478, %v381
      %v499 = vmul.f32 %v479, %v381
      %v500 = vmul.f32 %v480, %v381
      %v501 = vmul.f32 %v481, %v381
      %v502 = vmul.f32 %v482, %v381
      %v503 = vmul.f32 %v483, %v381
      %v504 = vmul.f32 %v484, %v381
      %v505 = vmul.f32 %v485, %v381
      %v506 = vmul.f32 %v486, %v381
      %v507 = vmul.f32 %v487, %v381
      %v508 = vmul.f32 %v488, %v381
      %v509 = vadd.f32 %v489, %v407
      %v510 = vadd.f32 %v490, %v407
      %v511 = vadd.f32 %v491, %v407
      %v512 = vadd.f32 %v492, %v407
      %v513 = vadd.f32 %v493, %v407
      %v514 = vadd.f32 %v494, %v407
      %v515 = vadd.f32 %v495, %v407
      %v516 = vadd.f32 %v496, %v407
      %v517 = vadd.f32 %v497, %v407
      %v518 = vadd.f32 %v498, %v407
      %v519 = vadd.f32 %v499, %v407
      %v520 = vadd.f32 %v500, %v407
      %v521 = vadd.f32 %v501, %v407
      %v522 = vadd.f32 %v502, %v407
      %v523 = vadd.f32 %v503, %v407
      %v524 = vadd.f32 %v504, %v407
      %v525 = vadd.f32 %v505, %v407
      %v526 = vadd.f32 %v506, %v407
      %v527 = vadd.f32 %v507, %v407
      %v528 = vadd.f32 %v508, %v407
      %v529 = vmax.f32 %v509, 0.0
      %v530 = vmax.f32 %v510, 0.0
      %v531 = vmax.f32 %v511, 0.0
      %v532 = vmax.f32 %v512, 0.0
      %v533 = vmax.f32 %v513, 0.0
      %v534 = vmax.f32 %v514, 0.0
      %v535 = vmax.f32 %v515, 0.0
      %v536 = vmax.f32 %v516, 0.0
      %v537 = vmax.f32 %v517, 0.0
      %v538 = vmax.f32 %v518, 0.0
      %v539 = vmax.f32 %v519, 0.0
      %v540 = vmax.f32 %v520, 0.0
      %v541 = vmax.f32 %v521, 0.0
      %v542 = vmax.f32 %v522, 0.0
      %v543 = vmax.f32 %v523, 0.0
      %v544 = vmax.f32 %v524, 0.0
      %v545 = vmax.f32 %v525, 0.0
      %v546 = vmax.f32 %v526, 0.0
      %v547 = vmax.f32 %v527, 0.0
      %v548 = vmax.f32 %v528, 0.0
      %v549 = vld [vmem:[%s319] sm:$0x7]
      %v550 = vld [vmem:[%s319 + $0x4] sm:$0x7]
      %v551 = vld [vmem:[%s319 + $0x8] sm:$0x7]
      %v552 = vld [vmem:[%s319 + $0xc] sm:$0x7]
      %v553 = vld [vmem:[%s319 + $0x10] sm:$0x7]
      %v554 = vld [vmem:[%s319 + $0x14] sm:$0x7]
      %v555 = vld [vmem:[%s319 + $0x18] sm:$0x7]
      %v556 = vld [vmem:[%s319 + $0x1c] sm:$0x7]
      %v557 = vld [vmem:[%s319 + $0x20] sm:$0x7]
      %v558 = vld [vmem:[%s319 + $0x24] sm:$0x7]
      %v559 = vld [vmem:[%s319 + $0x28] sm:$0x7]
      %v560 = vld [vmem:[%s319 + $0x2c] sm:$0x7]
      %v561 = vld [vmem:[%s319 + $0x30] sm:$0x7]
      %v562 = vld [vmem:[%s319 + $0x34] sm:$0x7]
      %v563 = vld [vmem:[%s319 + $0x38] sm:$0x7]
      %v564 = vld [vmem:[%s319 + $0x3c] sm:$0x7]
      %v565 = vunpack.c.l.bf16 %v549
      %v566 = vunpack.c.l.bf16 %v550
      %v567 = vunpack.c.l.bf16 %v551
      %v568 = vunpack.c.l.bf16 %v552
      %v569 = vunpack.c.l.bf16 %v553
      %v570 = vunpack.c.l.bf16 %v554
      %v571 = vunpack.c.l.bf16 %v555
      %v572 = vunpack.c.l.bf16 %v556
      %v573 = vunpack.c.l.bf16 %v557
      %v574 = vunpack.c.l.bf16 %v558
      %v575 = vunpack.c.l.bf16 %v559
      %v576 = vunpack.c.l.bf16 %v560
      %v577 = vunpack.c.l.bf16 %v561
      %v578 = vunpack.c.l.bf16 %v562
      %v579 = vunpack.c.l.bf16 %v563
      %v580 = vunpack.c.l.bf16 %v564
      %v581 = vmul.f32 %v565, %v381
      %v582 = vmul.f32 %v566, %v381
      %v583 = vmul.f32 %v567, %v381
      %v584 = vmul.f32 %v568, %v381
      %v585 = vmul.f32 %v569, %v381
      %v586 = vmul.f32 %v570, %v381
      %v587 = vmul.f32 %v571, %v381
      %v588 = vmul.f32 %v572, %v381
      %v589 = vmul.f32 %v573, %v381
      %v590 = vmul.f32 %v574, %v381
      %v591 = vmul.f32 %v575, %v381
      %v592 = vmul.f32 %v576, %v381
      %v593 = vmul.f32 %v577, %v381
      %v594 = vmul.f32 %v578, %v381
      %v595 = vmul.f32 %v579, %v381
      %v596 = vmul.f32 %v580, %v381
      %v597 = vadd.f32 %v581, %v407
      %v598 = vadd.f32 %v582, %v407
      %v599 = vadd.f32 %v583, %v407
      %v600 = vadd.f32 %v584, %v407
      %v601 = vadd.f32 %v585, %v407
      %v602 = vadd.f32 %v586, %v407
      %v603 = vadd.f32 %v587, %v407
      %v604 = vadd.f32 %v588, %v407
      %v605 = vadd.f32 %v589, %v407
      %v606 = vadd.f32 %v590, %v407
      %v607 = vadd.f32 %v591, %v407
      %v608 = vadd.f32 %v592, %v407
      %v609 = vadd.f32 %v593, %v407
      %v610 = vadd.f32 %v594, %v407
      %v611 = vadd.f32 %v595, %v407
      %v612 = vadd.f32 %v596, %v407
      %v613 = vmax.f32 %v597, 0.0
      %v614 = vmax.f32 %v598, 0.0
      %v615 = vmax.f32 %v599, 0.0
      %v616 = vmax.f32 %v600, 0.0
      %v617 = vmax.f32 %v601, 0.0
      %v618 = vmax.f32 %v602, 0.0
      %v619 = vmax.f32 %v603, 0.0
      %v620 = vmax.f32 %v604, 0.0
      %v621 = vmax.f32 %v605, 0.0
      %v622 = vmax.f32 %v606, 0.0
      %v623 = vmax.f32 %v607, 0.0
      %v624 = vmax.f32 %v608, 0.0
      %v625 = vmax.f32 %v609, 0.0
      %v626 = vmax.f32 %v610, 0.0
      %v627 = vmax.f32 %v611, 0.0
      %v628 = vmax.f32 %v612, 0.0
      %v629 = vld [vmem:[%s326] sm:$0x3]
      %v630 = vld [vmem:[%s326 + $0x2] sm:$0x3]
      %v631 = vld [vmem:[%s326 + $0x4] sm:$0x3]
      %v632 = vld [vmem:[%s326 + $0x6] sm:$0x3]
      %v633 = vld [vmem:[%s326 + $0x8] sm:$0x3]
      %v634 = vld [vmem:[%s326 + $0xa] sm:$0x3]
      %v635 = vld [vmem:[%s326 + $0xc] sm:$0x3]
      %v636 = vld [vmem:[%s326 + $0xe] sm:$0x3]
      %v637 = vld [vmem:[%s326 + $0x10] sm:$0x3]
      %v638 = vld [vmem:[%s326 + $0x12] sm:$0x3]
      %v639 = vld [vmem:[%s326 + $0x14] sm:$0x3]
      %v640 = vld [vmem:[%s326 + $0x16] sm:$0x3]
      %v641 = vld [vmem:[%s326 + $0x18] sm:$0x3]
      %v642 = vld [vmem:[%s326 + $0x1a] sm:$0x3]
      %v643 = vld [vmem:[%s326 + $0x1c] sm:$0x3]
      %v644 = vld [vmem:[%s326 + $0x1e] sm:$0x3]
      %v645 = vunpack.c.l.bf16 %v629
      %v646 = vunpack.c.l.bf16 %v630
      %v647 = vunpack.c.l.bf16 %v631
      %v648 = vunpack.c.l.bf16 %v632
      %v649 = vunpack.c.l.bf16 %v633
      %v650 = vunpack.c.l.bf16 %v634
      %v651 = vunpack.c.l.bf16 %v635
      %v652 = vunpack.c.l.bf16 %v636
      %v653 = vunpack.c.l.bf16 %v637
      %v654 = vunpack.c.l.bf16 %v638
      %v655 = vunpack.c.l.bf16 %v639
      %v656 = vunpack.c.l.bf16 %v640
      %v657 = vunpack.c.l.bf16 %v641
      %v658 = vunpack.c.l.bf16 %v642
      %v659 = vunpack.c.l.bf16 %v643
      %v660 = vunpack.c.l.bf16 %v644
      %v661 = vmul.f32 %v645, %v381
      %v662 = vmul.f32 %v646, %v381
      %v663 = vmul.f32 %v647, %v381
      %v664 = vmul.f32 %v648, %v381
      %v665 = vmul.f32 %v649, %v381
      %v666 = vmul.f32 %v650, %v381
      %v667 = vmul.f32 %v651, %v381
      %v668 = vmul.f32 %v652, %v381
      %v669 = vmul.f32 %v653, %v381
      %v670 = vmul.f32 %v654, %v381
      %v671 = vmul.f32 %v655, %v381
      %v672 = vmul.f32 %v656, %v381
      %v673 = vmul.f32 %v657, %v381
      %v674 = vmul.f32 %v658, %v381
      %v675 = vmul.f32 %v659, %v381
      %v676 = vmul.f32 %v660, %v381
      %v677 = vadd.f32 %v661, %v407
      %v678 = vadd.f32 %v662, %v407
      %v679 = vadd.f32 %v663, %v407
      %v680 = vadd.f32 %v664, %v407
      %v681 = vadd.f32 %v665, %v407
      %v682 = vadd.f32 %v666, %v407
      %v683 = vadd.f32 %v667, %v407
      %v684 = vadd.f32 %v668, %v407
      %v685 = vadd.f32 %v669, %v407
      %v686 = vadd.f32 %v670, %v407
      %v687 = vadd.f32 %v671, %v407
      %v688 = vadd.f32 %v672, %v407
      %v689 = vadd.f32 %v673, %v407
      %v690 = vadd.f32 %v674, %v407
      %v691 = vadd.f32 %v675, %v407
      %v692 = vadd.f32 %v676, %v407
      %v693 = vmax.f32 %v677, 0.0
      %v694 = vmax.f32 %v678, 0.0
      %v695 = vmax.f32 %v679, 0.0
      %v696 = vmax.f32 %v680, 0.0
      %v697 = vmax.f32 %v681, 0.0
      %v698 = vmax.f32 %v682, 0.0
      %v699 = vmax.f32 %v683, 0.0
      %v700 = vmax.f32 %v684, 0.0
      %v701 = vmax.f32 %v685, 0.0
      %v702 = vmax.f32 %v686, 0.0
      %v703 = vmax.f32 %v687, 0.0
      %v704 = vmax.f32 %v688, 0.0
      %v705 = vmax.f32 %v689, 0.0
      %v706 = vmax.f32 %v690, 0.0
      %v707 = vmax.f32 %v691, 0.0
      %v708 = vmax.f32 %v692, 0.0
      %v709 = vlaneseq
      %v710 = vshrl.u32 %v709, 7
      %vm711 = vcmp.ge.s32.totalorder %v710, 1
      %vm712 = vmand 0, %vm711
      %vm713 = vmand 1, %vm711
      %v714 = vsel %vm712, %v429, 0.0
      %v715 = vsel %vm713, %v430, 0.0
      %v716 = vsel %vm713, %v431, 0.0
      %v717 = vsel %vm713, %v432, 0.0
      %v718 = vsel %vm713, %v433, 0.0
      %v719 = vsel %vm712, %v434, 0.0
      %v720 = vsel %vm713, %v435, 0.0
      %v721 = vsel %vm713, %v436, 0.0
      %v722 = vsel %vm713, %v437, 0.0
      %v723 = vsel %vm713, %v438, 0.0
      %v724 = vsel %vm712, %v439, 0.0
      %v725 = vsel %vm713, %v440, 0.0
      %v726 = vsel %vm713, %v441, 0.0
      %v727 = vsel %vm713, %v442, 0.0
      %v728 = vsel %vm713, %v443, 0.0
      %v729 = vsel %vm712, %v444, 0.0
      %v730 = vsel %vm713, %v445, 0.0
      %v731 = vsel %vm713, %v446, 0.0
      %v732 = vsel %vm713, %v447, 0.0
      %v733 = vsel %vm713, %v448, 0.0
      %v734 = vsel 0, %v529, 0.0
      %v735 = vsel 1, %v530, 0.0
      %v736 = vsel 1, %v531, 0.0
      %v737 = vsel 1, %v532, 0.0
      %v738 = vsel 1, %v533, 0.0
      %v739 = vsel 0, %v534, 0.0
      %v740 = vsel 1, %v535, 0.0
      %v741 = vsel 1, %v536, 0.0
      %v742 = vsel 1, %v537, 0.0
      %v743 = vsel 1, %v538, 0.0
      %v744 = vsel 0, %v539, 0.0
      %v745 = vsel 1, %v540, 0.0
      %v746 = vsel 1, %v541, 0.0
      %v747 = vsel 1, %v542, 0.0
      %v748 = vsel 1, %v543, 0.0
      %v749 = vsel 0, %v544, 0.0
      %v750 = vsel 1, %v545, 0.0
      %v751 = vsel 1, %v546, 0.0
      %v752 = vsel 1, %v547, 0.0
      %v753 = vsel 1, %v548, 0.0
      %v754 = vsel %vm711, %v613, 0.0
      %v755 = vsel %vm711, %v614, 0.0
      %v756 = vsel %vm711, %v615, 0.0
      %v757 = vsel %vm711, %v616, 0.0
      %v758 = vsel %vm711, %v617, 0.0
      %v759 = vsel %vm711, %v618, 0.0
      %v760 = vsel %vm711, %v619, 0.0
      %v761 = vsel %vm711, %v620, 0.0
      %v762 = vsel %vm711, %v621, 0.0
      %v763 = vsel %vm711, %v622, 0.0
      %v764 = vsel %vm711, %v623, 0.0
      %v765 = vsel %vm711, %v624, 0.0
      %v766 = vsel %vm711, %v625, 0.0
      %v767 = vsel %vm711, %v626, 0.0
      %v768 = vsel %vm711, %v627, 0.0
      %v769 = vsel %vm711, %v628, 0.0
      %v770 = vmax.f32 %v693, %v714
      %v771 = vmax.f32 %v694, %v715
      %v772 = vmax.f32 %v695, %v716
      %v773 = vmax.f32 %v696, %v717
      %v774 = vmax.f32 %v697, %v719
      %v775 = vmax.f32 %v698, %v720
      %v776 = vmax.f32 %v699, %v721
      %v777 = vmax.f32 %v700, %v722
      %v778 = vmax.f32 %v701, %v724
      %v779 = vmax.f32 %v702, %v725
      %v780 = vmax.f32 %v703, %v726
      %v781 = vmax.f32 %v704, %v727
      %v782 = vmax.f32 %v705, %v729
      %v783 = vmax.f32 %v706, %v730
      %v784 = vmax.f32 %v707, %v731
      %v785 = vmax.f32 %v708, %v732
      %v802 = vcombine.high %v714, %v714
      %v803 = vcombine.high %v715, %v715
      %v804 = vcombine.high %v716, %v716
      %v805 = vcombine.high %v717, %v717
      %v806 = vcombine.high %v719, %v719
      %v807 = vcombine.high %v720, %v720
      %v808 = vcombine.high %v721, %v721
      %v809 = vcombine.high %v722, %v722
      %v810 = vcombine.high %v724, %v724
      %v811 = vcombine.high %v725, %v725
      %v812 = vcombine.high %v726, %v726
      %v813 = vcombine.high %v727, %v727
      %v814 = vcombine.high %v729, %v729
      %v815 = vcombine.high %v730, %v730
      %v816 = vcombine.high %v731, %v731
      %v817 = vcombine.high %v732, %v732
      %vm818 = vcmask 1042432
      %vm819 = vcmask 1046532
      %vm820 = vmor %vm818, %vm819
      %v821 = vrot.slane %v714, 5
      %v822 = vrot.slane %v821, 4
      %v823 = vrot.slane %v802, 5
      %v824 = vsel %vm820, %v822, %v823
      %v825 = vrot.slane %v715, 5
      %v826 = vrot.slane %v825, 4
      %v827 = vrot.slane %v803, 5
      %v828 = vsel %vm820, %v826, %v827
      %v829 = vrot.slane %v716, 5
      %v830 = vrot.slane %v829, 4
      %v831 = vrot.slane %v804, 5
      %v832 = vsel %vm820, %v830, %v831
      %v833 = vrot.slane %v717, 5
      %v834 = vrot.slane %v833, 4
      %v835 = vrot.slane %v805, 5
      %v836 = vsel %vm820, %v834, %v835
      %v837 = vrot.slane %v719, 5
      %v838 = vrot.slane %v837, 4
      %v839 = vrot.slane %v806, 5
      %v840 = vsel %vm820, %v838, %v839
      %v841 = vrot.slane %v720, 5
      %v842 = vrot.slane %v841, 4
      %v843 = vrot.slane %v807, 5
      %v844 = vsel %vm820, %v842, %v843
      %v845 = vrot.slane %v721, 5
      %v846 = vrot.slane %v845, 4
      %v847 = vrot.slane %v808, 5
      %v848 = vsel %vm820, %v846, %v847
      %v849 = vrot.slane %v722, 5
      %v850 = vrot.slane %v849, 4
      %v851 = vrot.slane %v809, 5
      %v852 = vsel %vm820, %v850, %v851
      %v853 = vrot.slane %v724, 5
      %v854 = vrot.slane %v853, 4
      %v855 = vrot.slane %v810, 5
      %v856 = vsel %vm820, %v854, %v855
      %v857 = vrot.slane %v725, 5
      %v858 = vrot.slane %v857, 4
      %v859 = vrot.slane %v811, 5
      %v860 = vsel %vm820, %v858, %v859
      %v861 = vrot.slane %v726, 5
      %v862 = vrot.slane %v861, 4
      %v863 = vrot.slane %v812, 5
      %v864 = vsel %vm820, %v862, %v863
      %v865 = vrot.slane %v727, 5
      %v866 = vrot.slane %v865, 4
      %v867 = vrot.slane %v813, 5
      %v868 = vsel %vm820, %v866, %v867
      %v869 = vrot.slane %v729, 5
      %v870 = vrot.slane %v869, 4
      %v871 = vrot.slane %v814, 5
      %v872 = vsel %vm820, %v870, %v871
      %v873 = vrot.slane %v730, 5
      %v874 = vrot.slane %v873, 4
      %v875 = vrot.slane %v815, 5
      %v876 = vsel %vm820, %v874, %v875
      %v877 = vrot.slane %v731, 5
      %v878 = vrot.slane %v877, 4
      %v879 = vrot.slane %v816, 5
      %v880 = vsel %vm820, %v878, %v879
      %v881 = vrot.slane %v732, 5
      %v882 = vrot.slane %v881, 4
      %v883 = vrot.slane %v817, 5
      %v884 = vsel %vm820, %v882, %v883
      %v901 = vmax.f32 %v770, %v824
      %v902 = vmax.f32 %v771, %v828
      %v903 = vmax.f32 %v772, %v832
      %v904 = vmax.f32 %v773, %v836
      %v905 = vmax.f32 %v774, %v840
      %v906 = vmax.f32 %v775, %v844
      %v907 = vmax.f32 %v776, %v848
      %v908 = vmax.f32 %v777, %v852
      %v909 = vmax.f32 %v778, %v856
      %v910 = vmax.f32 %v779, %v860
      %v911 = vmax.f32 %v780, %v864
      %v912 = vmax.f32 %v781, %v868
      %v913 = vmax.f32 %v782, %v872
      %v914 = vmax.f32 %v783, %v876
      %v915 = vmax.f32 %v784, %v880
      %v916 = vmax.f32 %v785, %v884
      %v917 = vmax.f32 %v901, %v715
      %v918 = vmax.f32 %v902, %v716
      %v919 = vmax.f32 %v903, %v717
      %v920 = vmax.f32 %v904, %v718
      %v921 = vmax.f32 %v905, %v720
      %v922 = vmax.f32 %v906, %v721
      %v923 = vmax.f32 %v907, %v722
      %v924 = vmax.f32 %v908, %v723
      %v925 = vmax.f32 %v909, %v725
      %v926 = vmax.f32 %v910, %v726
      %v927 = vmax.f32 %v911, %v727
      %v928 = vmax.f32 %v912, %v728
      %v929 = vmax.f32 %v913, %v730
      %v930 = vmax.f32 %v914, %v731
      %v931 = vmax.f32 %v915, %v732
      %v932 = vmax.f32 %v916, %v733
      %v937 = vcombine.high %v718, %v718
      %v938 = vcombine.high %v723, %v723
      %v939 = vcombine.high %v728, %v728
      %v940 = vcombine.high %v733, %v733
      %v941 = vrot.slane %v718, 5
      %v942 = vrot.slane %v941, 4
      %v943 = vrot.slane %v937, 5
      %v944 = vsel %vm820, %v942, %v943
      %v945 = vrot.slane %v723, 5
      %v946 = vrot.slane %v945, 4
      %v947 = vrot.slane %v938, 5
      %v948 = vsel %vm820, %v946, %v947
      %v949 = vrot.slane %v728, 5
      %v950 = vrot.slane %v949, 4
      %v951 = vrot.slane %v939, 5
      %v952 = vsel %vm820, %v950, %v951
      %v953 = vrot.slane %v733, 5
      %v954 = vrot.slane %v953, 4
      %v955 = vrot.slane %v940, 5
      %v956 = vsel %vm820, %v954, %v955
      %v961 = vmax.f32 %v917, %v828
      %v962 = vmax.f32 %v918, %v832
      %v963 = vmax.f32 %v919, %v836
      %v964 = vmax.f32 %v920, %v944
      %v965 = vmax.f32 %v921, %v844
      %v966 = vmax.f32 %v922, %v848
      %v967 = vmax.f32 %v923, %v852
      %v968 = vmax.f32 %v924, %v948
      %v969 = vmax.f32 %v925, %v860
      %v970 = vmax.f32 %v926, %v864
      %v971 = vmax.f32 %v927, %v868
      %v972 = vmax.f32 %v928, %v952
      %v973 = vmax.f32 %v929, %v876
      %v974 = vmax.f32 %v930, %v880
      %v975 = vmax.f32 %v931, %v884
      %v976 = vmax.f32 %v932, %v956
      %v977 = vmax.f32 %v961, %v734
      %v978 = vmax.f32 %v962, %v735
      %v979 = vmax.f32 %v963, %v736
      %v980 = vmax.f32 %v964, %v737
      %v981 = vmax.f32 %v965, %v739
      %v982 = vmax.f32 %v966, %v740
      %v983 = vmax.f32 %v967, %v741
      %v984 = vmax.f32 %v968, %v742
      %v985 = vmax.f32 %v969, %v744
      %v986 = vmax.f32 %v970, %v745
      %v987 = vmax.f32 %v971, %v746
      %v988 = vmax.f32 %v972, %v747
      %v989 = vmax.f32 %v973, %v749
      %v990 = vmax.f32 %v974, %v750
      %v991 = vmax.f32 %v975, %v751
      %v992 = vmax.f32 %v976, %v752
      %v993 = vmax.f32 %v977, %v735
      %v994 = vmax.f32 %v978, %v736
      %v995 = vmax.f32 %v979, %v737
      %v996 = vmax.f32 %v980, %v738
      %v997 = vmax.f32 %v981, %v740
      %v998 = vmax.f32 %v982, %v741
      %v999 = vmax.f32 %v983, %v742
      %v1000 = vmax.f32 %v984, %v743
      %v1001 = vmax.f32 %v985, %v745
      %v1002 = vmax.f32 %v986, %v746
      %v1003 = vmax.f32 %v987, %v747
      %v1004 = vmax.f32 %v988, %v748
      %v1005 = vmax.f32 %v989, %v750
      %v1006 = vmax.f32 %v990, %v751
      %v1007 = vmax.f32 %v991, %v752
      %v1008 = vmax.f32 %v992, %v753
      %v1009 = vmax.f32 %v993, %v754
      %v1010 = vmax.f32 %v994, %v755
      %v1011 = vmax.f32 %v995, %v756
      %v1012 = vmax.f32 %v996, %v757
      %v1013 = vmax.f32 %v997, %v758
      %v1014 = vmax.f32 %v998, %v759
      %v1015 = vmax.f32 %v999, %v760
      %v1016 = vmax.f32 %v1000, %v761
      %v1017 = vmax.f32 %v1001, %v762
      %v1018 = vmax.f32 %v1002, %v763
      %v1019 = vmax.f32 %v1003, %v764
      %v1020 = vmax.f32 %v1004, %v765
      %v1021 = vmax.f32 %v1005, %v766
      %v1022 = vmax.f32 %v1006, %v767
      %v1023 = vmax.f32 %v1007, %v768
      %v1024 = vmax.f32 %v1008, %v769
      %v1041 = vcombine.high %v754, %v754
      %v1042 = vcombine.high %v755, %v755
      %v1043 = vcombine.high %v756, %v756
      %v1044 = vcombine.high %v757, %v757
      %v1045 = vcombine.high %v758, %v758
      %v1046 = vcombine.high %v759, %v759
      %v1047 = vcombine.high %v760, %v760
      %v1048 = vcombine.high %v761, %v761
      %v1049 = vcombine.high %v762, %v762
      %v1050 = vcombine.high %v763, %v763
      %v1051 = vcombine.high %v764, %v764
      %v1052 = vcombine.high %v765, %v765
      %v1053 = vcombine.high %v766, %v766
      %v1054 = vcombine.high %v767, %v767
      %v1055 = vcombine.high %v768, %v768
      %v1056 = vcombine.high %v769, %v769
      %v1057 = vrot.slane %v754, 5
      %v1058 = vrot.slane %v1057, 4
      %v1059 = vrot.slane %v1041, 5
      %v1060 = vsel %vm820, %v1058, %v1059
      %v1061 = vrot.slane %v755, 5
      %v1062 = vrot.slane %v1061, 4
      %v1063 = vrot.slane %v1042, 5
      %v1064 = vsel %vm820, %v1062, %v1063
      %v1065 = vrot.slane %v756, 5
      %v1066 = vrot.slane %v1065, 4
      %v1067 = vrot.slane %v1043, 5
      %v1068 = vsel %vm820, %v1066, %v1067
      %v1069 = vrot.slane %v757, 5
      %v1070 = vrot.slane %v1069, 4
      %v1071 = vrot.slane %v1044, 5
      %v1072 = vsel %vm820, %v1070, %v1071
      %v1073 = vrot.slane %v758, 5
      %v1074 = vrot.slane %v1073, 4
      %v1075 = vrot.slane %v1045, 5
      %v1076 = vsel %vm820, %v1074, %v1075
      %v1077 = vrot.slane %v759, 5
      %v1078 = vrot.slane %v1077, 4
      %v1079 = vrot.slane %v1046, 5
      %v1080 = vsel %vm820, %v1078, %v1079
      %v1081 = vrot.slane %v760, 5
      %v1082 = vrot.slane %v1081, 4
      %v1083 = vrot.slane %v1047, 5
      %v1084 = vsel %vm820, %v1082, %v1083
      %v1085 = vrot.slane %v761, 5
      %v1086 = vrot.slane %v1085, 4
      %v1087 = vrot.slane %v1048, 5
      %v1088 = vsel %vm820, %v1086, %v1087
      %v1089 = vrot.slane %v762, 5
      %v1090 = vrot.slane %v1089, 4
      %v1091 = vrot.slane %v1049, 5
      %v1092 = vsel %vm820, %v1090, %v1091
      %v1093 = vrot.slane %v763, 5
      %v1094 = vrot.slane %v1093, 4
      %v1095 = vrot.slane %v1050, 5
      %v1096 = vsel %vm820, %v1094, %v1095
      %v1097 = vrot.slane %v764, 5
      %v1098 = vrot.slane %v1097, 4
      %v1099 = vrot.slane %v1051, 5
      %v1100 = vsel %vm820, %v1098, %v1099
      %v1101 = vrot.slane %v765, 5
      %v1102 = vrot.slane %v1101, 4
      %v1103 = vrot.slane %v1052, 5
      %v1104 = vsel %vm820, %v1102, %v1103
      %v1105 = vrot.slane %v766, 5
      %v1106 = vrot.slane %v1105, 4
      %v1107 = vrot.slane %v1053, 5
      %v1108 = vsel %vm820, %v1106, %v1107
      %v1109 = vrot.slane %v767, 5
      %v1110 = vrot.slane %v1109, 4
      %v1111 = vrot.slane %v1054, 5
      %v1112 = vsel %vm820, %v1110, %v1111
      %v1113 = vrot.slane %v768, 5
      %v1114 = vrot.slane %v1113, 4
      %v1115 = vrot.slane %v1055, 5
      %v1116 = vsel %vm820, %v1114, %v1115
      %v1117 = vrot.slane %v769, 5
      %v1118 = vrot.slane %v1117, 4
      %v1119 = vrot.slane %v1056, 5
      %v1120 = vsel %vm820, %v1118, %v1119
      %v1137 = vmax.f32 %v1009, %v1060
      %v1138 = vmax.f32 %v1010, %v1064
      %v1139 = vmax.f32 %v1011, %v1068
      %v1140 = vmax.f32 %v1012, %v1072
      %v1141 = vmax.f32 %v1013, %v1076
      %v1142 = vmax.f32 %v1014, %v1080
      %v1143 = vmax.f32 %v1015, %v1084
      %v1144 = vmax.f32 %v1016, %v1088
      %v1145 = vmax.f32 %v1017, %v1092
      %v1146 = vmax.f32 %v1018, %v1096
      %v1147 = vmax.f32 %v1019, %v1100
      %v1148 = vmax.f32 %v1020, %v1104
      %v1149 = vmax.f32 %v1021, %v1108
      %v1150 = vmax.f32 %v1022, %v1112
      %v1151 = vmax.f32 %v1023, %v1116
      %v1152 = vmax.f32 %v1024, %v1120
      %v1153 = vpack.c.bf16 %v1137, %v1137
      %v1154 = vpack.c.bf16 %v1138, %v1138
      %v1155 = vpack.c.bf16 %v1139, %v1139
      %v1156 = vpack.c.bf16 %v1140, %v1140
      %v1157 = vpack.c.bf16 %v1141, %v1141
      %v1158 = vpack.c.bf16 %v1142, %v1142
      %v1159 = vpack.c.bf16 %v1143, %v1143
      %v1160 = vpack.c.bf16 %v1144, %v1144
      %v1161 = vpack.c.bf16 %v1145, %v1145
      %v1162 = vpack.c.bf16 %v1146, %v1146
      %v1163 = vpack.c.bf16 %v1147, %v1147
      %v1164 = vpack.c.bf16 %v1148, %v1148
      %v1165 = vpack.c.bf16 %v1149, %v1149
      %v1166 = vpack.c.bf16 %v1150, %v1150
      %v1167 = vpack.c.bf16 %v1151, %v1151
      %v1168 = vpack.c.bf16 %v1152, %v1152
      %vm1169 = vcmask 58368
      %1170 = vst.msk [vmem:[%s333] sm:$0x3] %vm1169, %v1153
      %1171 = vst.msk [vmem:[%s333 + $0x2] sm:$0x3] %vm1169, %v1154
      %1172 = vst.msk [vmem:[%s333 + $0x4] sm:$0x3] %vm1169, %v1155
      %1173 = vst.msk [vmem:[%s333 + $0x6] sm:$0x3] %vm1169, %v1156
      %1174 = vst.msk [vmem:[%s333 + $0x8] sm:$0x3] %vm1169, %v1157
      %1175 = vst.msk [vmem:[%s333 + $0xa] sm:$0x3] %vm1169, %v1158
      %1176 = vst.msk [vmem:[%s333 + $0xc] sm:$0x3] %vm1169, %v1159
      %1177 = vst.msk [vmem:[%s333 + $0xe] sm:$0x3] %vm1169, %v1160
      %1178 = vst.msk [vmem:[%s333 + $0x10] sm:$0x3] %vm1169, %v1161
      %1179 = vst.msk [vmem:[%s333 + $0x12] sm:$0x3] %vm1169, %v1162
      %1180 = vst.msk [vmem:[%s333 + $0x14] sm:$0x3] %vm1169, %v1163
      %1181 = vst.msk [vmem:[%s333 + $0x16] sm:$0x3] %vm1169, %v1164
      %1182 = vst.msk [vmem:[%s333 + $0x18] sm:$0x3] %vm1169, %v1165
      %1183 = vst.msk [vmem:[%s333 + $0x1a] sm:$0x3] %vm1169, %v1166
      %1184 = vst.msk [vmem:[%s333 + $0x1c] sm:$0x3] %vm1169, %v1167
      %1185 = vst.msk [vmem:[%s333 + $0x1e] sm:$0x3] %vm1169, %v1168
      %s1186 = smul.u32 4, %s17
      %p1187 = scmp.lt.s32.totalorder %s1186, 7
      %s1188 = scalar_select %p1187, %s1186, 7
      %s1189 = smul.addr %s1188, 4
      %s1190 = smul.addr %s1189, 2
      %s1191 = scalar_lea.vmem %s6, %s1190
      // Predicated region
      $region45: #{frontend_forward.7} parent=43 // pred_check
        %p1192 = pneg %p181
      $region46: #{frontend_forward.7} parent=43 // pred_check_branch
        %1194 = sbr.rel (%p1192) target = $region48
      $region47: #{frontend_forward.7} parent=43 // pred_region
        %s1195 = smul.u32 4, %s17
      $region48: #{frontend_forward.7} parent=43 // pred_fallthru
        _
    $region44: #{frontend_forward.7} parent=5 // pred_fallthru
      _
    %p1196 = scmp.le.s32.totalorder 2, %s12
    // Predicated region
    $region49: #{frontend_forward.7} parent=5 // pred_check
      %p1197 = pneg %p1196
    $region50: #{frontend_forward.7} parent=5 // pred_check_branch
      %1199 = sbr.rel (%p1197) target = $region52
    $region51: #{frontend_forward.7} parent=5 // pred_region
      %s1200 = ssub.s32 %s12, 2
      // Predicated region
      $region53: #{frontend_forward.7} parent=51 // pred_check
        %p1201 = pneg %p187
      $region54: #{frontend_forward.7} parent=51 // pred_check_branch
        %1203 = sbr.rel (%p1201) target = $region56
      $region55: #{frontend_forward.7} parent=51 // pred_region
        %s1204 = smul.u32 4, %s18
        %p1205 = scmp.lt.s32.totalorder %s1204, 7
        %s1206 = scalar_select %p1205, %s1204, 7
        %s1207 = smul.addr %s1206, 4
        %s1208 = smul.addr %s1207, 2
        %s1209 = scalar_lea.vmem %s6, %s1208
      $region56: #{frontend_forward.7} parent=51 // pred_fallthru
        _
    $region52: #{frontend_forward.7} parent=5 // pred_fallthru
      _
  $region6: #{frontend_forward.7} parent=0 // loop_footer
    %s16 = sadd.s32 1, %s12
  $region7: #{frontend_forward.7} parent=0 // loop_footer_branch
    %11 = sbr.rel target = $region3
  $region8: #{frontend_forward.7} parent=0 // loop_exit
    _

// kernel: frontend_forward.9
$region0: #{frontend_forward.9}
  #allocation0 [shape = 'u32[]', space=smem, size = 0x4, offset = 0x4, fixed_abs, tag = 'smem constant byte address 0x4 - core index']
  #allocation1 [shape = 'u32[144,128]{1,0:T(1,128)}', space=vmem, size = 0x12000, scoped, tag = 'internal scratch']
  %s0 = inlined_call_operand.vmem [shape: bf16[8,36,8], index: 0, kind: input, shape index: {}]
  %s1 = inlined_call_operand.vmem [shape: f32[1,1,8], index: 1, kind: input, shape index: {}]
  %s2 = inlined_call_operand.vmem [shape: f32[1,1,8], index: 2, kind: input, shape index: {}]
  %s3 = inlined_call_operand.vmem [shape: f32[1,36,1], index: 3, kind: input, shape index: {}]
  %s4 = inlined_call_operand.vmem [shape: bf16[8,36,8], index: 4, kind: output, shape index: {}]
  %s5 = sld [smem:[#allocation0]]
  $region49: #{frontend_forward.9} parent=0
    _
  %s7 = ssub.s32 1, %s5
  %s8 = scalar_select 0, %s7, %s5
  loop: start=0, step=1, limit=4
  $region2: #{frontend_forward.9} parent=0 // loop_pre_header
    _
  $region3: #{frontend_forward.9} parent=0 // loop_header
    %s10 = sphi 0, %s14
    %p11 = scmp.ge.s32.totalorder %s10, 4
    %s20 = sphi 0, %s22
    %s23 = sphi 0, %s20
    %s24 = sphi 0, %s23
    %s40 = sphi 0, %s24
    %s44 = sphi 0, %s44
    %s46 = sphi 0, %s44
    %s47 = sphi 0, %s46
    %s61 = sphi 0, %s47
    %s65 = sphi 0, %s65
    %s67 = sphi 0, %s65
    %s68 = sphi 0, %s67
    %s82 = sphi 0, %s68
    %s86 = sphi 0, %s86
    %s88 = sphi 0, %s86
    %s89 = sphi 0, %s88
    %s103 = sphi 0, %s89
    %s109 = sphi 0, %s111
    %s112 = sphi 0, %s109
    %s113 = sphi 0, %s112
    %s129 = sphi 0, %s113
  $region4: #{frontend_forward.9} parent=0 // loop_header_branch
    %13 = sbr.rel (%p11) target = $region8
  $region5: #{frontend_forward.9} parent=0 // loop_body
    %s15 = ssub.s32 %s10, 1
    %s16 = ssub.s32 %s10, 2
    %s17 = sadd.s32 %s10, 1
    %s18 = ssub.s32 %s10, %s17
    %p19 = scmp.eq.s32.totalorder %s18, 0
    %s21 = sadd.s32 %s20, 1
    %s22 = scalar_select %p19, %s20, %s21
    %p25 = pneg %p19
    %p26 = scmp.eq.s32.totalorder %s10, 1
    %p27 = por %p25, %p26
    %p28 = scmp.ne.s32.totalorder %s20, %s23
    %p29 = scmp.eq.s32.totalorder %s10, 0
    %p30 = por %p28, %p29
    %p31 = scmp.ne.s32.totalorder %s20, %s23
    %p32 = scmp.eq.s32.totalorder %s15, 1
    %p33 = por %p31, %p32
    %p34 = scmp.ne.s32.totalorder %s23, %s24
    %p35 = scmp.eq.s32.totalorder %s15, 0
    %p36 = por %p34, %p35
    %p37 = scmp.ne.s32.totalorder %s23, %s24
    %p38 = scmp.eq.s32.totalorder %s16, 1
    %p39 = por %p37, %p38
    %p41 = scmp.ne.s32.totalorder %s24, %s40
    %p42 = scmp.eq.s32.totalorder %s16, 0
    %p43 = por %p41, %p42
    %s45 = sadd.s32 %s44, 1
    %p48 = scmp.eq.s32.totalorder %s10, 1
    %p49 = scmp.ne.s32.totalorder %s44, %s46
    %p50 = scmp.eq.s32.totalorder %s10, 0
    %p51 = por %p49, %p50
    %p52 = scmp.ne.s32.totalorder %s44, %s46
    %p53 = scmp.eq.s32.totalorder %s15, 1
    %p54 = por %p52, %p53
    %p55 = scmp.ne.s32.totalorder %s46, %s47
    %p56 = scmp.eq.s32.totalorder %s15, 0
    %p57 = por %p55, %p56
    %p58 = scmp.ne.s32.totalorder %s46, %s47
    %p59 = scmp.eq.s32.totalorder %s16, 1
    %p60 = por %p58, %p59
    %p62 = scmp.ne.s32.totalorder %s47, %s61
    %p63 = scmp.eq.s32.totalorder %s16, 0
    %p64 = por %p62, %p63
    %s66 = sadd.s32 %s65, 1
    %p69 = scmp.eq.s32.totalorder %s10, 1
    %p70 = scmp.ne.s32.totalorder %s65, %s67
    %p71 = scmp.eq.s32.totalorder %s10, 0
    %p72 = por %p70, %p71
    %p73 = scmp.ne.s32.totalorder %s65, %s67
    %p74 = scmp.eq.s32.totalorder %s15, 1
    %p75 = por %p73, %p74
    %p76 = scmp.ne.s32.totalorder %s67, %s68
    %p77 = scmp.eq.s32.totalorder %s15, 0
    %p78 = por %p76, %p77
    %p79 = scmp.ne.s32.totalorder %s67, %s68
    %p80 = scmp.eq.s32.totalorder %s16, 1
    %p81 = por %p79, %p80
    %p83 = scmp.ne.s32.totalorder %s68, %s82
    %p84 = scmp.eq.s32.totalorder %s16, 0
    %p85 = por %p83, %p84
    %s87 = sadd.s32 %s86, 1
    %p90 = scmp.eq.s32.totalorder %s10, 1
    %p91 = scmp.ne.s32.totalorder %s86, %s88
    %p92 = scmp.eq.s32.totalorder %s10, 0
    %p93 = por %p91, %p92
    %p94 = scmp.ne.s32.totalorder %s86, %s88
    %p95 = scmp.eq.s32.totalorder %s15, 1
    %p96 = por %p94, %p95
    %p97 = scmp.ne.s32.totalorder %s88, %s89
    %p98 = scmp.eq.s32.totalorder %s15, 0
    %p99 = por %p97, %p98
    %p100 = scmp.ne.s32.totalorder %s88, %s89
    %p101 = scmp.eq.s32.totalorder %s16, 1
    %p102 = por %p100, %p101
    %p104 = scmp.ne.s32.totalorder %s89, %s103
    %p105 = scmp.eq.s32.totalorder %s16, 0
    %p106 = por %p104, %p105
    %s107 = ssub.s32 %s10, %s17
    %p108 = scmp.eq.s32.totalorder %s107, 0
    %s110 = sadd.s32 %s109, 1
    %s111 = scalar_select %p108, %s109, %s110
    %p114 = pneg %p108
    %p115 = scmp.eq.s32.totalorder %s10, 1
    %p116 = por %p114, %p115
    %p117 = scmp.ne.s32.totalorder %s109, %s112
    %p118 = scmp.eq.s32.totalorder %s10, 0
    %p119 = por %p117, %p118
    %p120 = scmp.ne.s32.totalorder %s109, %s112
    %p121 = scmp.eq.s32.totalorder %s15, 1
    %p122 = por %p120, %p121
    %p123 = scmp.ne.s32.totalorder %s112, %s113
    %p124 = scmp.eq.s32.totalorder %s15, 0
    %p125 = por %p123, %p124
    %p126 = scmp.ne.s32.totalorder %s112, %s113
    %p127 = scmp.eq.s32.totalorder %s16, 1
    %p128 = por %p126, %p127
    %p130 = scmp.ne.s32.totalorder %s113, %s129
    %p131 = scmp.eq.s32.totalorder %s16, 0
    %p132 = por %p130, %p131
    %p133 = scmp.le.s32.totalorder 1, %s10
    %p134 = scmp.lt.s32.totalorder %s10, 3
    %p135 = pnand %p133, %p134
    %p136 = pneg %p135
    // Predicated region
    $region9: #{frontend_forward.9} parent=5 // pred_check
      _
    $region10: #{frontend_forward.9} parent=5 // pred_check_branch
      %138 = sbr.rel (%p135) target = $region12
    $region11: #{frontend_forward.9} parent=5 // pred_region
      %s139 = ssub.s32 %s10, 1
      // Predicated region
      $region13: #{frontend_forward.9} parent=11 // pred_check
        %p140 = pneg %p57
      $region14: #{frontend_forward.9} parent=11 // pred_check_branch
        %142 = sbr.rel (%p140) target = $region16
      $region15: #{frontend_forward.9} parent=11 // pred_region
        _
      $region16: #{frontend_forward.9} parent=11 // pred_fallthru
        _
      // Predicated region
      $region17: #{frontend_forward.9} parent=11 // pred_check
        %p143 = pneg %p78
      $region18: #{frontend_forward.9} parent=11 // pred_check_branch
        %145 = sbr.rel (%p143) target = $region20
      $region19: #{frontend_forward.9} parent=11 // pred_region
        _
      $region20: #{frontend_forward.9} parent=11 // pred_fallthru
        _
      // Predicated region
      $region21: #{frontend_forward.9} parent=11 // pred_check
        %p146 = pneg %p99
      $region22: #{frontend_forward.9} parent=11 // pred_check_branch
        %148 = sbr.rel (%p146) target = $region24
      $region23: #{frontend_forward.9} parent=11 // pred_region
        _
      $region24: #{frontend_forward.9} parent=11 // pred_fallthru
        _
    $region12: #{frontend_forward.9} parent=5 // pred_fallthru
      _
    %p149 = scmp.lt.s32.totalorder %s10, 2
    // Predicated region
    $region25: #{frontend_forward.9} parent=5 // pred_check
      %p150 = pneg %p149
    $region26: #{frontend_forward.9} parent=5 // pred_check_branch
      %152 = sbr.rel (%p150) target = $region28
    $region27: #{frontend_forward.9} parent=5 // pred_region
      // Predicated region
      $region29: #{frontend_forward.9} parent=27 // pred_check
        %p153 = pneg %p30
      $region30: #{frontend_forward.9} parent=27 // pred_check_branch
        %155 = sbr.rel (%p153) target = $region32
      $region31: #{frontend_forward.9} parent=27 // pred_region
        %s156 = smul.u32 4, %s10
        %p157 = scmp.lt.s32.totalorder %s156, 7
        %s158 = scalar_select %p157, %s156, 7
        %s159 = smul.addr %s158, 5
        %s160 = smul.addr %s159, 4
        %s161 = scalar_lea.vmem %s0, %s160
        %s162 = smul.u32 4, %s10
      $region32: #{frontend_forward.9} parent=27 // pred_fallthru
        _
    $region28: #{frontend_forward.9} parent=5 // pred_fallthru
      _
    %p163 = scmp.le.s32.totalorder 1, %s10
    %p164 = scmp.lt.s32.totalorder %s10, 3
    %p165 = pnand %p163, %p164
    %p166 = pneg %p165
    // Predicated region
    $region33: #{frontend_forward.9} parent=5 // pred_check
      _
    $region34: #{frontend_forward.9} parent=5 // pred_check_branch
      %168 = sbr.rel (%p165) target = $region36
    $region35: #{frontend_forward.9} parent=5 // pred_region
      %s169 = ssub.s32 %s10, 1
      %s170 = smul.u32 4, %s15
      %p171 = scmp.lt.s32.totalorder %s170, 7
      %s172 = scalar_select %p171, %s170, 7
      %s173 = smul.addr %s172, 5
      %s174 = smul.addr %s173, 4
      %s175 = scalar_lea.vmem %s0, %s174
      %p176 = pneg %p36
      %p177 = pneg %p33
      %p178 = pneg %p57
      %p179 = pneg %p54
      %p180 = pneg %p78
      %p181 = pneg %p75
      %p182 = pneg %p99
      %p183 = pneg %p96
      %p184 = pneg %p125
      %p185 = pneg %p122
      %s186 = smul.u32 4, %s15
      %p187 = scmp.lt.s32.totalorder %s186, 7
      %s188 = scalar_select %p187, %s186, 7
      %s189 = smul.addr %s188, 5
      %s190 = smul.addr %s189, 4
      %s191 = scalar_lea.vmem %s4, %s190
      %s192 = smul.u32 4, %s15
      %p193 = scmp.lt.s32.totalorder %s192, 7
      %s194 = scalar_select %p193, %s192, 7
      %s195 = smul.addr %s194, 5
      %s196 = smul.addr %s195, 4
      %s197 = scalar_lea.vmem %s0, %s196
      %s198 = smul.u32 4, %s15
      %s199 = smul.u32 4, %s15
      %p200 = scmp.lt.s32.totalorder %s199, 7
      %s201 = scalar_select %p200, %s199, 7
      %s202 = smul.addr %s201, 5
      %s203 = smul.addr %s202, 4
      %s204 = scalar_lea.vmem %s4, %s203
      %s205 = smul.u32 4, %s15
      %v206 = vld [vmem:[%s197] sm:$0xf]
      %v207 = vld [vmem:[%s197 + $0x4] sm:$0xf]
      %v208 = vld [vmem:[%s197 + $0x8] sm:$0xf]
      %v209 = vld [vmem:[%s197 + $0xc] sm:$0xf]
      %v210 = vld [vmem:[%s197 + $0x10] sm:$0x3]
      %v211 = vld [vmem:[%s197 + $0x14] sm:$0xf]
      %v212 = vld [vmem:[%s197 + $0x18] sm:$0xf]
      %v213 = vld [vmem:[%s197 + $0x1c] sm:$0xf]
      %v214 = vld [vmem:[%s197 + $0x20] sm:$0xf]
      %v215 = vld [vmem:[%s197 + $0x24] sm:$0x3]
      %v216 = vld [vmem:[%s197 + $0x28] sm:$0xf]
      %v217 = vld [vmem:[%s197 + $0x2c] sm:$0xf]
      %v218 = vld [vmem:[%s197 + $0x30] sm:$0xf]
      %v219 = vld [vmem:[%s197 + $0x34] sm:$0xf]
      %v220 = vld [vmem:[%s197 + $0x38] sm:$0x3]
      %v221 = vld [vmem:[%s197 + $0x3c] sm:$0xf]
      %v222 = vld [vmem:[%s197 + $0x40] sm:$0xf]
      %v223 = vld [vmem:[%s197 + $0x44] sm:$0xf]
      %v224 = vld [vmem:[%s197 + $0x48] sm:$0xf]
      %v225 = vld [vmem:[%s197 + $0x4c] sm:$0x3]
      %v226 = vunpack.c.l.bf16 %v206
      %v227 = vunpack.c.l.bf16 %v207
      %v228 = vunpack.c.l.bf16 %v208
      %v229 = vunpack.c.l.bf16 %v209
      %v230 = vunpack.c.l.bf16 %v210
      %v231 = vunpack.c.l.bf16 %v211
      %v232 = vunpack.c.l.bf16 %v212
      %v233 = vunpack.c.l.bf16 %v213
      %v234 = vunpack.c.l.bf16 %v214
      %v235 = vunpack.c.l.bf16 %v215
      %v236 = vunpack.c.l.bf16 %v216
      %v237 = vunpack.c.l.bf16 %v217
      %v238 = vunpack.c.l.bf16 %v218
      %v239 = vunpack.c.l.bf16 %v219
      %v240 = vunpack.c.l.bf16 %v220
      %v241 = vunpack.c.l.bf16 %v221
      %v242 = vunpack.c.l.bf16 %v222
      %v243 = vunpack.c.l.bf16 %v223
      %v244 = vunpack.c.l.bf16 %v224
      %v245 = vunpack.c.l.bf16 %v225
      %v246 = vld [vmem:[%s1] sm:$0x1]
      %v248 = vlaneseq
      %v249 = vshrl.u32 %v248, 7
      %v250 = vsub.s32 0, %v249
      %v251 = vrot.slane %v246, %v250
      %v253 = vmul.f32 %v226, %v251
      %v254 = vmul.f32 %v227, %v251
      %v255 = vmul.f32 %v228, %v251
      %v256 = vmul.f32 %v229, %v251
      %v257 = vmul.f32 %v230, %v251
      %v258 = vmul.f32 %v231, %v251
      %v259 = vmul.f32 %v232, %v251
      %v260 = vmul.f32 %v233, %v251
      %v261 = vmul.f32 %v234, %v251
      %v262 = vmul.f32 %v235, %v251
      %v263 = vmul.f32 %v236, %v251
      %v264 = vmul.f32 %v237, %v251
      %v265 = vmul.f32 %v238, %v251
      %v266 = vmul.f32 %v239, %v251
      %v267 = vmul.f32 %v240, %v251
      %v268 = vmul.f32 %v241, %v251
      %v269 = vmul.f32 %v242, %v251
      %v270 = vmul.f32 %v243, %v251
      %v271 = vmul.f32 %v244, %v251
      %v272 = vmul.f32 %v245, %v251
      %v273 = vld [vmem:[%s2] sm:$0x1]
      %v275 = vlaneseq
      %v276 = vshrl.u32 %v275, 7
      %v277 = vsub.s32 0, %v276
      %v278 = vrot.slane %v273, %v277
      %v280 = vadd.f32 %v253, %v278
      %v281 = vadd.f32 %v254, %v278
      %v282 = vadd.f32 %v255, %v278
      %v283 = vadd.f32 %v256, %v278
      %v284 = vadd.f32 %v257, %v278
      %v285 = vadd.f32 %v258, %v278
      %v286 = vadd.f32 %v259, %v278
      %v287 = vadd.f32 %v260, %v278
      %v288 = vadd.f32 %v261, %v278
      %v289 = vadd.f32 %v262, %v278
      %v290 = vadd.f32 %v263, %v278
      %v291 = vadd.f32 %v264, %v278
      %v292 = vadd.f32 %v265, %v278
      %v293 = vadd.f32 %v266, %v278
      %v294 = vadd.f32 %v267, %v278
      %v295 = vadd.f32 %v268, %v278
      %v296 = vadd.f32 %v269, %v278
      %v297 = vadd.f32 %v270, %v278
      %v298 = vadd.f32 %v271, %v278
      %v299 = vadd.f32 %v272, %v278
      %v300 = vmax.f32 %v280, 0.0
      %v301 = vmax.f32 %v281, 0.0
      %v302 = vmax.f32 %v282, 0.0
      %v303 = vmax.f32 %v283, 0.0
      %v304 = vmax.f32 %v284, 0.0
      %v305 = vmax.f32 %v285, 0.0
      %v306 = vmax.f32 %v286, 0.0
      %v307 = vmax.f32 %v287, 0.0
      %v308 = vmax.f32 %v288, 0.0
      %v309 = vmax.f32 %v289, 0.0
      %v310 = vmax.f32 %v290, 0.0
      %v311 = vmax.f32 %v291, 0.0
      %v312 = vmax.f32 %v292, 0.0
      %v313 = vmax.f32 %v293, 0.0
      %v314 = vmax.f32 %v294, 0.0
      %v315 = vmax.f32 %v295, 0.0
      %v316 = vmax.f32 %v296, 0.0
      %v317 = vmax.f32 %v297, 0.0
      %v318 = vmax.f32 %v298, 0.0
      %v319 = vmax.f32 %v299, 0.0
      %v320 = vld [vmem:[%s3] sm:$0xff]
      %v321 = vld [vmem:[%s3 + $0x8] sm:$0xff]
      %v322 = vld [vmem:[%s3 + $0x10] sm:$0xff]
      %v323 = vld [vmem:[%s3 + $0x18] sm:$0xff]
      %v324 = vld [vmem:[%s3 + $0x20] sm:$0xf]
      %326 = vset.pattern.permute.xlu0 0
      %327 = vperm.xlu0 %326, %v320
      %v328 = vpop.permute.xlu0 %327
      %331 = vset.pattern.permute.xlu0 0
      %332 = vperm.xlu0 %331, %v321
      %v333 = vpop.permute.xlu0 %332
      %336 = vset.pattern.permute.xlu0 0
      %337 = vperm.xlu0 %336, %v322
      %v338 = vpop.permute.xlu0 %337
      %341 = vset.pattern.permute.xlu0 0
      %342 = vperm.xlu0 %341, %v323
      %v343 = vpop.permute.xlu0 %342
      %346 = vset.pattern.permute.xlu0 0
      %347 = vperm.xlu0 %346, %v324
      %v348 = vpop.permute.xlu0 %347
      %v350 = vmul.f32 %v300, %v328
      %v351 = vmul.f32 %v301, %v333
      %v352 = vmul.f32 %v302, %v338
      %v353 = vmul.f32 %v303, %v343
      %v354 = vmul.f32 %v304, %v348
      %v355 = vmul.f32 %v305, %v328
      %v356 = vmul.f32 %v306, %v333
      %v357 = vmul.f32 %v307, %v338
      %v358 = vmul.f32 %v308, %v343
      %v359 = vmul.f32 %v309, %v348
      %v360 = vmul.f32 %v310, %v328
      %v361 = vmul.f32 %v311, %v333
      %v362 = vmul.f32 %v312, %v338
      %v363 = vmul.f32 %v313, %v343
      %v364 = vmul.f32 %v314, %v348
      %v365 = vmul.f32 %v315, %v328
      %v366 = vmul.f32 %v316, %v333
      %v367 = vmul.f32 %v317, %v338
      %v368 = vmul.f32 %v318, %v343
      %v369 = vmul.f32 %v319, %v348
      %v370 = vpack.c.bf16 %v351, %v350
      %v371 = vpack.c.bf16 %v353, %v352
      %v372 = vpack.c.bf16 %v354, %v354
      %v373 = vpack.c.bf16 %v356, %v355
      %v374 = vpack.c.bf16 %v358, %v357
      %v375 = vpack.c.bf16 %v359, %v359
      %v376 = vpack.c.bf16 %v361, %v360
      %v377 = vpack.c.bf16 %v363, %v362
      %v378 = vpack.c.bf16 %v364, %v364
      %v379 = vpack.c.bf16 %v366, %v365
      %v380 = vpack.c.bf16 %v368, %v367
      %v381 = vpack.c.bf16 %v369, %v369
      %v394 = vunpack.c.l.b16 %v370
      %v395 = vunpack.c.h.b16 %v370
      %v396 = vunpack.c.l.b16 %v371
      %v397 = vunpack.c.h.b16 %v371
      %v398 = vunpack.c.l.b16 %v372
      %v399 = vunpack.c.l.b16 %v373
      %v400 = vunpack.c.h.b16 %v373
      %v401 = vunpack.c.l.b16 %v374
      %v402 = vunpack.c.h.b16 %v374
      %v403 = vunpack.c.l.b16 %v375
      %v404 = vunpack.c.l.b16 %v376
      %v405 = vunpack.c.h.b16 %v376
      %v406 = vunpack.c.l.b16 %v377
      %v407 = vunpack.c.h.b16 %v377
      %v408 = vunpack.c.l.b16 %v378
      %v409 = vunpack.c.l.b16 %v379
      %v410 = vunpack.c.h.b16 %v379
      %v411 = vunpack.c.l.b16 %v380
      %v412 = vunpack.c.h.b16 %v380
      %v413 = vunpack.c.l.b16 %v381
      %v414 = vpack.c.b16 %v394, %v394
      %v415 = vpack.c.b16 %v395, %v395
      %v416 = vpack.c.b16 %v396, %v396
      %v417 = vpack.c.b16 %v397, %v397
      %v418 = vpack.c.b16 %v398, %v398
      %v419 = vpack.c.b16 %v399, %v399
      %v420 = vpack.c.b16 %v400, %v400
      %v421 = vpack.c.b16 %v401, %v401
      %v422 = vpack.c.b16 %v402, %v402
      %v423 = vpack.c.b16 %v403, %v403
      %v424 = vpack.c.b16 %v404, %v404
      %v425 = vpack.c.b16 %v405, %v405
      %v426 = vpack.c.b16 %v406, %v406
      %v427 = vpack.c.b16 %v407, %v407
      %v428 = vpack.c.b16 %v408, %v408
      %v429 = vpack.c.b16 %v409, %v409
      %v430 = vpack.c.b16 %v410, %v410
      %v431 = vpack.c.b16 %v411, %v411
      %v432 = vpack.c.b16 %v412, %v412
      %v433 = vpack.c.b16 %v413, %v413
      %vm454 = vcmask 60416
      %455 = vst.msk [vmem:[%s204] sm:$0xf] %vm454, %v414
      %456 = vst.msk [vmem:[%s204 + $0x4] sm:$0xf] %vm454, %v415
      %457 = vst.msk [vmem:[%s204 + $0x8] sm:$0xf] %vm454, %v416
      %458 = vst.msk [vmem:[%s204 + $0xc] sm:$0xf] %vm454, %v417
      %vm459 = vcmask 58368
      %460 = vst.msk [vmem:[%s204 + $0x10] sm:$0x3] %vm459, %v418
      %461 = vst.msk [vmem:[%s204 + $0x14] sm:$0xf] %vm454, %v419
      %462 = vst.msk [vmem:[%s204 + $0x18] sm:$0xf] %vm454, %v420
      %463 = vst.msk [vmem:[%s204 + $0x1c] sm:$0xf] %vm454, %v421
      %464 = vst.msk [vmem:[%s204 + $0x20] sm:$0xf] %vm454, %v422
      %465 = vst.msk [vmem:[%s204 + $0x24] sm:$0x3] %vm459, %v423
      %466 = vst.msk [vmem:[%s204 + $0x28] sm:$0xf] %vm454, %v424
      %467 = vst.msk [vmem:[%s204 + $0x2c] sm:$0xf] %vm454, %v425
      %468 = vst.msk [vmem:[%s204 + $0x30] sm:$0xf] %vm454, %v426
      %469 = vst.msk [vmem:[%s204 + $0x34] sm:$0xf] %vm454, %v427
      %470 = vst.msk [vmem:[%s204 + $0x38] sm:$0x3] %vm459, %v428
      %471 = vst.msk [vmem:[%s204 + $0x3c] sm:$0xf] %vm454, %v429
      %472 = vst.msk [vmem:[%s204 + $0x40] sm:$0xf] %vm454, %v430
      %473 = vst.msk [vmem:[%s204 + $0x44] sm:$0xf] %vm454, %v431
      %474 = vst.msk [vmem:[%s204 + $0x48] sm:$0xf] %vm454, %v432
      %475 = vst.msk [vmem:[%s204 + $0x4c] sm:$0x3] %vm459, %v433
      %s476 = smul.u32 4, %s15
      %p477 = scmp.lt.s32.totalorder %s476, 7
      %s478 = scalar_select %p477, %s476, 7
      %s479 = smul.addr %s478, 5
      %s480 = smul.addr %s479, 4
      %s481 = scalar_lea.vmem %s4, %s480
      // Predicated region
      $region37: #{frontend_forward.9} parent=35 // pred_check
        %p482 = pneg %p122
      $region38: #{frontend_forward.9} parent=35 // pred_check_branch
        %484 = sbr.rel (%p482) target = $region40
      $region39: #{frontend_forward.9} parent=35 // pred_region
        %s485 = smul.u32 4, %s15
      $region40: #{frontend_forward.9} parent=35 // pred_fallthru
        _
    $region36: #{frontend_forward.9} parent=5 // pred_fallthru
      _
    %p486 = scmp.le.s32.totalorder 2, %s10
    // Predicated region
    $region41: #{frontend_forward.9} parent=5 // pred_check
      %p487 = pneg %p486
    $region42: #{frontend_forward.9} parent=5 // pred_check_branch
      %489 = sbr.rel (%p487) target = $region44
    $region43: #{frontend_forward.9} parent=5 // pred_region
      %s490 = ssub.s32 %s10, 2
      // Predicated region
      $region45: #{frontend_forward.9} parent=43 // pred_check
        %p491 = pneg %p128
      $region46: #{frontend_forward.9} parent=43 // pred_check_branch
        %493 = sbr.rel (%p491) target = $region48
      $region47: #{frontend_forward.9} parent=43 // pred_region
        %s494 = smul.u32 4, %s16
        %p495 = scmp.lt.s32.totalorder %s494, 7
        %s496 = scalar_select %p495, %s494, 7
        %s497 = smul.addr %s496, 5
        %s498 = smul.addr %s497, 4
        %s499 = scalar_lea.vmem %s4, %s498
      $region48: #{frontend_forward.9} parent=43 // pred_fallthru
        _
    $region44: #{frontend_forward.9} parent=5 // pred_fallthru
      _
  $region6: #{frontend_forward.9} parent=0 // loop_footer
    %s14 = sadd.s32 1, %s10
  $region7: #{frontend_forward.9} parent=0 // loop_footer_branch
    %9 = sbr.rel target = $region3
  $region8: #{frontend_forward.9} parent=0 // loop_exit
    _

// kernel: frontend_forward.11
$region0: #{frontend_forward.11}
  #allocation0 [shape = 'u32[]', space=smem, size = 0x4, offset = 0x4, fixed_abs, tag = 'smem constant byte address 0x4 - core index']
  #allocation1 [shape = 'u32[144,128]{1,0:T(1,128)}', space=vmem, size = 0x12000, scoped, tag = 'internal scratch']
  %s0 = inlined_call_operand.vmem [shape: bf16[8,36,8], index: 0, kind: input, shape index: {}]
  %s1 = inlined_call_operand.vmem [shape: bf16[8,36,8], index: 1, kind: input, shape index: {}]
  %s2 = inlined_call_operand.vmem [shape: f32[1,1,8], index: 2, kind: input, shape index: {}]
  %s3 = inlined_call_operand.vmem [shape: f32[1,1,8], index: 3, kind: input, shape index: {}]
  %s4 = inlined_call_operand.vmem [shape: f32[1,36,1], index: 4, kind: input, shape index: {}]
  %s5 = inlined_call_operand.hbm [shape: f32[8,1,8], index: 5, kind: output, shape index: {}]
  %s6 = sld [smem:[#allocation0]]
  $region53: #{frontend_forward.11} parent=0
    _
  %s8 = ssub.s32 1, %s6
  %s9 = scalar_select 0, %s8, %s6
  $region1: #{frontend_forward.11} parent=0
    #allocation2 [shape = 'u8[4096]{0}', space=vmem, size = 0x1000, scoped, tag = 'output window, operand 0']
    #allocation3 [shape = 's32[2]{0}', space=sflag, size = 0x8, scoped, tag = 'scoped memory for frontend_forward.11']
    %10 = vsyncpa [#allocation3], 0
    %s11 = scalar_lea.sflag [#allocation3], 1
    %12 = vsyncpa %s11, 0
    loop: start=0, step=1, limit=4
    $region2: #{frontend_forward.11} parent=1 // loop_pre_header
      _
    $region3: #{frontend_forward.11} parent=1 // loop_header
      %s14 = sphi 0, %s18
      %p15 = scmp.ge.s32.totalorder %s14, 4
      %s24 = sphi 0, %s26
      %s27 = sphi 0, %s24
      %s28 = sphi 0, %s27
      %s44 = sphi 0, %s28
      %s50 = sphi 0, %s52
      %s53 = sphi 0, %s50
      %s54 = sphi 0, %s53
      %s70 = sphi 0, %s54
      %s74 = sphi 0, %s74
      %s76 = sphi 0, %s74
      %s77 = sphi 0, %s76
      %s91 = sphi 0, %s77
      %s95 = sphi 0, %s95
      %s97 = sphi 0, %s95
      %s98 = sphi 0, %s97
      %s112 = sphi 0, %s98
      %s116 = sphi 0, %s116
      %s118 = sphi 0, %s116
      %s119 = sphi 0, %s118
      %s133 = sphi 0, %s119
      %s139 = sphi 0, %s141
      %s142 = sphi 0, %s139
      %s143 = sphi 0, %s142
      %s159 = sphi 0, %s143
    $region4: #{frontend_forward.11} parent=1 // loop_header_branch
      %17 = sbr.rel (%p15) target = $region8
    $region5: #{frontend_forward.11} parent=1 // loop_body
      %s19 = ssub.s32 %s14, 1
      %s20 = ssub.s32 %s14, 2
      %s21 = sadd.s32 %s14, 1
      %s22 = ssub.s32 %s14, %s21
      %p23 = scmp.eq.s32.totalorder %s22, 0
      %s25 = sadd.s32 %s24, 1
      %s26 = scalar_select %p23, %s24, %s25
      %p29 = pneg %p23
      %p30 = scmp.eq.s32.totalorder %s14, 1
      %p31 = por %p29, %p30
      %p32 = scmp.ne.s32.totalorder %s24, %s27
      %p33 = scmp.eq.s32.totalorder %s14, 0
      %p34 = por %p32, %p33
      %p35 = scmp.ne.s32.totalorder %s24, %s27
      %p36 = scmp.eq.s32.totalorder %s19, 1
      %p37 = por %p35, %p36
      %p38 = scmp.ne.s32.totalorder %s27, %s28
      %p39 = scmp.eq.s32.totalorder %s19, 0
      %p40 = por %p38, %p39
      %p41 = scmp.ne.s32.totalorder %s27, %s28
      %p42 = scmp.eq.s32.totalorder %s20, 1
      %p43 = por %p41, %p42
      %p45 = scmp.ne.s32.totalorder %s28, %s44
      %p46 = scmp.eq.s32.totalorder %s20, 0
      %p47 = por %p45, %p46
      %s48 = ssub.s32 %s14, %s21
      %p49 = scmp.eq.s32.totalorder %s48, 0
      %s51 = sadd.s32 %s50, 1
      %s52 = scalar_select %p49, %s50, %s51
      %p55 = pneg %p49
      %p56 = scmp.eq.s32.totalorder %s14, 1
      %p57 = por %p55, %p56
      %p58 = scmp.ne.s32.totalorder %s50, %s53
      %p59 = scmp.eq.s32.totalorder %s14, 0
      %p60 = por %p58, %p59
      %p61 = scmp.ne.s32.totalorder %s50, %s53
      %p62 = scmp.eq.s32.totalorder %s19, 1
      %p63 = por %p61, %p62
      %p64 = scmp.ne.s32.totalorder %s53, %s54
      %p65 = scmp.eq.s32.totalorder %s19, 0
      %p66 = por %p64, %p65
      %p67 = scmp.ne.s32.totalorder %s53, %s54
      %p68 = scmp.eq.s32.totalorder %s20, 1
      %p69 = por %p67, %p68
      %p71 = scmp.ne.s32.totalorder %s54, %s70
      %p72 = scmp.eq.s32.totalorder %s20, 0
      %p73 = por %p71, %p72
      %s75 = sadd.s32 %s74, 1
      %p78 = scmp.eq.s32.totalorder %s14, 1
      %p79 = scmp.ne.s32.totalorder %s74, %s76
      %p80 = scmp.eq.s32.totalorder %s14, 0
      %p81 = por %p79, %p80
      %p82 = scmp.ne.s32.totalorder %s74, %s76
      %p83 = scmp.eq.s32.totalorder %s19, 1
      %p84 = por %p82, %p83
      %p85 = scmp.ne.s32.totalorder %s76, %s77
      %p86 = scmp.eq.s32.totalorder %s19, 0
      %p87 = por %p85, %p86
      %p88 = scmp.ne.s32.totalorder %s76, %s77
      %p89 = scmp.eq.s32.totalorder %s20, 1
      %p90 = por %p88, %p89
      %p92 = scmp.ne.s32.totalorder %s77, %s91
      %p93 = scmp.eq.s32.totalorder %s20, 0
      %p94 = por %p92, %p93
      %s96 = sadd.s32 %s95, 1
      %p99 = scmp.eq.s32.totalorder %s14, 1
      %p100 = scmp.ne.s32.totalorder %s95, %s97
      %p101 = scmp.eq.s32.totalorder %s14, 0
      %p102 = por %p100, %p101
      %p103 = scmp.ne.s32.totalorder %s95, %s97
      %p104 = scmp.eq.s32.totalorder %s19, 1
      %p105 = por %p103, %p104
      %p106 = scmp.ne.s32.totalorder %s97, %s98
      %p107 = scmp.eq.s32.totalorder %s19, 0
      %p108 = por %p106, %p107
      %p109 = scmp.ne.s32.totalorder %s97, %s98
      %p110 = scmp.eq.s32.totalorder %s20, 1
      %p111 = por %p109, %p110
      %p113 = scmp.ne.s32.totalorder %s98, %s112
      %p114 = scmp.eq.s32.totalorder %s20, 0
      %p115 = por %p113, %p114
      %s117 = sadd.s32 %s116, 1
      %p120 = scmp.eq.s32.totalorder %s14, 1
      %p121 = scmp.ne.s32.totalorder %s116, %s118
      %p122 = scmp.eq.s32.totalorder %s14, 0
      %p123 = por %p121, %p122
      %p124 = scmp.ne.s32.totalorder %s116, %s118
      %p125 = scmp.eq.s32.totalorder %s19, 1
      %p126 = por %p124, %p125
      %p127 = scmp.ne.s32.totalorder %s118, %s119
      %p128 = scmp.eq.s32.totalorder %s19, 0
      %p129 = por %p127, %p128
      %p130 = scmp.ne.s32.totalorder %s118, %s119
      %p131 = scmp.eq.s32.totalorder %s20, 1
      %p132 = por %p130, %p131
      %p134 = scmp.ne.s32.totalorder %s119, %s133
      %p135 = scmp.eq.s32.totalorder %s20, 0
      %p136 = por %p134, %p135
      %s137 = ssub.s32 %s14, %s21
      %p138 = scmp.eq.s32.totalorder %s137, 0
      %s140 = sadd.s32 %s139, 1
      %s141 = scalar_select %p138, %s139, %s140
      %p144 = pneg %p138
      %p145 = scmp.eq.s32.totalorder %s14, 1
      %p146 = por %p144, %p145
      %p147 = scmp.ne.s32.totalorder %s139, %s142
      %p148 = scmp.eq.s32.totalorder %s14, 0
      %p149 = por %p147, %p148
      %p150 = scmp.ne.s32.totalorder %s139, %s142
      %p151 = scmp.eq.s32.totalorder %s19, 1
      %p152 = por %p150, %p151
      %p153 = scmp.ne.s32.totalorder %s142, %s143
      %p154 = scmp.eq.s32.totalorder %s19, 0
      %p155 = por %p153, %p154
      %p156 = scmp.ne.s32.totalorder %s142, %s143
      %p157 = scmp.eq.s32.totalorder %s20, 1
      %p158 = por %p156, %p157
      %p160 = scmp.ne.s32.totalorder %s143, %s159
      %p161 = scmp.eq.s32.totalorder %s20, 0
      %p162 = por %p160, %p161
      %p163 = scmp.le.s32.totalorder 1, %s14
      %p164 = scmp.lt.s32.totalorder %s14, 3
      %p165 = pnand %p163, %p164
      %p166 = pneg %p165
      // Predicated region
      $region9: #{frontend_forward.11} parent=5 // pred_check
        _
      $region10: #{frontend_forward.11} parent=5 // pred_check_branch
        %168 = sbr.rel (%p165) target = $region12
      $region11: #{frontend_forward.11} parent=5 // pred_region
        %s169 = ssub.s32 %s14, 1
        // Predicated region
        $region13: #{frontend_forward.11} parent=11 // pred_check
          %p170 = pneg %p87
        $region14: #{frontend_forward.11} parent=11 // pred_check_branch
          %172 = sbr.rel (%p170) target = $region16
        $region15: #{frontend_forward.11} parent=11 // pred_region
          _
        $region16: #{frontend_forward.11} parent=11 // pred_fallthru
          _
        // Predicated region
        $region17: #{frontend_forward.11} parent=11 // pred_check
          %p173 = pneg %p108
        $region18: #{frontend_forward.11} parent=11 // pred_check_branch
          %175 = sbr.rel (%p173) target = $region20
        $region19: #{frontend_forward.11} parent=11 // pred_region
          _
        $region20: #{frontend_forward.11} parent=11 // pred_fallthru
          _
        // Predicated region
        $region21: #{frontend_forward.11} parent=11 // pred_check
          %p176 = pneg %p129
        $region22: #{frontend_forward.11} parent=11 // pred_check_branch
          %178 = sbr.rel (%p176) target = $region24
        $region23: #{frontend_forward.11} parent=11 // pred_region
          _
        $region24: #{frontend_forward.11} parent=11 // pred_fallthru
          _
      $region12: #{frontend_forward.11} parent=5 // pred_fallthru
        _
      %p179 = scmp.lt.s32.totalorder %s14, 2
      // Predicated region
      $region25: #{frontend_forward.11} parent=5 // pred_check
        %p180 = pneg %p179
      $region26: #{frontend_forward.11} parent=5 // pred_check_branch
        %182 = sbr.rel (%p180) target = $region28
      $region27: #{frontend_forward.11} parent=5 // pred_region
        // Predicated region
        $region29: #{frontend_forward.11} parent=27 // pred_check
          %p183 = pneg %p34
        $region30: #{frontend_forward.11} parent=27 // pred_check_branch
          %185 = sbr.rel (%p183) target = $region32
        $region31: #{frontend_forward.11} parent=27 // pred_region
          %s186 = smul.u32 4, %s14
          %p187 = scmp.lt.s32.totalorder %s186, 7
          %s188 = scalar_select %p187, %s186, 7
          %s189 = smul.addr %s188, 5
          %s190 = smul.addr %s189, 4
          %s191 = scalar_lea.vmem %s0, %s190
          %s192 = smul.u32 4, %s14
        $region32: #{frontend_forward.11} parent=27 // pred_fallthru
          _
        // Predicated region
        $region33: #{frontend_forward.11} parent=27 // pred_check
          %p193 = pneg %p60
        $region34: #{frontend_forward.11} parent=27 // pred_check_branch
          %195 = sbr.rel (%p193) target = $region36
        $region35: #{frontend_forward.11} parent=27 // pred_region
          %s196 = smul.u32 4, %s14
          %p197 = scmp.lt.s32.totalorder %s196, 7
          %s198 = scalar_select %p197, %s196, 7
          %s199 = smul.addr %s198, 5
          %s200 = smul.addr %s199, 4
          %s201 = scalar_lea.vmem %s1, %s200
          %s202 = smul.u32 4, %s14
        $region36: #{frontend_forward.11} parent=27 // pred_fallthru
          _
      $region28: #{frontend_forward.11} parent=5 // pred_fallthru
        _
      %p203 = scmp.le.s32.totalorder 1, %s14
      %p204 = scmp.lt.s32.totalorder %s14, 3
      %p205 = pnand %p203, %p204
      %p206 = pneg %p205
      // Predicated region
      $region37: #{frontend_forward.11} parent=5 // pred_check
        _
      $region38: #{frontend_forward.11} parent=5 // pred_check_branch
        %208 = sbr.rel (%p205) target = $region40
      $region39: #{frontend_forward.11} parent=5 // pred_region
        %s209 = ssub.s32 %s14, 1
        %s210 = smul.u32 4, %s19
        %p211 = scmp.lt.s32.totalorder %s210, 7
        %s212 = scalar_select %p211, %s210, 7
        %s213 = smul.addr %s212, 5
        %s214 = smul.addr %s213, 4
        %s215 = scalar_lea.vmem %s0, %s214
        %p216 = pneg %p40
        %p217 = pneg %p37
        %s218 = smul.u32 4, %s19
        %p219 = scmp.lt.s32.totalorder %s218, 7
        %s220 = scalar_select %p219, %s218, 7
        %s221 = smul.addr %s220, 5
        %s222 = smul.addr %s221, 4
        %s223 = scalar_lea.vmem %s1, %s222
        %p224 = pneg %p66
        %p225 = pneg %p63
        %p226 = pneg %p87
        %p227 = pneg %p84
        %p228 = pneg %p108
        %p229 = pneg %p105
        %p230 = pneg %p129
        %p231 = pneg %p126
        %p232 = pneg %p155
        %p233 = pneg %p152
        %s234 = sand.u32 %s142, 1
        %s235 = scalar_lea.sflag [#allocation3], %s234
        %s236 = sand.u32 %s142, 1
        %s237 = smul.addr %s236, 4
        %s238 = scalar_lea.vmem [#allocation2], %s237
        %s239 = smul.u32 4, %s19
        %p240 = scmp.lt.s32.totalorder %s239, 7
        %s241 = scalar_select %p240, %s239, 7
        %s242 = smul.addr %s241, 5
        %s243 = smul.addr %s242, 4
        %s244 = scalar_lea.vmem %s0, %s243
        %s245 = smul.u32 4, %s19
        %s246 = smul.u32 4, %s19
        %p247 = scmp.lt.s32.totalorder %s246, 7
        %s248 = scalar_select %p247, %s246, 7
        %s249 = smul.addr %s248, 5
        %s250 = smul.addr %s249, 4
        %s251 = scalar_lea.vmem %s1, %s250
        %s252 = smul.u32 4, %s19
        %s253 = smul.u32 4, %s19
        %v254 = vld [vmem:[%s244] sm:$0xf]
        %v255 = vld [vmem:[%s244 + $0x4] sm:$0xf]
        %v256 = vld [vmem:[%s244 + $0x8] sm:$0xf]
        %v257 = vld [vmem:[%s244 + $0xc] sm:$0xf]
        %v258 = vld [vmem:[%s244 + $0x10] sm:$0x3]
        %v259 = vld [vmem:[%s244 + $0x14] sm:$0xf]
        %v260 = vld [vmem:[%s244 + $0x18] sm:$0xf]
        %v261 = vld [vmem:[%s244 + $0x1c] sm:$0xf]
        %v262 = vld [vmem:[%s244 + $0x20] sm:$0xf]
        %v263 = vld [vmem:[%s244 + $0x24] sm:$0x3]
        %v264 = vld [vmem:[%s244 + $0x28] sm:$0xf]
        %v265 = vld [vmem:[%s244 + $0x2c] sm:$0xf]
        %v266 = vld [vmem:[%s244 + $0x30] sm:$0xf]
        %v267 = vld [vmem:[%s244 + $0x34] sm:$0xf]
        %v268 = vld [vmem:[%s244 + $0x38] sm:$0x3]
        %v269 = vld [vmem:[%s244 + $0x3c] sm:$0xf]
        %v270 = vld [vmem:[%s244 + $0x40] sm:$0xf]
        %v271 = vld [vmem:[%s244 + $0x44] sm:$0xf]
        %v272 = vld [vmem:[%s244 + $0x48] sm:$0xf]
        %v273 = vld [vmem:[%s244 + $0x4c] sm:$0x3]
        %v274 = vunpack.c.l.bf16 %v254
        %v275 = vunpack.c.l.bf16 %v255
        %v276 = vunpack.c.l.bf16 %v256
        %v277 = vunpack.c.l.bf16 %v257
        %v278 = vunpack.c.l.bf16 %v258
        %v279 = vunpack.c.l.bf16 %v259
        %v280 = vunpack.c.l.bf16 %v260
        %v281 = vunpack.c.l.bf16 %v261
        %v282 = vunpack.c.l.bf16 %v262
        %v283 = vunpack.c.l.bf16 %v263
        %v284 = vunpack.c.l.bf16 %v264
        %v285 = vunpack.c.l.bf16 %v265
        %v286 = vunpack.c.l.bf16 %v266
        %v287 = vunpack.c.l.bf16 %v267
        %v288 = vunpack.c.l.bf16 %v268
        %v289 = vunpack.c.l.bf16 %v269
        %v290 = vunpack.c.l.bf16 %v270
        %v291 = vunpack.c.l.bf16 %v271
        %v292 = vunpack.c.l.bf16 %v272
        %v293 = vunpack.c.l.bf16 %v273
        %v294 = vld [vmem:[%s251] sm:$0xf]
        %v295 = vld [vmem:[%s251 + $0x4] sm:$0xf]
        %v296 = vld [vmem:[%s251 + $0x8] sm:$0xf]
        %v297 = vld [vmem:[%s251 + $0xc] sm:$0xf]
        %v298 = vld [vmem:[%s251 + $0x10] sm:$0x3]
        %v299 = vld [vmem:[%s251 + $0x14] sm:$0xf]
        %v300 = vld [vmem:[%s251 + $0x18] sm:$0xf]
        %v301 = vld [vmem:[%s251 + $0x1c] sm:$0xf]
        %v302 = vld [vmem:[%s251 + $0x20] sm:$0xf]
        %v303 = vld [vmem:[%s251 + $0x24] sm:$0x3]
        %v304 = vld [vmem:[%s251 + $0x28] sm:$0xf]
        %v305 = vld [vmem:[%s251 + $0x2c] sm:$0xf]
        %v306 = vld [vmem:[%s251 + $0x30] sm:$0xf]
        %v307 = vld [vmem:[%s251 + $0x34] sm:$0xf]
        %v308 = vld [vmem:[%s251 + $0x38] sm:$0x3]
        %v309 = vld [vmem:[%s251 + $0x3c] sm:$0xf]
        %v310 = vld [vmem:[%s251 + $0x40] sm:$0xf]
        %v311 = vld [vmem:[%s251 + $0x44] sm:$0xf]
        %v312 = vld [vmem:[%s251 + $0x48] sm:$0xf]
        %v313 = vld [vmem:[%s251 + $0x4c] sm:$0x3]
        %v314 = vunpack.c.l.bf16 %v294
        %v315 = vunpack.c.l.bf16 %v295
        %v316 = vunpack.c.l.bf16 %v296
        %v317 = vunpack.c.l.bf16 %v297
        %v318 = vunpack.c.l.bf16 %v298
        %v319 = vunpack.c.l.bf16 %v299
        %v320 = vunpack.c.l.bf16 %v300
        %v321 = vunpack.c.l.bf16 %v301
        %v322 = vunpack.c.l.bf16 %v302
        %v323 = vunpack.c.l.bf16 %v303
        %v324 = vunpack.c.l.bf16 %v304
        %v325 = vunpack.c.l.bf16 %v305
        %v326 = vunpack.c.l.bf16 %v306
        %v327 = vunpack.c.l.bf16 %v307
        %v328 = vunpack.c.l.bf16 %v308
        %v329 = vunpack.c.l.bf16 %v309
        %v330 = vunpack.c.l.bf16 %v310
        %v331 = vunpack.c.l.bf16 %v311
        %v332 = vunpack.c.l.bf16 %v312
        %v333 = vunpack.c.l.bf16 %v313
        %v334 = vld [vmem:[%s2] sm:$0x1]
        %v336 = vlaneseq
        %v337 = vshrl.u32 %v336, 7
        %v338 = vsub.s32 0, %v337
        %v339 = vrot.slane %v334, %v338
        %v341 = vmul.f32 %v274, %v339
        %v342 = vmul.f32 %v275, %v339
        %v343 = vmul.f32 %v276, %v339
        %v344 = vmul.f32 %v277, %v339
        %v345 = vmul.f32 %v278, %v339
        %v346 = vmul.f32 %v279, %v339
        %v347 = vmul.f32 %v280, %v339
        %v348 = vmul.f32 %v281, %v339
        %v349 = vmul.f32 %v282, %v339
        %v350 = vmul.f32 %v283, %v339
        %v351 = vmul.f32 %v284, %v339
        %v352 = vmul.f32 %v285, %v339
        %v353 = vmul.f32 %v286, %v339
        %v354 = vmul.f32 %v287, %v339
        %v355 = vmul.f32 %v288, %v339
        %v356 = vmul.f32 %v289, %v339
        %v357 = vmul.f32 %v290, %v339
        %v358 = vmul.f32 %v291, %v339
        %v359 = vmul.f32 %v292, %v339
        %v360 = vmul.f32 %v293, %v339
        %v361 = vld [vmem:[%s3] sm:$0x1]
        %v363 = vlaneseq
        %v364 = vshrl.u32 %v363, 7
        %v365 = vsub.s32 0, %v364
        %v366 = vrot.slane %v361, %v365
        %v368 = vadd.f32 %v341, %v366
        %v369 = vadd.f32 %v342, %v366
        %v370 = vadd.f32 %v343, %v366
        %v371 = vadd.f32 %v344, %v366
        %v372 = vadd.f32 %v345, %v366
        %v373 = vadd.f32 %v346, %v366
        %v374 = vadd.f32 %v347, %v366
        %v375 = vadd.f32 %v348, %v366
        %v376 = vadd.f32 %v349, %v366
        %v377 = vadd.f32 %v350, %v366
        %v378 = vadd.f32 %v351, %v366
        %v379 = vadd.f32 %v352, %v366
        %v380 = vadd.f32 %v353, %v366
        %v381 = vadd.f32 %v354, %v366
        %v382 = vadd.f32 %v355, %v366
        %v383 = vadd.f32 %v356, %v366
        %v384 = vadd.f32 %v357, %v366
        %v385 = vadd.f32 %v358, %v366
        %v386 = vadd.f32 %v359, %v366
        %v387 = vadd.f32 %v360, %v366
        %v388 = vadd.f32 %v368, %v314
        %v389 = vadd.f32 %v369, %v315
        %v390 = vadd.f32 %v370, %v316
        %v391 = vadd.f32 %v371, %v317
        %v392 = vadd.f32 %v372, %v318
        %v393 = vadd.f32 %v373, %v319
        %v394 = vadd.f32 %v374, %v320
        %v395 = vadd.f32 %v375, %v321
        %v396 = vadd.f32 %v376, %v322
        %v397 = vadd.f32 %v377, %v323
        %v398 = vadd.f32 %v378, %v324
        %v399 = vadd.f32 %v379, %v325
        %v400 = vadd.f32 %v380, %v326
        %v401 = vadd.f32 %v381, %v327
        %v402 = vadd.f32 %v382, %v328
        %v403 = vadd.f32 %v383, %v329
        %v404 = vadd.f32 %v384, %v330
        %v405 = vadd.f32 %v385, %v331
        %v406 = vadd.f32 %v386, %v332
        %v407 = vadd.f32 %v387, %v333
        %v408 = vmax.f32 %v388, 0.0
        %v409 = vmax.f32 %v389, 0.0
        %v410 = vmax.f32 %v390, 0.0
        %v411 = vmax.f32 %v391, 0.0
        %v412 = vmax.f32 %v392, 0.0
        %v413 = vmax.f32 %v393, 0.0
        %v414 = vmax.f32 %v394, 0.0
        %v415 = vmax.f32 %v395, 0.0
        %v416 = vmax.f32 %v396, 0.0
        %v417 = vmax.f32 %v397, 0.0
        %v418 = vmax.f32 %v398, 0.0
        %v419 = vmax.f32 %v399, 0.0
        %v420 = vmax.f32 %v400, 0.0
        %v421 = vmax.f32 %v401, 0.0
        %v422 = vmax.f32 %v402, 0.0
        %v423 = vmax.f32 %v403, 0.0
        %v424 = vmax.f32 %v404, 0.0
        %v425 = vmax.f32 %v405, 0.0
        %v426 = vmax.f32 %v406, 0.0
        %v427 = vmax.f32 %v407, 0.0
        %v428 = vld [vmem:[%s4] sm:$0xff]
        %v429 = vld [vmem:[%s4 + $0x8] sm:$0xff]
        %v430 = vld [vmem:[%s4 + $0x10] sm:$0xff]
        %v431 = vld [vmem:[%s4 + $0x18] sm:$0xff]
        %v432 = vld [vmem:[%s4 + $0x20] sm:$0xf]
        %434 = vset.pattern.permute.xlu0 0
        %435 = vperm.xlu0 %434, %v428
        %v436 = vpop.permute.xlu0 %435
        %439 = vset.pattern.permute.xlu0 0
        %440 = vperm.xlu0 %439, %v429
        %v441 = vpop.permute.xlu0 %440
        %444 = vset.pattern.permute.xlu0 0
        %445 = vperm.xlu0 %444, %v430
        %v446 = vpop.permute.xlu0 %445
        %449 = vset.pattern.permute.xlu0 0
        %450 = vperm.xlu0 %449, %v431
        %v451 = vpop.permute.xlu0 %450
        %454 = vset.pattern.permute.xlu0 0
        %455 = vperm.xlu0 %454, %v432
        %v456 = vpop.permute.xlu0 %455
        %v458 = vmul.f32 %v408, %v436
        %v459 = vmul.f32 %v409, %v441
        %v460 = vmul.f32 %v410, %v446
        %v461 = vmul.f32 %v411, %v451
        %v462 = vmul.f32 %v412, %v456
        %v463 = vmul.f32 %v413, %v436
        %v464 = vmul.f32 %v414, %v441
        %v465 = vmul.f32 %v415, %v446
        %v466 = vmul.f32 %v416, %v451
        %v467 = vmul.f32 %v417, %v456
        %v468 = vmul.f32 %v418, %v436
        %v469 = vmul.f32 %v419, %v441
        %v470 = vmul.f32 %v420, %v446
        %v471 = vmul.f32 %v421, %v451
        %v472 = vmul.f32 %v422, %v456
        %v473 = vmul.f32 %v423, %v436
        %v474 = vmul.f32 %v424, %v441
        %v475 = vmul.f32 %v425, %v446
        %v476 = vmul.f32 %v426, %v451
        %v477 = vmul.f32 %v427, %v456
        %vm478 = vcmask 64512
        %v479 = vsel %vm478, %v458, 0.0
        %v480 = vsel %vm478, %v459, 0.0
        %v481 = vadd.f32 %v479, %v480
        %v482 = vsel %vm478, %v460, 0.0
        %v483 = vadd.f32 %v481, %v482
        %v484 = vsel %vm478, %v461, 0.0
        %v485 = vadd.f32 %v483, %v484
        %vm486 = vcmask 60416
        %v487 = vsel %vm486, %v462, 0.0
        %v488 = vadd.f32 %v485, %v487
        %v489 = vrot.slane %v488, 4
        %v490 = vadd.f32 %v488, %v489
        %v491 = vrot.slane %v490, 2
        %v492 = vadd.f32 %v490, %v491
        %v493 = vrot.slane %v492, 1
        %v494 = vadd.f32 %v492, %v493
        %v495 = vsel %vm478, %v463, 0.0
        %v496 = vsel %vm478, %v464, 0.0
        %v497 = vadd.f32 %v495, %v496
        %v498 = vsel %vm478, %v465, 0.0
        %v499 = vadd.f32 %v497, %v498
        %v500 = vsel %vm478, %v466, 0.0
        %v501 = vadd.f32 %v499, %v500
        %v502 = vsel %vm486, %v467, 0.0
        %v503 = vadd.f32 %v501, %v502
        %v504 = vrot.slane %v503, 4
        %v505 = vadd.f32 %v503, %v504
        %v506 = vrot.slane %v505, 2
        %v507 = vadd.f32 %v505, %v506
        %v508 = vrot.slane %v507, 1
        %v509 = vadd.f32 %v507, %v508
        %v510 = vsel %vm478, %v468, 0.0
        %v511 = vsel %vm478, %v469, 0.0
        %v512 = vadd.f32 %v510, %v511
        %v513 = vsel %vm478, %v470, 0.0
        %v514 = vadd.f32 %v512, %v513
        %v515 = vsel %vm478, %v471, 0.0
        %v516 = vadd.f32 %v514, %v515
        %v517 = vsel %vm486, %v472, 0.0
        %v518 = vadd.f32 %v516, %v517
        %v519 = vrot.slane %v518, 4
        %v520 = vadd.f32 %v518, %v519
        %v521 = vrot.slane %v520, 2
        %v522 = vadd.f32 %v520, %v521
        %v523 = vrot.slane %v522, 1
        %v524 = vadd.f32 %v522, %v523
        %v525 = vsel %vm478, %v473, 0.0
        %v526 = vsel %vm478, %v474, 0.0
        %v527 = vadd.f32 %v525, %v526
        %v528 = vsel %vm478, %v475, 0.0
        %v529 = vadd.f32 %v527, %v528
        %v530 = vsel %vm478, %v476, 0.0
        %v531 = vadd.f32 %v529, %v530
        %v532 = vsel %vm486, %v477, 0.0
        %v533 = vadd.f32 %v531, %v532
        %v534 = vrot.slane %v533, 4
        %v535 = vadd.f32 %v533, %v534
        %v536 = vrot.slane %v535, 2
        %v537 = vadd.f32 %v535, %v536
        %v538 = vrot.slane %v537, 1
        %v539 = vadd.f32 %v537, %v538
        %v540 = vmul.f32 %v494, 0.0625
        %v541 = vmul.f32 %v509, 0.0625
        %v542 = vmul.f32 %v524, 0.0625
        %v543 = vmul.f32 %v539, 0.0625
        %vm544 = vcmask 57344
        %545 = vst.msk [vmem:[%s238] sm:$0x1] %vm544, %v540
        %546 = vst.msk [vmem:[%s238 + $0x1] sm:$0x1] %vm544, %v541
        %547 = vst.msk [vmem:[%s238 + $0x2] sm:$0x1] %vm544, %v542
        %548 = vst.msk [vmem:[%s238 + $0x3] sm:$0x1] %vm544, %v543
        %s549 = sand.u32 %s142, 1
        %s550 = scalar_lea.sflag [#allocation3], %s549
        %s551 = sand.u32 %s142, 1
        %s552 = smul.addr %s551, 4
        %s553 = scalar_lea.vmem [#allocation2], %s552
        // Predicated region
        $region41: #{frontend_forward.11} parent=39 // pred_check
          %p554 = pneg %p152
        $region42: #{frontend_forward.11} parent=39 // pred_check_branch
          %556 = sbr.rel (%p554) target = $region44
        $region43: #{frontend_forward.11} parent=39 // pred_region
          %s557 = smul.u32 4, %s19
          %s559 = ssub.s32 64, 64
          %560 = vsyncadd %s550, %s559
          %s561 = smul.addr %s557, 16
          %s562 = scalar_lea.hbm %s5, %s561
          %s563 = sshll.u32 %s553, 4
          %s564 = int_to_ptr.vmem [resolvable:$true] %s563
          %569 = dma.vmem_to_hbm [thread:$0]  %s564, 64, %s562, %s550, 16, 16, 1
        $region44: #{frontend_forward.11} parent=39 // pred_fallthru
          _
      $region40: #{frontend_forward.11} parent=5 // pred_fallthru
        _
      %p570 = scmp.le.s32.totalorder 2, %s14
      // Predicated region
      $region45: #{frontend_forward.11} parent=5 // pred_check
        %p571 = pneg %p570
      $region46: #{frontend_forward.11} parent=5 // pred_check_branch
        %573 = sbr.rel (%p571) target = $region48
      $region47: #{frontend_forward.11} parent=5 // pred_region
        %s574 = ssub.s32 %s14, 2
        // Predicated region
        $region49: #{frontend_forward.11} parent=47 // pred_check
          %p575 = pneg %p158
        $region50: #{frontend_forward.11} parent=47 // pred_check_branch
          %577 = sbr.rel (%p575) target = $region52
        $region51: #{frontend_forward.11} parent=47 // pred_region
          %s578 = sand.u32 %s143, 1
          %s579 = scalar_lea.sflag [#allocation3], %s578
          %s580 = sand.u32 %s143, 1
          %s581 = smul.addr %s580, 4
          %s582 = scalar_lea.vmem [#allocation2], %s581
          %583 = dma.done %s579, 64
        $region52: #{frontend_forward.11} parent=47 // pred_fallthru
          _
      $region48: #{frontend_forward.11} parent=5 // pred_fallthru
        _
    $region6: #{frontend_forward.11} parent=1 // loop_footer
      %s18 = sadd.s32 1, %s14
    $region7: #{frontend_forward.11} parent=1 // loop_footer_branch
      %13 = sbr.rel target = $region3
    $region8: #{frontend_forward.11} parent=1 // loop_exit
      _
    %584 = vsyncpa [#allocation3], 1
    %s585 = scalar_lea.sflag [#allocation3], 1
    %586 = vsyncpa %s585, 1

// kernel: frontend_forward.8
$region0: #{frontend_forward.8}
  #allocation0 [shape = 'u32[]', space=smem, size = 0x4, offset = 0x4, fixed_abs, tag = 'smem constant byte address 0x4 - core index']
  #allocation1 [shape = 'u32[144,128]{1,0:T(1,128)}', space=vmem, size = 0x12000, scoped, tag = 'internal scratch']
  %s0 = inlined_call_operand.vmem [shape: bf16[576,8], index: 0, kind: input, shape index: {}, may-alias: {0,1,2}]
  %s1 = inlined_call_operand.vmem [shape: bf16[576,8], index: 1, kind: input, shape index: {}, may-alias: {0,1,2}]
  %s2 = inlined_call_operand.vmem [shape: bf16[576,8], index: 2, kind: input, shape index: {}, may-alias: {0,1,2}]
  %s3 = inlined_call_operand.vmem [shape: bf16[72,8], index: 3, kind: input, shape index: {}]
  %s4 = inlined_call_operand.vmem [shape: f32[288,1], index: 4, kind: input, shape index: {}]
  %s5 = inlined_call_operand.vmem [shape: bf16[288,8], index: 5, kind: output, shape index: {0}]
  %s6 = inlined_call_operand.vmem [shape: f32[2,1,8], index: 6, kind: output, shape index: {1}]
  %s7 = inlined_call_operand.vmem [shape: f32[2,1,8], index: 7, kind: output, shape index: {2}]
  %8 = xla_tuple %s5, %s6, %s7
  %s9 = sld [smem:[#allocation0]]
  $region69: #{frontend_forward.8} parent=0
    _
  %s11 = ssub.s32 1, %s9
  %s12 = scalar_select 0, %s11, %s9
  loop: start=0, step=1, limit=4
  $region2: #{frontend_forward.8} parent=0 // loop_pre_header
    _
  $region3: #{frontend_forward.8} parent=0 // loop_header
    %s14 = sphi 0, %s18
    %p15 = scmp.ge.s32.totalorder %s14, 4
    %s24 = sphi 0, %s26
    %s27 = sphi 0, %s24
    %s28 = sphi 0, %s27
    %s44 = sphi 0, %s28
    %s52 = sphi 0, %s54
    %s55 = sphi 0, %s52
    %s56 = sphi 0, %s55
    %s72 = sphi 0, %s56
    %s80 = sphi 0, %s82
    %s83 = sphi 0, %s80
    %s84 = sphi 0, %s83
    %s100 = sphi 0, %s84
    %s104 = sphi 0, %s104
    %s106 = sphi 0, %s104
    %s107 = sphi 0, %s106
    %s121 = sphi 0, %s107
    %s127 = sphi 0, %s129
    %s130 = sphi 0, %s127
    %s131 = sphi 0, %s130
    %s147 = sphi 0, %s131
    %s153 = sphi 0, %s155
    %s156 = sphi 0, %s153
    %s157 = sphi 0, %s156
    %s173 = sphi 0, %s157
    %s179 = sphi 0, %s181
    %s182 = sphi 0, %s179
    %s183 = sphi 0, %s182
    %s199 = sphi 0, %s183
    %s205 = sphi 0, %s207
    %s208 = sphi 0, %s205
    %s209 = sphi 0, %s208
    %s225 = sphi 0, %s209
  $region4: #{frontend_forward.8} parent=0 // loop_header_branch
    %17 = sbr.rel (%p15) target = $region8
  $region5: #{frontend_forward.8} parent=0 // loop_body
    %s19 = ssub.s32 %s14, 1
    %s20 = ssub.s32 %s14, 2
    %s21 = sadd.s32 %s14, 1
    %s22 = ssub.s32 %s14, %s21
    %p23 = scmp.eq.s32.totalorder %s22, 0
    %s25 = sadd.s32 %s24, 1
    %s26 = scalar_select %p23, %s24, %s25
    %p29 = pneg %p23
    %p30 = scmp.eq.s32.totalorder %s14, 1
    %p31 = por %p29, %p30
    %p32 = scmp.ne.s32.totalorder %s24, %s27
    %p33 = scmp.eq.s32.totalorder %s14, 0
    %p34 = por %p32, %p33
    %p35 = scmp.ne.s32.totalorder %s24, %s27
    %p36 = scmp.eq.s32.totalorder %s19, 1
    %p37 = por %p35, %p36
    %p38 = scmp.ne.s32.totalorder %s27, %s28
    %p39 = scmp.eq.s32.totalorder %s19, 0
    %p40 = por %p38, %p39
    %p41 = scmp.ne.s32.totalorder %s27, %s28
    %p42 = scmp.eq.s32.totalorder %s20, 1
    %p43 = por %p41, %p42
    %p45 = scmp.ne.s32.totalorder %s28, %s44
    %p46 = scmp.eq.s32.totalorder %s20, 0
    %p47 = por %p45, %p46
    %s48 = sadd.s32 %s14, 1
    %s49 = sadd.s32 %s21, 1
    %s50 = ssub.s32 %s48, %s49
    %p51 = scmp.eq.s32.totalorder %s50, 0
    %s53 = sadd.s32 %s52, 1
    %s54 = scalar_select %p51, %s52, %s53
    %p57 = pneg %p51
    %p58 = scmp.eq.s32.totalorder %s14, 1
    %p59 = por %p57, %p58
    %p60 = scmp.ne.s32.totalorder %s52, %s55
    %p61 = scmp.eq.s32.totalorder %s14, 0
    %p62 = por %p60, %p61
    %p63 = scmp.ne.s32.totalorder %s52, %s55
    %p64 = scmp.eq.s32.totalorder %s19, 1
    %p65 = por %p63, %p64
    %p66 = scmp.ne.s32.totalorder %s55, %s56
    %p67 = scmp.eq.s32.totalorder %s19, 0
    %p68 = por %p66, %p67
    %p69 = scmp.ne.s32.totalorder %s55, %s56
    %p70 = scmp.eq.s32.totalorder %s20, 1
    %p71 = por %p69, %p70
    %p73 = scmp.ne.s32.totalorder %s56, %s72
    %p74 = scmp.eq.s32.totalorder %s20, 0
    %p75 = por %p73, %p74
    %s76 = sadd.s32 %s14, 2
    %s77 = sadd.s32 %s21, 2
    %s78 = ssub.s32 %s76, %s77
    %p79 = scmp.eq.s32.totalorder %s78, 0
    %s81 = sadd.s32 %s80, 1
    %s82 = scalar_select %p79, %s80, %s81
    %p85 = pneg %p79
    %p86 = scmp.eq.s32.totalorder %s14, 1
    %p87 = por %p85, %p86
    %p88 = scmp.ne.s32.totalorder %s80, %s83
    %p89 = scmp.eq.s32.totalorder %s14, 0
    %p90 = por %p88, %p89
    %p91 = scmp.ne.s32.totalorder %s80, %s83
    %p92 = scmp.eq.s32.totalorder %s19, 1
    %p93 = por %p91, %p92
    %p94 = scmp.ne.s32.totalorder %s83, %s84
    %p95 = scmp.eq.s32.totalorder %s19, 0
    %p96 = por %p94, %p95
    %p97 = scmp.ne.s32.totalorder %s83, %s84
    %p98 = scmp.eq.s32.totalorder %s20, 1
    %p99 = por %p97, %p98
    %p101 = scmp.ne.s32.totalorder %s84, %s100
    %p102 = scmp.eq.s32.totalorder %s20, 0
    %p103 = por %p101, %p102
    %s105 = sadd.s32 %s104, 1
    %p108 = scmp.eq.s32.totalorder %s14, 1
    %p109 = scmp.ne.s32.totalorder %s104, %s106
    %p110 = scmp.eq.s32.totalorder %s14, 0
    %p111 = por %p109, %p110
    %p112 = scmp.ne.s32.totalorder %s104, %s106
    %p113 = scmp.eq.s32.totalorder %s19, 1
    %p114 = por %p112, %p113
    %p115 = scmp.ne.s32.totalorder %s106, %s107
    %p116 = scmp.eq.s32.totalorder %s19, 0
    %p117 = por %p115, %p116
    %p118 = scmp.ne.s32.totalorder %s106, %s107
    %p119 = scmp.eq.s32.totalorder %s20, 1
    %p120 = por %p118, %p119
    %p122 = scmp.ne.s32.totalorder %s107, %s121
    %p123 = scmp.eq.s32.totalorder %s20, 0
    %p124 = por %p122, %p123
    %s125 = ssub.s32 %s14, %s21
    %p126 = scmp.eq.s32.totalorder %s125, 0
    %s128 = sadd.s32 %s127, 1
    %s129 = scalar_select %p126, %s127, %s128
    %p132 = pneg %p126
    %p133 = scmp.eq.s32.totalorder %s14, 1
    %p134 = por %p132, %p133
    %p135 = scmp.ne.s32.totalorder %s127, %s130
    %p136 = scmp.eq.s32.totalorder %s14, 0
    %p137 = por %p135, %p136
    %p138 = scmp.ne.s32.totalorder %s127, %s130
    %p139 = scmp.eq.s32.totalorder %s19, 1
    %p140 = por %p138, %p139
    %p141 = scmp.ne.s32.totalorder %s130, %s131
    %p142 = scmp.eq.s32.totalorder %s19, 0
    %p143 = por %p141, %p142
    %p144 = scmp.ne.s32.totalorder %s130, %s131
    %p145 = scmp.eq.s32.totalorder %s20, 1
    %p146 = por %p144, %p145
    %p148 = scmp.ne.s32.totalorder %s131, %s147
    %p149 = scmp.eq.s32.totalorder %s20, 0
    %p150 = por %p148, %p149
    %s151 = ssub.s32 %s14, %s21
    %p152 = scmp.eq.s32.totalorder %s151, 0
    %s154 = sadd.s32 %s153, 1
    %s155 = scalar_select %p152, %s153, %s154
    %p158 = pneg %p152
    %p159 = scmp.eq.s32.totalorder %s14, 1
    %p160 = por %p158, %p159
    %p161 = scmp.ne.s32.totalorder %s153, %s156
    %p162 = scmp.eq.s32.totalorder %s14, 0
    %p163 = por %p161, %p162
    %p164 = scmp.ne.s32.totalorder %s153, %s156
    %p165 = scmp.eq.s32.totalorder %s19, 1
    %p166 = por %p164, %p165
    %p167 = scmp.ne.s32.totalorder %s156, %s157
    %p168 = scmp.eq.s32.totalorder %s19, 0
    %p169 = por %p167, %p168
    %p170 = scmp.ne.s32.totalorder %s156, %s157
    %p171 = scmp.eq.s32.totalorder %s20, 1
    %p172 = por %p170, %p171
    %p174 = scmp.ne.s32.totalorder %s157, %s173
    %p175 = scmp.eq.s32.totalorder %s20, 0
    %p176 = por %p174, %p175
    %s177 = ssub.s32 %s14, %s21
    %p178 = scmp.eq.s32.totalorder %s177, 0
    %s180 = sadd.s32 %s179, 1
    %s181 = scalar_select %p178, %s179, %s180
    %p184 = pneg %p178
    %p185 = scmp.eq.s32.totalorder %s14, 1
    %p186 = por %p184, %p185
    %p187 = scmp.ne.s32.totalorder %s179, %s182
    %p188 = scmp.eq.s32.totalorder %s14, 0
    %p189 = por %p187, %p188
    %p190 = scmp.ne.s32.totalorder %s179, %s182
    %p191 = scmp.eq.s32.totalorder %s19, 1
    %p192 = por %p190, %p191
    %p193 = scmp.ne.s32.totalorder %s182, %s183
    %p194 = scmp.eq.s32.totalorder %s19, 0
    %p195 = por %p193, %p194
    %p196 = scmp.ne.s32.totalorder %s182, %s183
    %p197 = scmp.eq.s32.totalorder %s20, 1
    %p198 = por %p196, %p197
    %p200 = scmp.ne.s32.totalorder %s183, %s199
    %p201 = scmp.eq.s32.totalorder %s20, 0
    %p202 = por %p200, %p201
    %s203 = ssub.s32 %s14, %s21
    %p204 = scmp.eq.s32.totalorder %s203, 0
    %s206 = sadd.s32 %s205, 1
    %s207 = scalar_select %p204, %s205, %s206
    %p210 = pneg %p204
    %p211 = scmp.eq.s32.totalorder %s14, 1
    %p212 = por %p210, %p211
    %p213 = scmp.ne.s32.totalorder %s205, %s208
    %p214 = scmp.eq.s32.totalorder %s14, 0
    %p215 = por %p213, %p214
    %p216 = scmp.ne.s32.totalorder %s205, %s208
    %p217 = scmp.eq.s32.totalorder %s19, 1
    %p218 = por %p216, %p217
    %p219 = scmp.ne.s32.totalorder %s208, %s209
    %p220 = scmp.eq.s32.totalorder %s19, 0
    %p221 = por %p219, %p220
    %p222 = scmp.ne.s32.totalorder %s208, %s209
    %p223 = scmp.eq.s32.totalorder %s20, 1
    %p224 = por %p222, %p223
    %p226 = scmp.ne.s32.totalorder %s209, %s225
    %p227 = scmp.eq.s32.totalorder %s20, 0
    %p228 = por %p226, %p227
    %p229 = scmp.le.s32.totalorder 1, %s14
    %p230 = scmp.lt.s32.totalorder %s14, 3
    %p231 = pnand %p229, %p230
    %p232 = pneg %p231
    // Predicated region
    $region9: #{frontend_forward.8} parent=5 // pred_check
      _
    $region10: #{frontend_forward.8} parent=5 // pred_check_branch
      %234 = sbr.rel (%p231) target = $region12
    $region11: #{frontend_forward.8} parent=5 // pred_region
      %s235 = ssub.s32 %s14, 1
      // Predicated region
      $region13: #{frontend_forward.8} parent=11 // pred_check
        %p236 = pneg %p117
      $region14: #{frontend_forward.8} parent=11 // pred_check_branch
        %238 = sbr.rel (%p236) target = $region16
      $region15: #{frontend_forward.8} parent=11 // pred_region
        _
      $region16: #{frontend_forward.8} parent=11 // pred_fallthru
        _
    $region12: #{frontend_forward.8} parent=5 // pred_fallthru
      _
    %p239 = scmp.lt.s32.totalorder %s14, 2
    // Predicated region
    $region17: #{frontend_forward.8} parent=5 // pred_check
      %p240 = pneg %p239
    $region18: #{frontend_forward.8} parent=5 // pred_check_branch
      %242 = sbr.rel (%p240) target = $region20
    $region19: #{frontend_forward.8} parent=5 // pred_region
      // Predicated region
      $region21: #{frontend_forward.8} parent=19 // pred_check
        %p243 = pneg %p34
      $region22: #{frontend_forward.8} parent=19 // pred_check_branch
        %245 = sbr.rel (%p243) target = $region24
      $region23: #{frontend_forward.8} parent=19 // pred_region
        %s246 = smul.u32 18, %s14
        %p247 = scmp.lt.s32.totalorder %s246, 71
        %s248 = scalar_select %p247, %s246, 71
        %s249 = smul.addr %s248, 4
        %s250 = scalar_lea.vmem %s0, %s249
        %s251 = smul.u32 18, %s14
      $region24: #{frontend_forward.8} parent=19 // pred_fallthru
        _
      // Predicated region
      $region25: #{frontend_forward.8} parent=19 // pred_check
        %p252 = pneg %p62
      $region26: #{frontend_forward.8} parent=19 // pred_check_branch
        %254 = sbr.rel (%p252) target = $region28
      $region27: #{frontend_forward.8} parent=19 // pred_region
        %s255 = sadd.s32 %s14, 1
        %s256 = smul.u32 18, %s255
        %p257 = scmp.lt.s32.totalorder %s256, 71
        %s258 = scalar_select %p257, %s256, 71
        %s259 = smul.addr %s258, 4
        %s260 = scalar_lea.vmem %s1, %s259
        %s261 = sadd.s32 %s14, 1
        %s262 = smul.u32 18, %s261
      $region28: #{frontend_forward.8} parent=19 // pred_fallthru
        _
      // Predicated region
      $region29: #{frontend_forward.8} parent=19 // pred_check
        %p263 = pneg %p90
      $region30: #{frontend_forward.8} parent=19 // pred_check_branch
        %265 = sbr.rel (%p263) target = $region32
      $region31: #{frontend_forward.8} parent=19 // pred_region
        %s266 = sadd.s32 %s14, 2
        %s267 = smul.u32 18, %s266
        %p268 = scmp.lt.s32.totalorder %s267, 71
        %s269 = scalar_select %p268, %s267, 71
        %s270 = smul.addr %s269, 4
        %s271 = scalar_lea.vmem %s2, %s270
        %s272 = sadd.s32 %s14, 2
        %s273 = smul.u32 18, %s272
      $region32: #{frontend_forward.8} parent=19 // pred_fallthru
        _
      // Predicated region
      $region33: #{frontend_forward.8} parent=19 // pred_check
        %p274 = pneg %p137
      $region34: #{frontend_forward.8} parent=19 // pred_check_branch
        %276 = sbr.rel (%p274) target = $region36
      $region35: #{frontend_forward.8} parent=19 // pred_region
        %s277 = smul.u32 18, %s14
        %p278 = scmp.lt.s32.totalorder %s277, 35
        %s279 = scalar_select %p278, %s277, 35
        %s280 = smul.addr %s279, 8
        %s281 = scalar_lea.vmem %s4, %s280
        %s282 = smul.u32 18, %s14
      $region36: #{frontend_forward.8} parent=19 // pred_fallthru
        _
    $region20: #{frontend_forward.8} parent=5 // pred_fallthru
      _
    %p283 = scmp.le.s32.totalorder 1, %s14
    %p284 = scmp.lt.s32.totalorder %s14, 3
    %p285 = pnand %p283, %p284
    %p286 = pneg %p285
    // Predicated region
    $region37: #{frontend_forward.8} parent=5 // pred_check
      _
    $region38: #{frontend_forward.8} parent=5 // pred_check_branch
      %288 = sbr.rel (%p285) target = $region40
    $region39: #{frontend_forward.8} parent=5 // pred_region
      %s289 = ssub.s32 %s14, 1
      %s290 = smul.u32 18, %s19
      %p291 = scmp.lt.s32.totalorder %s290, 71
      %s292 = scalar_select %p291, %s290, 71
      %s293 = smul.addr %s292, 4
      %s294 = scalar_lea.vmem %s0, %s293
      %p295 = pneg %p40
      %p296 = pneg %p37
      %s297 = sadd.s32 %s19, 1
      %s298 = smul.u32 18, %s297
      %p299 = scmp.lt.s32.totalorder %s298, 71
      %s300 = scalar_select %p299, %s298, 71
      %s301 = smul.addr %s300, 4
      %s302 = scalar_lea.vmem %s1, %s301
      %p303 = pneg %p68
      %p304 = pneg %p65
      %s305 = sadd.s32 %s19, 2
      %s306 = smul.u32 18, %s305
      %p307 = scmp.lt.s32.totalorder %s306, 71
      %s308 = scalar_select %p307, %s306, 71
      %s309 = smul.addr %s308, 4
      %s310 = scalar_lea.vmem %s2, %s309
      %p311 = pneg %p96
      %p312 = pneg %p93
      %p313 = pneg %p117
      %p314 = pneg %p114
      %s315 = smul.u32 18, %s19
      %p316 = scmp.lt.s32.totalorder %s315, 35
      %s317 = scalar_select %p316, %s315, 35
      %s318 = smul.addr %s317, 8
      %s319 = scalar_lea.vmem %s4, %s318
      %p320 = pneg %p143
      %p321 = pneg %p140
      %p322 = pneg %p169
      %p323 = pneg %p166
      %s324 = smul.u32 18, %s19
      %p325 = scmp.lt.s32.totalorder %s324, 35
      %s326 = scalar_select %p325, %s324, 35
      %s327 = smul.addr %s326, 4
      %s328 = scalar_lea.vmem %s5, %s327
      %p329 = pneg %p195
      %p330 = pneg %p192
      %p331 = scmp.lt.s32.totalorder %s19, 1
      %s332 = scalar_select %p331, %s19, 1
      %s333 = scalar_lea.vmem %s6, %s332
      %p334 = pneg %p221
      %p335 = pneg %p218
      %p336 = scmp.lt.s32.totalorder %s19, 1
      %s337 = scalar_select %p336, %s19, 1
      %s338 = scalar_lea.vmem %s7, %s337
      %s339 = smul.u32 18, %s19
      %p340 = scmp.lt.s32.totalorder %s339, 71
      %s341 = scalar_select %p340, %s339, 71
      %s342 = smul.addr %s341, 4
      %s343 = scalar_lea.vmem %s0, %s342
      %s344 = smul.u32 18, %s19
      %s345 = sadd.s32 %s19, 1
      %s346 = smul.u32 18, %s345
      %p347 = scmp.lt.s32.totalorder %s346, 71
      %s348 = scalar_select %p347, %s346, 71
      %s349 = smul.addr %s348, 4
      %s350 = scalar_lea.vmem %s1, %s349
      %s351 = sadd.s32 %s19, 1
      %s352 = smul.u32 18, %s351
      %s353 = sadd.s32 %s19, 2
      %s354 = smul.u32 18, %s353
      %p355 = scmp.lt.s32.totalorder %s354, 71
      %s356 = scalar_select %p355, %s354, 71
      %s357 = smul.addr %s356, 4
      %s358 = scalar_lea.vmem %s2, %s357
      %s359 = sadd.s32 %s19, 2
      %s360 = smul.u32 18, %s359
      %s361 = smul.u32 18, %s19
      %p362 = scmp.lt.s32.totalorder %s361, 35
      %s363 = scalar_select %p362, %s361, 35
      %s364 = smul.addr %s363, 8
      %s365 = scalar_lea.vmem %s4, %s364
      %s366 = smul.u32 18, %s19
      %s367 = smul.u32 18, %s19
      %p368 = scmp.lt.s32.totalorder %s367, 35
      %s369 = scalar_select %p368, %s367, 35
      %s370 = smul.addr %s369, 4
      %s371 = scalar_lea.vmem %s5, %s370
      %s372 = smul.u32 18, %s19
      %p373 = scmp.lt.s32.totalorder %s19, 1
      %s374 = scalar_select %p373, %s19, 1
      %s375 = scalar_lea.vmem %s6, %s374
      %p376 = scmp.lt.s32.totalorder %s19, 1
      %s377 = scalar_select %p376, %s19, 1
      %s378 = scalar_lea.vmem %s7, %s377
      %v380 = vld [vmem:[%s343 + $0x40] sm:$0xf]
      %v381 = vld [vmem:[%s343 + $0x44] sm:$0xf]
      %v382 = vld [vmem:[%s350] sm:$0xf]
      %v383 = vld [vmem:[%s350 + $0x4] sm:$0xf]
      %v384 = vld [vmem:[%s350 + $0x8] sm:$0xf]
      %v385 = vld [vmem:[%s350 + $0xc] sm:$0xf]
      %v386 = vld [vmem:[%s350 + $0x10] sm:$0xf]
      %v387 = vld [vmem:[%s350 + $0x14] sm:$0xf]
      %v388 = vld [vmem:[%s350 + $0x18] sm:$0xf]
      %v389 = vld [vmem:[%s350 + $0x1c] sm:$0xf]
      %v390 = vld [vmem:[%s350 + $0x20] sm:$0xf]
      %v391 = vld [vmem:[%s350 + $0x24] sm:$0xf]
      %v392 = vld [vmem:[%s350 + $0x28] sm:$0xf]
      %v393 = vld [vmem:[%s350 + $0x2c] sm:$0xf]
      %v394 = vld [vmem:[%s350 + $0x30] sm:$0xf]
      %v395 = vld [vmem:[%s350 + $0x34] sm:$0xf]
      %v396 = vld [vmem:[%s350 + $0x38] sm:$0xf]
      %v397 = vld [vmem:[%s350 + $0x3c] sm:$0xf]
      %v398 = vld [vmem:[%s350 + $0x40] sm:$0xf]
      %v399 = vld [vmem:[%s350 + $0x44] sm:$0xf]
      %v400 = vld [vmem:[%s358] sm:$0xf]
      %v401 = vld [vmem:[%s358 + $0x4] sm:$0xf]
      %v404 = vunpack.c.l.b16 %v380
      %v405 = vunpack.c.l.b16 %v381
      %v406 = vpack.c.b16 %v405, %v404
      %v425 = vunpack.c.l.b16 %v382
      %v426 = vunpack.c.l.b16 %v383
      %v427 = vunpack.c.l.b16 %v384
      %v428 = vunpack.c.l.b16 %v385
      %v429 = vunpack.c.l.b16 %v386
      %v430 = vunpack.c.l.b16 %v387
      %v431 = vunpack.c.l.b16 %v388
      %v432 = vunpack.c.l.b16 %v389
      %v433 = vunpack.c.l.b16 %v390
      %v434 = vunpack.c.l.b16 %v391
      %v435 = vunpack.c.l.b16 %v392
      %v436 = vunpack.c.l.b16 %v393
      %v437 = vunpack.c.l.b16 %v394
      %v438 = vunpack.c.l.b16 %v395
      %v439 = vunpack.c.l.b16 %v396
      %v440 = vunpack.c.l.b16 %v397
      %v441 = vunpack.c.l.b16 %v398
      %v442 = vunpack.c.l.b16 %v399
      %v443 = vpack.c.b16 %v426, %v425
      %v444 = vpack.c.b16 %v428, %v427
      %v445 = vpack.c.b16 %v430, %v429
      %v446 = vpack.c.b16 %v432, %v431
      %v447 = vpack.c.b16 %v434, %v433
      %v448 = vpack.c.b16 %v436, %v435
      %v449 = vpack.c.b16 %v438, %v437
      %v450 = vpack.c.b16 %v440, %v439
      %v451 = vpack.c.b16 %v442, %v441
      %v454 = vunpack.c.l.b16 %v400
      %v455 = vunpack.c.l.b16 %v401
      %v456 = vpack.c.b16 %v455, %v454
      %v457 = vld [vmem:[%s3] sm:$0xf]
      %v458 = vld [vmem:[%s3 + $0x4] sm:$0xf]
      %v459 = vld [vmem:[%s3 + $0x8] sm:$0xf]
      %v460 = vld [vmem:[%s3 + $0xc] sm:$0xf]
      %v461 = vld [vmem:[%s3 + $0x10] sm:$0xf]
      %v462 = vld [vmem:[%s3 + $0x14] sm:$0xf]
      %v463 = vld [vmem:[%s3 + $0x18] sm:$0xf]
      %v464 = vld [vmem:[%s3 + $0x1c] sm:$0xf]
      %v465 = vld [vmem:[%s3 + $0x20] sm:$0xf]
      %vm466 = vcmask 1042432
      %v467 = vrot.slane %v406, 5
      %v468 = vrot.slane %v443, 5
      %v469 = vsel %vm466, %v467, %v468
      %v470 = vrot.slane %v444, 5
      %v471 = vsel %vm466, %v468, %v470
      %v472 = vrot.slane %v445, 5
      %v473 = vsel %vm466, %v470, %v472
      %v474 = vrot.slane %v446, 5
      %v475 = vsel %vm466, %v472, %v474
      %v476 = vrot.slane %v447, 5
      %v477 = vsel %vm466, %v474, %v476
      %v478 = vrot.slane %v448, 5
      %v479 = vsel %vm466, %v476, %v478
      %v480 = vrot.slane %v449, 5
      %v481 = vsel %vm466, %v478, %v480
      %v482 = vrot.slane %v450, 5
      %v483 = vsel %vm466, %v480, %v482
      %v484 = vrot.slane %v451, 5
      %v485 = vsel %vm466, %v482, %v484
      %vm486 = vcmask 64512
      %v488 = vsel %vm486, %v469, 0
      %v491 = vsel %vm486, %v471, 0
      %v494 = vsel %vm486, %v473, 0
      %v497 = vsel %vm486, %v475, 0
      %v500 = vsel %vm486, %v477, 0
      %v503 = vsel %vm486, %v479, 0
      %v506 = vsel %vm486, %v481, 0
      %v509 = vsel %vm486, %v483, 0
      %v512 = vsel %vm486, %v485, 0
      %vm514 = vcmask 1043456
      %v516 = vsel %vm514, %v458, 0
      %518 = vmatprep.subr.bf16.mxu0 0
      %519 = vmatpush1.bf16.msra.mxu0 %v516
      %520 = vmatprep.subr.bf16.mxu0 0
      %521 = vmatpush1.bf16.msra.mxu0 0
      %522 = vmatprep.subr.bf16.mxu0 0
      %523 = vmatpush1.bf16.msra.mxu0 0
      %524 = vmatprep.subr.bf16.mxu0 0
      %525 = vmatpush1.bf16.msra.mxu0 0
      %526 = vmatprep.subr.bf16.mxu0 0
      %527 = vmatpush1.bf16.msra.mxu0 0
      %528 = vmatprep.subr.bf16.mxu0 0
      %529 = vmatpush1.bf16.msra.mxu0 0
      %530 = vmatprep.subr.bf16.mxu0 0
      %531 = vmatpush1.bf16.msra.mxu0 0
      %532 = vmatprep.subr.bf16.mxu0 0
      %533 = vmatpush1.bf16.msra.mxu0 0
      %534 = vmatprep.subr.bf16.mxu0 0
      %535 = vmatpush1.bf16.msra.mxu0 0
      %536 = vmatprep.subr.bf16.mxu0 0
      %537 = vmatpush1.bf16.msra.mxu0 0
      %538 = vmatprep.subr.bf16.mxu0 0
      %539 = vmatpush1.bf16.msra.mxu0 0
      %540 = vmatprep.subr.bf16.mxu0 0
      %541 = vmatpush1.bf16.msra.mxu0 0
      %542 = vmatprep.subr.bf16.mxu0 0
      %543 = vmatpush1.bf16.msra.mxu0 0
      %544 = vmatprep.subr.bf16.mxu0 0
      %545 = vmatpush1.bf16.msra.mxu0 0
      %546 = vmatprep.subr.bf16.mxu0 0
      %547 = vmatpush1.bf16.msra.mxu0 0
      %548 = vmatprep.subr.bf16.mxu0 0
      %549 = vmatpush1.bf16.msra.mxu0 0
      %550 = vmatprep.mubr.bf16.mxu0 0
      %551 = vmatmul.mubr.bf16.gmra.mrb[0].mxu0 %v488
      %v552 = vpop.f32.mrb[0].mxu0
      %v553 = vadd.f32 0.0, %v552
      %v554 = vpop.f32.mrb[0].mxu0
      %v555 = vpop.f32.mrb[0].mxu0
      %v556 = vadd.f32 0.0, %v555
      %v557 = vpop.f32.mrb[0].mxu0
      %558 = vmatprep.mubr.bf16.mxu0 0
      %559 = vmatmul.mubr.bf16.gmra.mrb[0].mxu0 %v491
      %v560 = vpop.f32.mrb[0].mxu0
      %v561 = vadd.f32 0.0, %v560
      %v562 = vpop.f32.mrb[0].mxu0
      %v563 = vpop.f32.mrb[0].mxu0
      %v564 = vadd.f32 0.0, %v563
      %v565 = vpop.f32.mrb[0].mxu0
      %566 = vmatprep.mubr.bf16.mxu0 0
      %567 = vmatmul.mubr.bf16.gmra.mrb[0].mxu0 %v494
      %v568 = vpop.f32.mrb[0].mxu0
      %v569 = vadd.f32 0.0, %v568
      %v570 = vpop.f32.mrb[0].mxu0
      %v571 = vpop.f32.mrb[0].mxu0
      %v572 = vadd.f32 0.0, %v571
      %v573 = vpop.f32.mrb[0].mxu0
      %574 = vmatprep.mubr.bf16.mxu0 0
      %575 = vmatmul.mubr.bf16.gmra.mrb[0].mxu0 %v497
      %v576 = vpop.f32.mrb[0].mxu0
      %v577 = vadd.f32 0.0, %v576
      %v578 = vpop.f32.mrb[0].mxu0
      %v579 = vpop.f32.mrb[0].mxu0
      %v580 = vadd.f32 0.0, %v579
      %v581 = vpop.f32.mrb[0].mxu0
      %582 = vmatprep.mubr.bf16.mxu0 0
      %583 = vmatmul.mubr.bf16.gmra.mrb[0].mxu0 %v500
      %v584 = vpop.f32.mrb[0].mxu0
      %v585 = vadd.f32 0.0, %v584
      %v586 = vpop.f32.mrb[0].mxu0
      %v587 = vpop.f32.mrb[0].mxu0
      %v588 = vadd.f32 0.0, %v587
      %v589 = vpop.f32.mrb[0].mxu0
      %590 = vmatprep.mubr.bf16.mxu0 0
      %591 = vmatmul.mubr.bf16.gmra.mrb[0].mxu0 %v503
      %v592 = vpop.f32.mrb[0].mxu0
      %v593 = vadd.f32 0.0, %v592
      %v594 = vpop.f32.mrb[0].mxu0
      %v595 = vpop.f32.mrb[0].mxu0
      %v596 = vadd.f32 0.0, %v595
      %v597 = vpop.f32.mrb[0].mxu0
      %598 = vmatprep.mubr.bf16.mxu0 0
      %599 = vmatmul.mubr.bf16.gmra.mrb[0].mxu0 %v506
      %v600 = vpop.f32.mrb[0].mxu0
      %v601 = vadd.f32 0.0, %v600
      %v602 = vpop.f32.mrb[0].mxu0
      %v603 = vpop.f32.mrb[0].mxu0
      %v604 = vadd.f32 0.0, %v603
      %v605 = vpop.f32.mrb[0].mxu0
      %606 = vmatprep.mubr.bf16.mxu0 0
      %607 = vmatmul.mubr.bf16.gmra.mrb[0].mxu0 %v509
      %v608 = vpop.f32.mrb[0].mxu0
      %v609 = vadd.f32 0.0, %v608
      %v610 = vpop.f32.mrb[0].mxu0
      %v611 = vpop.f32.mrb[0].mxu0
      %v612 = vadd.f32 0.0, %v611
      %v613 = vpop.f32.mrb[0].mxu0
      %614 = vmatprep.mubr.bf16.mxu0 0
      %615 = vmatmul.mubr.bf16.gmra.mrb[0].mxu0 %v512
      %v616 = vpop.f32.mrb[0].mxu0
      %v617 = vadd.f32 0.0, %v616
      %v618 = vpop.f32.mrb[0].mxu0
      %v619 = vpop.f32.mrb[0].mxu0
      %v620 = vadd.f32 0.0, %v619
      %v621 = vpop.f32.mrb[0].mxu0
      %622 = vdwg.mxu0
      %vm623 = vsmask.f32 3328
      %v625 = vshrl.u32 %v406, 16
      %v627 = vrot.slane %v625, 4
      %v628 = vshll.u32 %v406, 16
      %v630 = vrot.slane %v628, 5
      %v631 = vor.u32 %v627, %v630
      %v633 = vshrl.u32 %v443, 16
      %v635 = vrot.slane %v633, 4
      %v636 = vshll.u32 %v443, 16
      %v638 = vrot.slane %v636, 5
      %v639 = vor.u32 %v635, %v638
      %v640 = vsel %vm623, %v631, %v639
      %v642 = vshrl.u32 %v444, 16
      %v644 = vrot.slane %v642, 4
      %v645 = vshll.u32 %v444, 16
      %v647 = vrot.slane %v645, 5
      %v648 = vor.u32 %v644, %v647
      %v649 = vsel %vm623, %v639, %v648
      %v651 = vshrl.u32 %v445, 16
      %v653 = vrot.slane %v651, 4
      %v654 = vshll.u32 %v445, 16
      %v656 = vrot.slane %v654, 5
      %v657 = vor.u32 %v653, %v656
      %v658 = vsel %vm623, %v648, %v657
      %v660 = vshrl.u32 %v446, 16
      %v662 = vrot.slane %v660, 4
      %v663 = vshll.u32 %v446, 16
      %v665 = vrot.slane %v663, 5
      %v666 = vor.u32 %v662, %v665
      %v667 = vsel %vm623, %v657, %v666
      %v669 = vshrl.u32 %v447, 16
      %v671 = vrot.slane %v669, 4
      %v672 = vshll.u32 %v447, 16
      %v674 = vrot.slane %v672, 5
      %v675 = vor.u32 %v671, %v674
      %v676 = vsel %vm623, %v666, %v675
      %v678 = vshrl.u32 %v448, 16
      %v680 = vrot.slane %v678, 4
      %v681 = vshll.u32 %v448, 16
      %v683 = vrot.slane %v681, 5
      %v684 = vor.u32 %v680, %v683
      %v685 = vsel %vm623, %v675, %v684
      %v687 = vshrl.u32 %v449, 16
      %v689 = vrot.slane %v687, 4
      %v690 = vshll.u32 %v449, 16
      %v692 = vrot.slane %v690, 5
      %v693 = vor.u32 %v689, %v692
      %v694 = vsel %vm623, %v684, %v693
      %v696 = vshrl.u32 %v450, 16
      %v698 = vrot.slane %v696, 4
      %v699 = vshll.u32 %v450, 16
      %v701 = vrot.slane %v699, 5
      %v702 = vor.u32 %v698, %v701
      %v703 = vsel %vm623, %v693, %v702
      %v705 = vshrl.u32 %v451, 16
      %v707 = vrot.slane %v705, 4
      %v708 = vshll.u32 %v451, 16
      %v710 = vrot.slane %v708, 5
      %v711 = vor.u32 %v707, %v710
      %v712 = vsel %vm623, %v702, %v711
      %v714 = vsel %vm486, %v640, 0
      %v717 = vsel %vm486, %v649, 0
      %v720 = vsel %vm486, %v658, 0
      %v723 = vsel %vm486, %v667, 0
      %v726 = vsel %vm486, %v676, 0
      %v729 = vsel %vm486, %v685, 0
      %v732 = vsel %vm486, %v694, 0
      %v735 = vsel %vm486, %v703, 0
      %v738 = vsel %vm486, %v712, 0
      %v741 = vsel %vm514, %v457, 0
      %743 = vmatprep.subr.bf16.mxu0 0
      %744 = vmatpush1.bf16.msra.mxu0 %v741
      %745 = vmatprep.subr.bf16.mxu0 0
      %746 = vmatpush1.bf16.msra.mxu0 0
      %747 = vmatprep.subr.bf16.mxu0 0
      %748 = vmatpush1.bf16.msra.mxu0 0
      %749 = vmatprep.subr.bf16.mxu0 0
      %750 = vmatpush1.bf16.msra.mxu0 0
      %751 = vmatprep.subr.bf16.mxu0 0
      %752 = vmatpush1.bf16.msra.mxu0 0
      %753 = vmatprep.subr.bf16.mxu0 0
      %754 = vmatpush1.bf16.msra.mxu0 0
      %755 = vmatprep.subr.bf16.mxu0 0
      %756 = vmatpush1.bf16.msra.mxu0 0
      %757 = vmatprep.subr.bf16.mxu0 0
      %758 = vmatpush1.bf16.msra.mxu0 0
      %759 = vmatprep.subr.bf16.mxu0 0
      %760 = vmatpush1.bf16.msra.mxu0 0
      %761 = vmatprep.subr.bf16.mxu0 0
      %762 = vmatpush1.bf16.msra.mxu0 0
      %763 = vmatprep.subr.bf16.mxu0 0
      %764 = vmatpush1.bf16.msra.mxu0 0
      %765 = vmatprep.subr.bf16.mxu0 0
      %766 = vmatpush1.bf16.msra.mxu0 0
      %767 = vmatprep.subr.bf16.mxu0 0
      %768 = vmatpush1.bf16.msra.mxu0 0
      %769 = vmatprep.subr.bf16.mxu0 0
      %770 = vmatpush1.bf16.msra.mxu0 0
      %771 = vmatprep.subr.bf16.mxu0 0
      %772 = vmatpush1.bf16.msra.mxu0 0
      %773 = vmatprep.subr.bf16.mxu0 0
      %774 = vmatpush1.bf16.msra.mxu0 0
      %775 = vmatprep.mubr.bf16.mxu0 0
      %776 = vmatmul.mubr.bf16.gmra.mrb[0].mxu0 %v714
      %v777 = vpop.f32.mrb[0].mxu0
      %v778 = vadd.f32 %v553, %v777
      %v779 = vpop.f32.mrb[0].mxu0
      %v780 = vpop.f32.mrb[0].mxu0
      %v781 = vadd.f32 %v556, %v780
      %v782 = vpop.f32.mrb[0].mxu0
      %783 = vmatprep.mubr.bf16.mxu0 0
      %784 = vmatmul.mubr.bf16.gmra.mrb[0].mxu0 %v717
      %v785 = vpop.f32.mrb[0].mxu0
      %v786 = vadd.f32 %v561, %v785
      %v787 = vpop.f32.mrb[0].mxu0
      %v788 = vpop.f32.mrb[0].mxu0
      %v789 = vadd.f32 %v564, %v788
      %v790 = vpop.f32.mrb[0].mxu0
      %791 = vmatprep.mubr.bf16.mxu0 0
      %792 = vmatmul.mubr.bf16.gmra.mrb[0].mxu0 %v720
      %v793 = vpop.f32.mrb[0].mxu0
      %v794 = vadd.f32 %v569, %v793
      %v795 = vpop.f32.mrb[0].mxu0
      %v796 = vpop.f32.mrb[0].mxu0
      %v797 = vadd.f32 %v572, %v796
      %v798 = vpop.f32.mrb[0].mxu0
      %799 = vmatprep.mubr.bf16.mxu0 0
      %800 = vmatmul.mubr.bf16.gmra.mrb[0].mxu0 %v723
      %v801 = vpop.f32.mrb[0].mxu0
      %v802 = vadd.f32 %v577, %v801
      %v803 = vpop.f32.mrb[0].mxu0
      %v804 = vpop.f32.mrb[0].mxu0
      %v805 = vadd.f32 %v580, %v804
      %v806 = vpop.f32.mrb[0].mxu0
      %807 = vmatprep.mubr.bf16.mxu0 0
      %808 = vmatmul.mubr.bf16.gmra.mrb[0].mxu0 %v726
      %v809 = vpop.f32.mrb[0].mxu0
      %v810 = vadd.f32 %v585, %v809
      %v811 = vpop.f32.mrb[0].mxu0
      %v812 = vpop.f32.mrb[0].mxu0
      %v813 = vadd.f32 %v588, %v812
      %v814 = vpop.f32.mrb[0].mxu0
      %815 = vmatprep.mubr.bf16.mxu0 0
      %816 = vmatmul.mubr.bf16.gmra.mrb[0].mxu0 %v729
      %v817 = vpop.f32.mrb[0].mxu0
      %v818 = vadd.f32 %v593, %v817
      %v819 = vpop.f32.mrb[0].mxu0
      %v820 = vpop.f32.mrb[0].mxu0
      %v821 = vadd.f32 %v596, %v820
      %v822 = vpop.f32.mrb[0].mxu0
      %823 = vmatprep.mubr.bf16.mxu0 0
      %824 = vmatmul.mubr.bf16.gmra.mrb[0].mxu0 %v732
      %v825 = vpop.f32.mrb[0].mxu0
      %v826 = vadd.f32 %v601, %v825
      %v827 = vpop.f32.mrb[0].mxu0
      %v828 = vpop.f32.mrb[0].mxu0
      %v829 = vadd.f32 %v604, %v828
      %v830 = vpop.f32.mrb[0].mxu0
      %831 = vmatprep.mubr.bf16.mxu0 0
      %832 = vmatmul.mubr.bf16.gmra.mrb[0].mxu0 %v735
      %v833 = vpop.f32.mrb[0].mxu0
      %v834 = vadd.f32 %v609, %v833
      %v835 = vpop.f32.mrb[0].mxu0
      %v836 = vpop.f32.mrb[0].mxu0
      %v837 = vadd.f32 %v612, %v836
      %v838 = vpop.f32.mrb[0].mxu0
      %839 = vmatprep.mubr.bf16.mxu0 0
      %840 = vmatmul.mubr.bf16.gmra.mrb[0].mxu0 %v738
      %v841 = vpop.f32.mrb[0].mxu0
      %v842 = vadd.f32 %v617, %v841
      %v843 = vpop.f32.mrb[0].mxu0
      %v844 = vpop.f32.mrb[0].mxu0
      %v845 = vadd.f32 %v620, %v844
      %v846 = vpop.f32.mrb[0].mxu0
      %847 = vdwg.mxu0
      %vm848 = vsmask.f32 2304
      %v849 = vrot.slane %v625, 5
      %v850 = vrot.slane %v628, 6
      %v851 = vor.u32 %v849, %v850
      %v852 = vrot.slane %v633, 5
      %v853 = vrot.slane %v636, 6
      %v854 = vor.u32 %v852, %v853
      %v855 = vsel %vm848, %v851, %v854
      %v856 = vrot.slane %v642, 5
      %v857 = vrot.slane %v645, 6
      %v858 = vor.u32 %v856, %v857
      %v859 = vsel %vm848, %v854, %v858
      %v860 = vrot.slane %v651, 5
      %v861 = vrot.slane %v654, 6
      %v862 = vor.u32 %v860, %v861
      %v863 = vsel %vm848, %v858, %v862
      %v864 = vrot.slane %v660, 5
      %v865 = vrot.slane %v663, 6
      %v866 = vor.u32 %v864, %v865
      %v867 = vsel %vm848, %v862, %v866
      %v868 = vrot.slane %v669, 5
      %v869 = vrot.slane %v672, 6
      %v870 = vor.u32 %v868, %v869
      %v871 = vsel %vm848, %v866, %v870
      %v872 = vrot.slane %v678, 5
      %v873 = vrot.slane %v681, 6
      %v874 = vor.u32 %v872, %v873
      %v875 = vsel %vm848, %v870, %v874
      %v876 = vrot.slane %v687, 5
      %v877 = vrot.slane %v690, 6
      %v878 = vor.u32 %v876, %v877
      %v879 = vsel %vm848, %v874, %v878
      %v880 = vrot.slane %v696, 5
      %v881 = vrot.slane %v699, 6
      %v882 = vor.u32 %v880, %v881
      %v883 = vsel %vm848, %v878, %v882
      %v884 = vrot.slane %v705, 5
      %v885 = vrot.slane %v708, 6
      %v886 = vor.u32 %v884, %v885
      %v887 = vsel %vm848, %v882, %v886
      %v889 = vsel %vm486, %v855, 0
      %v892 = vsel %vm486, %v859, 0
      %v895 = vsel %vm486, %v863, 0
      %v898 = vsel %vm486, %v867, 0
      %v901 = vsel %vm486, %v871, 0
      %v904 = vsel %vm486, %v875, 0
      %v907 = vsel %vm486, %v879, 0
      %v910 = vsel %vm486, %v883, 0
      %v913 = vsel %vm486, %v887, 0
      %v916 = vsel %vm514, %v459, 0
      %918 = vmatprep.subr.bf16.mxu0 0
      %919 = vmatpush1.bf16.msra.mxu0 %v916
      %920 = vmatprep.subr.bf16.mxu0 0
      %921 = vmatpush1.bf16.msra.mxu0 0
      %922 = vmatprep.subr.bf16.mxu0 0
      %923 = vmatpush1.bf16.msra.mxu0 0
      %924 = vmatprep.subr.bf16.mxu0 0
      %925 = vmatpush1.bf16.msra.mxu0 0
      %926 = vmatprep.subr.bf16.mxu0 0
      %927 = vmatpush1.bf16.msra.mxu0 0
      %928 = vmatprep.subr.bf16.mxu0 0
      %929 = vmatpush1.bf16.msra.mxu0 0
      %930 = vmatprep.subr.bf16.mxu0 0
      %931 = vmatpush1.bf16.msra.mxu0 0
      %932 = vmatprep.subr.bf16.mxu0 0
      %933 = vmatpush1.bf16.msra.mxu0 0
      %934 = vmatprep.subr.bf16.mxu0 0
      %935 = vmatpush1.bf16.msra.mxu0 0
      %936 = vmatprep.subr.bf16.mxu0 0
      %937 = vmatpush1.bf16.msra.mxu0 0
      %938 = vmatprep.subr.bf16.mxu0 0
      %939 = vmatpush1.bf16.msra.mxu0 0
      %940 = vmatprep.subr.bf16.mxu0 0
      %941 = vmatpush1.bf16.msra.mxu0 0
      %942 = vmatprep.subr.bf16.mxu0 0
      %943 = vmatpush1.bf16.msra.mxu0 0
      %944 = vmatprep.subr.bf16.mxu0 0
      %945 = vmatpush1.bf16.msra.mxu0 0
      %946 = vmatprep.subr.bf16.mxu0 0
      %947 = vmatpush1.bf16.msra.mxu0 0
      %948 = vmatprep.subr.bf16.mxu0 0
      %949 = vmatpush1.bf16.msra.mxu0 0
      %950 = vmatprep.mubr.bf16.mxu0 0
      %951 = vmatmul.mubr.bf16.gmra.mrb[0].mxu0 %v889
      %v952 = vpop.f32.mrb[0].mxu0
      %v953 = vadd.f32 0.0, %v952
      %v954 = vpop.f32.mrb[0].mxu0
      %v955 = vpop.f32.mrb[0].mxu0
      %v956 = vadd.f32 0.0, %v955
      %v957 = vpop.f32.mrb[0].mxu0
      %958 = vmatprep.mubr.bf16.mxu0 0
      %959 = vmatmul.mubr.bf16.gmra.mrb[0].mxu0 %v892
      %v960 = vpop.f32.mrb[0].mxu0
      %v961 = vadd.f32 0.0, %v960
      %v962 = vpop.f32.mrb[0].mxu0
      %v963 = vpop.f32.mrb[0].mxu0
      %v964 = vadd.f32 0.0, %v963
      %v965 = vpop.f32.mrb[0].mxu0
      %966 = vmatprep.mubr.bf16.mxu0 0
      %967 = vmatmul.mubr.bf16.gmra.mrb[0].mxu0 %v895
      %v968 = vpop.f32.mrb[0].mxu0
      %v969 = vadd.f32 0.0, %v968
      %v970 = vpop.f32.mrb[0].mxu0
      %v971 = vpop.f32.mrb[0].mxu0
      %v972 = vadd.f32 0.0, %v971
      %v973 = vpop.f32.mrb[0].mxu0
      %974 = vmatprep.mubr.bf16.mxu0 0
      %975 = vmatmul.mubr.bf16.gmra.mrb[0].mxu0 %v898
      %v976 = vpop.f32.mrb[0].mxu0
      %v977 = vadd.f32 0.0, %v976
      %v978 = vpop.f32.mrb[0].mxu0
      %v979 = vpop.f32.mrb[0].mxu0
      %v980 = vadd.f32 0.0, %v979
      %v981 = vpop.f32.mrb[0].mxu0
      %982 = vmatprep.mubr.bf16.mxu0 0
      %983 = vmatmul.mubr.bf16.gmra.mrb[0].mxu0 %v901
      %v984 = vpop.f32.mrb[0].mxu0
      %v985 = vadd.f32 0.0, %v984
      %v986 = vpop.f32.mrb[0].mxu0
      %v987 = vpop.f32.mrb[0].mxu0
      %v988 = vadd.f32 0.0, %v987
      %v989 = vpop.f32.mrb[0].mxu0
      %990 = vmatprep.mubr.bf16.mxu0 0
      %991 = vmatmul.mubr.bf16.gmra.mrb[0].mxu0 %v904
      %v992 = vpop.f32.mrb[0].mxu0
      %v993 = vadd.f32 0.0, %v992
      %v994 = vpop.f32.mrb[0].mxu0
      %v995 = vpop.f32.mrb[0].mxu0
      %v996 = vadd.f32 0.0, %v995
      %v997 = vpop.f32.mrb[0].mxu0
      %998 = vmatprep.mubr.bf16.mxu0 0
      %999 = vmatmul.mubr.bf16.gmra.mrb[0].mxu0 %v907
      %v1000 = vpop.f32.mrb[0].mxu0
      %v1001 = vadd.f32 0.0, %v1000
      %v1002 = vpop.f32.mrb[0].mxu0
      %v1003 = vpop.f32.mrb[0].mxu0
      %v1004 = vadd.f32 0.0, %v1003
      %v1005 = vpop.f32.mrb[0].mxu0
      %1006 = vmatprep.mubr.bf16.mxu0 0
      %1007 = vmatmul.mubr.bf16.gmra.mrb[0].mxu0 %v910
      %v1008 = vpop.f32.mrb[0].mxu0
      %v1009 = vadd.f32 0.0, %v1008
      %v1010 = vpop.f32.mrb[0].mxu0
      %v1011 = vpop.f32.mrb[0].mxu0
      %v1012 = vadd.f32 0.0, %v1011
      %v1013 = vpop.f32.mrb[0].mxu0
      %1014 = vmatprep.mubr.bf16.mxu0 0
      %1015 = vmatmul.mubr.bf16.gmra.mrb[0].mxu0 %v913
      %v1016 = vpop.f32.mrb[0].mxu0
      %v1017 = vadd.f32 0.0, %v1016
      %v1018 = vpop.f32.mrb[0].mxu0
      %v1019 = vpop.f32.mrb[0].mxu0
      %v1020 = vadd.f32 0.0, %v1019
      %v1021 = vpop.f32.mrb[0].mxu0
      %1022 = vdwg.mxu0
      %v1023 = vadd.f32 %v778, %v953
      %v1024 = vadd.f32 %v781, %v956
      %v1025 = vadd.f32 %v786, %v961
      %v1026 = vadd.f32 %v789, %v964
      %v1027 = vadd.f32 %v794, %v969
      %v1028 = vadd.f32 %v797, %v972
      %v1029 = vadd.f32 %v802, %v977
      %v1030 = vadd.f32 %v805, %v980
      %v1031 = vadd.f32 %v810, %v985
      %v1032 = vadd.f32 %v813, %v988
      %v1033 = vadd.f32 %v818, %v993
      %v1034 = vadd.f32 %v821, %v996
      %v1035 = vadd.f32 %v826, %v1001
      %v1036 = vadd.f32 %v829, %v1004
      %v1037 = vadd.f32 %v834, %v1009
      %v1038 = vadd.f32 %v837, %v1012
      %v1039 = vadd.f32 %v842, %v1017
      %v1040 = vadd.f32 %v845, %v1020
      %vm1041 = vsmask.f32 256
      %v1042 = vrot.slane %v625, 7
      %v1043 = vrot.slane %v633, 7
      %v1044 = vor.u32 %v1043, %v636
      %v1045 = vsel %vm1041, %v1042, %v1044
      %v1046 = vrot.slane %v642, 7
      %v1047 = vor.u32 %v1046, %v645
      %v1048 = vsel %vm1041, %v1043, %v1047
      %v1049 = vrot.slane %v651, 7
      %v1050 = vor.u32 %v1049, %v654
      %v1051 = vsel %vm1041, %v1046, %v1050
      %v1052 = vrot.slane %v660, 7
      %v1053 = vor.u32 %v1052, %v663
      %v1054 = vsel %vm1041, %v1049, %v1053
      %v1055 = vrot.slane %v669, 7
      %v1056 = vor.u32 %v1055, %v672
      %v1057 = vsel %vm1041, %v1052, %v1056
      %v1058 = vrot.slane %v678, 7
      %v1059 = vor.u32 %v1058, %v681
      %v1060 = vsel %vm1041, %v1055, %v1059
      %v1061 = vrot.slane %v687, 7
      %v1062 = vor.u32 %v1061, %v690
      %v1063 = vsel %vm1041, %v1058, %v1062
      %v1064 = vrot.slane %v696, 7
      %v1065 = vor.u32 %v1064, %v699
      %v1066 = vsel %vm1041, %v1061, %v1065
      %v1067 = vrot.slane %v705, 7
      %v1068 = vor.u32 %v1067, %v708
      %v1069 = vsel %vm1041, %v1064, %v1068
      %v1071 = vsel %vm486, %v1045, 0
      %v1074 = vsel %vm486, %v1048, 0
      %v1077 = vsel %vm486, %v1051, 0
      %v1080 = vsel %vm486, %v1054, 0
      %v1083 = vsel %vm486, %v1057, 0
      %v1086 = vsel %vm486, %v1060, 0
      %v1089 = vsel %vm486, %v1063, 0
      %v1092 = vsel %vm486, %v1066, 0
      %v1095 = vsel %vm486, %v1069, 0
      %v1098 = vsel %vm514, %v460, 0
      %1100 = vmatprep.subr.bf16.mxu0 0
      %1101 = vmatpush1.bf16.msra.mxu0 %v1098
      %1102 = vmatprep.subr.bf16.mxu0 0
      %1103 = vmatpush1.bf16.msra.mxu0 0
      %1104 = vmatprep.subr.bf16.mxu0 0
      %1105 = vmatpush1.bf16.msra.mxu0 0
      %1106 = vmatprep.subr.bf16.mxu0 0
      %1107 = vmatpush1.bf16.msra.mxu0 0
      %1108 = vmatprep.subr.bf16.mxu0 0
      %1109 = vmatpush1.bf16.msra.mxu0 0
      %1110 = vmatprep.subr.bf16.mxu0 0
      %1111 = vmatpush1.bf16.msra.mxu0 0
      %1112 = vmatprep.subr.bf16.mxu0 0
      %1113 = vmatpush1.bf16.msra.mxu0 0
      %1114 = vmatprep.subr.bf16.mxu0 0
      %1115 = vmatpush1.bf16.msra.mxu0 0
      %1116 = vmatprep.subr.bf16.mxu0 0
      %1117 = vmatpush1.bf16.msra.mxu0 0
      %1118 = vmatprep.subr.bf16.mxu0 0
      %1119 = vmatpush1.bf16.msra.mxu0 0
      %1120 = vmatprep.subr.bf16.mxu0 0
      %1121 = vmatpush1.bf16.msra.mxu0 0
      %1122 = vmatprep.subr.bf16.mxu0 0
      %1123 = vmatpush1.bf16.msra.mxu0 0
      %1124 = vmatprep.subr.bf16.mxu0 0
      %1125 = vmatpush1.bf16.msra.mxu0 0
      %1126 = vmatprep.subr.bf16.mxu0 0
      %1127 = vmatpush1.bf16.msra.mxu0 0
      %1128 = vmatprep.subr.bf16.mxu0 0
      %1129 = vmatpush1.bf16.msra.mxu0 0
      %1130 = vmatprep.subr.bf16.mxu0 0
      %1131 = vmatpush1.bf16.msra.mxu0 0
      %1132 = vmatprep.mubr.bf16.mxu0 0
      %1133 = vmatmul.mubr.bf16.gmra.mrb[0].mxu0 %v1071
      %v1134 = vpop.f32.mrb[0].mxu0
      %v1135 = vadd.f32 0.0, %v1134
      %v1136 = vpop.f32.mrb[0].mxu0
      %v1137 = vpop.f32.mrb[0].mxu0
      %v1138 = vadd.f32 0.0, %v1137
      %v1139 = vpop.f32.mrb[0].mxu0
      %1140 = vmatprep.mubr.bf16.mxu0 0
      %1141 = vmatmul.mubr.bf16.gmra.mrb[0].mxu0 %v1074
      %v1142 = vpop.f32.mrb[0].mxu0
      %v1143 = vadd.f32 0.0, %v1142
      %v1144 = vpop.f32.mrb[0].mxu0
      %v1145 = vpop.f32.mrb[0].mxu0
      %v1146 = vadd.f32 0.0, %v1145
      %v1147 = vpop.f32.mrb[0].mxu0
      %1148 = vmatprep.mubr.bf16.mxu0 0
      %1149 = vmatmul.mubr.bf16.gmra.mrb[0].mxu0 %v1077
      %v1150 = vpop.f32.mrb[0].mxu0
      %v1151 = vadd.f32 0.0, %v1150
      %v1152 = vpop.f32.mrb[0].mxu0
      %v1153 = vpop.f32.mrb[0].mxu0
      %v1154 = vadd.f32 0.0, %v1153
      %v1155 = vpop.f32.mrb[0].mxu0
      %1156 = vmatprep.mubr.bf16.mxu0 0
      %1157 = vmatmul.mubr.bf16.gmra.mrb[0].mxu0 %v1080
      %v1158 = vpop.f32.mrb[0].mxu0
      %v1159 = vadd.f32 0.0, %v1158
      %v1160 = vpop.f32.mrb[0].mxu0
      %v1161 = vpop.f32.mrb[0].mxu0
      %v1162 = vadd.f32 0.0, %v1161
      %v1163 = vpop.f32.mrb[0].mxu0
      %1164 = vmatprep.mubr.bf16.mxu0 0
      %1165 = vmatmul.mubr.bf16.gmra.mrb[0].mxu0 %v1083
      %v1166 = vpop.f32.mrb[0].mxu0
      %v1167 = vadd.f32 0.0, %v1166
      %v1168 = vpop.f32.mrb[0].mxu0
      %v1169 = vpop.f32.mrb[0].mxu0
      %v1170 = vadd.f32 0.0, %v1169
      %v1171 = vpop.f32.mrb[0].mxu0
      %1172 = vmatprep.mubr.bf16.mxu0 0
      %1173 = vmatmul.mubr.bf16.gmra.mrb[0].mxu0 %v1086
      %v1174 = vpop.f32.mrb[0].mxu0
      %v1175 = vadd.f32 0.0, %v1174
      %v1176 = vpop.f32.mrb[0].mxu0
      %v1177 = vpop.f32.mrb[0].mxu0
      %v1178 = vadd.f32 0.0, %v1177
      %v1179 = vpop.f32.mrb[0].mxu0
      %1180 = vmatprep.mubr.bf16.mxu0 0
      %1181 = vmatmul.mubr.bf16.gmra.mrb[0].mxu0 %v1089
      %v1182 = vpop.f32.mrb[0].mxu0
      %v1183 = vadd.f32 0.0, %v1182
      %v1184 = vpop.f32.mrb[0].mxu0
      %v1185 = vpop.f32.mrb[0].mxu0
      %v1186 = vadd.f32 0.0, %v1185
      %v1187 = vpop.f32.mrb[0].mxu0
      %1188 = vmatprep.mubr.bf16.mxu0 0
      %1189 = vmatmul.mubr.bf16.gmra.mrb[0].mxu0 %v1092
      %v1190 = vpop.f32.mrb[0].mxu0
      %v1191 = vadd.f32 0.0, %v1190
      %v1192 = vpop.f32.mrb[0].mxu0
      %v1193 = vpop.f32.mrb[0].mxu0
      %v1194 = vadd.f32 0.0, %v1193
      %v1195 = vpop.f32.mrb[0].mxu0
      %1196 = vmatprep.mubr.bf16.mxu0 0
      %1197 = vmatmul.mubr.bf16.gmra.mrb[0].mxu0 %v1095
      %v1198 = vpop.f32.mrb[0].mxu0
      %v1199 = vadd.f32 0.0, %v1198
      %v1200 = vpop.f32.mrb[0].mxu0
      %v1201 = vpop.f32.mrb[0].mxu0
      %v1202 = vadd.f32 0.0, %v1201
      %v1203 = vpop.f32.mrb[0].mxu0
      %1204 = vdwg.mxu0
      %v1205 = vadd.f32 %v1023, %v1135
      %v1206 = vadd.f32 %v1024, %v1138
      %v1207 = vadd.f32 %v1025, %v1143
      %v1208 = vadd.f32 %v1026, %v1146
      %v1209 = vadd.f32 %v1027, %v1151
      %v1210 = vadd.f32 %v1028, %v1154
      %v1211 = vadd.f32 %v1029, %v1159
      %v1212 = vadd.f32 %v1030, %v1162
      %v1213 = vadd.f32 %v1031, %v1167
      %v1214 = vadd.f32 %v1032, %v1170
      %v1215 = vadd.f32 %v1033, %v1175
      %v1216 = vadd.f32 %v1034, %v1178
      %v1217 = vadd.f32 %v1035, %v1183
      %v1218 = vadd.f32 %v1036, %v1186
      %v1219 = vadd.f32 %v1037, %v1191
      %v1220 = vadd.f32 %v1038, %v1194
      %v1221 = vadd.f32 %v1039, %v1199
      %v1222 = vadd.f32 %v1040, %v1202
      %v1223 = vsel %vm486, %v443, 0
      %v1225 = vsel %vm486, %v444, 0
      %v1227 = vsel %vm486, %v445, 0
      %v1229 = vsel %vm486, %v446, 0
      %v1231 = vsel %vm486, %v447, 0
      %v1233 = vsel %vm486, %v448, 0
      %v1235 = vsel %vm486, %v449, 0
      %v1237 = vsel %vm486, %v450, 0
      %v1239 = vsel %vm486, %v451, 0
      %v1242 = vsel %vm514, %v461, 0
      %1244 = vmatprep.subr.bf16.mxu0 0
      %1245 = vmatpush1.bf16.msra.mxu0 %v1242
      %1246 = vmatprep.subr.bf16.mxu0 0
      %1247 = vmatpush1.bf16.msra.mxu0 0
      %1248 = vmatprep.subr.bf16.mxu0 0
      %1249 = vmatpush1.bf16.msra.mxu0 0
      %1250 = vmatprep.subr.bf16.mxu0 0
      %1251 = vmatpush1.bf16.msra.mxu0 0
      %1252 = vmatprep.subr.bf16.mxu0 0
      %1253 = vmatpush1.bf16.msra.mxu0 0
      %1254 = vmatprep.subr.bf16.mxu0 0
      %1255 = vmatpush1.bf16.msra.mxu0 0
      %1256 = vmatprep.subr.bf16.mxu0 0
      %1257 = vmatpush1.bf16.msra.mxu0 0
      %1258 = vmatprep.subr.bf16.mxu0 0
      %1259 = vmatpush1.bf16.msra.mxu0 0
      %1260 = vmatprep.subr.bf16.mxu0 0
      %1261 = vmatpush1.bf16.msra.mxu0 0
      %1262 = vmatprep.subr.bf16.mxu0 0
      %1263 = vmatpush1.bf16.msra.mxu0 0
      %1264 = vmatprep.subr.bf16.mxu0 0
      %1265 = vmatpush1.bf16.msra.mxu0 0
      %1266 = vmatprep.subr.bf16.mxu0 0
      %1267 = vmatpush1.bf16.msra.mxu0 0
      %1268 = vmatprep.subr.bf16.mxu0 0
      %1269 = vmatpush1.bf16.msra.mxu0 0
      %1270 = vmatprep.subr.bf16.mxu0 0
      %1271 = vmatpush1.bf16.msra.mxu0 0
      %1272 = vmatprep.subr.bf16.mxu0 0
      %1273 = vmatpush1.bf16.msra.mxu0 0
      %1274 = vmatprep.subr.bf16.mxu0 0
      %1275 = vmatpush1.bf16.msra.mxu0 0
      %1276 = vmatprep.mubr.bf16.mxu0 0
      %1277 = vmatmul.mubr.bf16.gmra.mrb[0].mxu0 %v1223
      %v1278 = vpop.f32.mrb[0].mxu0
      %v1279 = vadd.f32 0.0, %v1278
      %v1280 = vpop.f32.mrb[0].mxu0
      %v1281 = vpop.f32.mrb[0].mxu0
      %v1282 = vadd.f32 0.0, %v1281
      %v1283 = vpop.f32.mrb[0].mxu0
      %1284 = vmatprep.mubr.bf16.mxu0 0
      %1285 = vmatmul.mubr.bf16.gmra.mrb[0].mxu0 %v1225
      %v1286 = vpop.f32.mrb[0].mxu0
      %v1287 = vadd.f32 0.0, %v1286
      %v1288 = vpop.f32.mrb[0].mxu0
      %v1289 = vpop.f32.mrb[0].mxu0
      %v1290 = vadd.f32 0.0, %v1289
      %v1291 = vpop.f32.mrb[0].mxu0
      %1292 = vmatprep.mubr.bf16.mxu0 0
      %1293 = vmatmul.mubr.bf16.gmra.mrb[0].mxu0 %v1227
      %v1294 = vpop.f32.mrb[0].mxu0
      %v1295 = vadd.f32 0.0, %v1294
      %v1296 = vpop.f32.mrb[0].mxu0
      %v1297 = vpop.f32.mrb[0].mxu0
      %v1298 = vadd.f32 0.0, %v1297
      %v1299 = vpop.f32.mrb[0].mxu0
      %1300 = vmatprep.mubr.bf16.mxu0 0
      %1301 = vmatmul.mubr.bf16.gmra.mrb[0].mxu0 %v1229
      %v1302 = vpop.f32.mrb[0].mxu0
      %v1303 = vadd.f32 0.0, %v1302
      %v1304 = vpop.f32.mrb[0].mxu0
      %v1305 = vpop.f32.mrb[0].mxu0
      %v1306 = vadd.f32 0.0, %v1305
      %v1307 = vpop.f32.mrb[0].mxu0
      %1308 = vmatprep.mubr.bf16.mxu0 0
      %1309 = vmatmul.mubr.bf16.gmra.mrb[0].mxu0 %v1231
      %v1310 = vpop.f32.mrb[0].mxu0
      %v1311 = vadd.f32 0.0, %v1310
      %v1312 = vpop.f32.mrb[0].mxu0
      %v1313 = vpop.f32.mrb[0].mxu0
      %v1314 = vadd.f32 0.0, %v1313
      %v1315 = vpop.f32.mrb[0].mxu0
      %1316 = vmatprep.mubr.bf16.mxu0 0
      %1317 = vmatmul.mubr.bf16.gmra.mrb[0].mxu0 %v1233
      %v1318 = vpop.f32.mrb[0].mxu0
      %v1319 = vadd.f32 0.0, %v1318
      %v1320 = vpop.f32.mrb[0].mxu0
      %v1321 = vpop.f32.mrb[0].mxu0
      %v1322 = vadd.f32 0.0, %v1321
      %v1323 = vpop.f32.mrb[0].mxu0
      %1324 = vmatprep.mubr.bf16.mxu0 0
      %1325 = vmatmul.mubr.bf16.gmra.mrb[0].mxu0 %v1235
      %v1326 = vpop.f32.mrb[0].mxu0
      %v1327 = vadd.f32 0.0, %v1326
      %v1328 = vpop.f32.mrb[0].mxu0
      %v1329 = vpop.f32.mrb[0].mxu0
      %v1330 = vadd.f32 0.0, %v1329
      %v1331 = vpop.f32.mrb[0].mxu0
      %1332 = vmatprep.mubr.bf16.mxu0 0
      %1333 = vmatmul.mubr.bf16.gmra.mrb[0].mxu0 %v1237
      %v1334 = vpop.f32.mrb[0].mxu0
      %v1335 = vadd.f32 0.0, %v1334
      %v1336 = vpop.f32.mrb[0].mxu0
      %v1337 = vpop.f32.mrb[0].mxu0
      %v1338 = vadd.f32 0.0, %v1337
      %v1339 = vpop.f32.mrb[0].mxu0
      %1340 = vmatprep.mubr.bf16.mxu0 0
      %1341 = vmatmul.mubr.bf16.gmra.mrb[0].mxu0 %v1239
      %v1342 = vpop.f32.mrb[0].mxu0
      %v1343 = vadd.f32 0.0, %v1342
      %v1344 = vpop.f32.mrb[0].mxu0
      %v1345 = vpop.f32.mrb[0].mxu0
      %v1346 = vadd.f32 0.0, %v1345
      %v1347 = vpop.f32.mrb[0].mxu0
      %1348 = vdwg.mxu0
      %v1349 = vadd.f32 %v1205, %v1279
      %v1350 = vadd.f32 %v1206, %v1282
      %v1351 = vadd.f32 %v1207, %v1287
      %v1352 = vadd.f32 %v1208, %v1290
      %v1353 = vadd.f32 %v1209, %v1295
      %v1354 = vadd.f32 %v1210, %v1298
      %v1355 = vadd.f32 %v1211, %v1303
      %v1356 = vadd.f32 %v1212, %v1306
      %v1357 = vadd.f32 %v1213, %v1311
      %v1358 = vadd.f32 %v1214, %v1314
      %v1359 = vadd.f32 %v1215, %v1319
      %v1360 = vadd.f32 %v1216, %v1322
      %v1361 = vadd.f32 %v1217, %v1327
      %v1362 = vadd.f32 %v1218, %v1330
      %v1363 = vadd.f32 %v1219, %v1335
      %v1364 = vadd.f32 %v1220, %v1338
      %v1365 = vadd.f32 %v1221, %v1343
      %v1366 = vadd.f32 %v1222, %v1346
      %vm1367 = vsmask.f32 7424
      %v1368 = vrot.slane %v636, 1
      %v1369 = vor.u32 %v633, %v1368
      %v1370 = vrot.slane %v645, 1
      %v1371 = vsel %vm1367, %v1369, %v1370
      %v1372 = vor.u32 %v642, %v1370
      %v1373 = vrot.slane %v654, 1
      %v1374 = vsel %vm1367, %v1372, %v1373
      %v1375 = vor.u32 %v651, %v1373
      %v1376 = vrot.slane %v663, 1
      %v1377 = vsel %vm1367, %v1375, %v1376
      %v1378 = vor.u32 %v660, %v1376
      %v1379 = vrot.slane %v672, 1
      %v1380 = vsel %vm1367, %v1378, %v1379
      %v1381 = vor.u32 %v669, %v1379
      %v1382 = vrot.slane %v681, 1
      %v1383 = vsel %vm1367, %v1381, %v1382
      %v1384 = vor.u32 %v678, %v1382
      %v1385 = vrot.slane %v690, 1
      %v1386 = vsel %vm1367, %v1384, %v1385
      %v1387 = vor.u32 %v687, %v1385
      %v1388 = vrot.slane %v699, 1
      %v1389 = vsel %vm1367, %v1387, %v1388
      %v1390 = vor.u32 %v696, %v1388
      %v1391 = vrot.slane %v708, 1
      %v1392 = vsel %vm1367, %v1390, %v1391
      %v1393 = vor.u32 %v705, %v1391
      %v1395 = vshll.u32 %v456, 16
      %v1397 = vrot.slane %v1395, 1
      %v1398 = vsel %vm1367, %v1393, %v1397
      %v1400 = vsel %vm486, %v1371, 0
      %v1403 = vsel %vm486, %v1374, 0
      %v1406 = vsel %vm486, %v1377, 0
      %v1409 = vsel %vm486, %v1380, 0
      %v1412 = vsel %vm486, %v1383, 0
      %v1415 = vsel %vm486, %v1386, 0
      %v1418 = vsel %vm486, %v1389, 0
      %v1421 = vsel %vm486, %v1392, 0
      %v1424 = vsel %vm486, %v1398, 0
      %v1427 = vsel %vm514, %v462, 0
      %1429 = vmatprep.subr.bf16.mxu0 0
      %1430 = vmatpush1.bf16.msra.mxu0 %v1427
      %1431 = vmatprep.subr.bf16.mxu0 0
      %1432 = vmatpush1.bf16.msra.mxu0 0
      %1433 = vmatprep.subr.bf16.mxu0 0
      %1434 = vmatpush1.bf16.msra.mxu0 0
      %1435 = vmatprep.subr.bf16.mxu0 0
      %1436 = vmatpush1.bf16.msra.mxu0 0
      %1437 = vmatprep.subr.bf16.mxu0 0
      %1438 = vmatpush1.bf16.msra.mxu0 0
      %1439 = vmatprep.subr.bf16.mxu0 0
      %1440 = vmatpush1.bf16.msra.mxu0 0
      %1441 = vmatprep.subr.bf16.mxu0 0
      %1442 = vmatpush1.bf16.msra.mxu0 0
      %1443 = vmatprep.subr.bf16.mxu0 0
      %1444 = vmatpush1.bf16.msra.mxu0 0
      %1445 = vmatprep.subr.bf16.mxu0 0
      %1446 = vmatpush1.bf16.msra.mxu0 0
      %1447 = vmatprep.subr.bf16.mxu0 0
      %1448 = vmatpush1.bf16.msra.mxu0 0
      %1449 = vmatprep.subr.bf16.mxu0 0
      %1450 = vmatpush1.bf16.msra.mxu0 0
      %1451 = vmatprep.subr.bf16.mxu0 0
      %1452 = vmatpush1.bf16.msra.mxu0 0
      %1453 = vmatprep.subr.bf16.mxu0 0
      %1454 = vmatpush1.bf16.msra.mxu0 0
      %1455 = vmatprep.subr.bf16.mxu0 0
      %1456 = vmatpush1.bf16.msra.mxu0 0
      %1457 = vmatprep.subr.bf16.mxu0 0
      %1458 = vmatpush1.bf16.msra.mxu0 0
      %1459 = vmatprep.subr.bf16.mxu0 0
      %1460 = vmatpush1.bf16.msra.mxu0 0
      %1461 = vmatprep.mubr.bf16.mxu0 0
      %1462 = vmatmul.mubr.bf16.gmra.mrb[0].mxu0 %v1400
      %v1463 = vpop.f32.mrb[0].mxu0
      %v1464 = vadd.f32 0.0, %v1463
      %v1465 = vpop.f32.mrb[0].mxu0
      %v1466 = vpop.f32.mrb[0].mxu0
      %v1467 = vadd.f32 0.0, %v1466
      %v1468 = vpop.f32.mrb[0].mxu0
      %1469 = vmatprep.mubr.bf16.mxu0 0
      %1470 = vmatmul.mubr.bf16.gmra.mrb[0].mxu0 %v1403
      %v1471 = vpop.f32.mrb[0].mxu0
      %v1472 = vadd.f32 0.0, %v1471
      %v1473 = vpop.f32.mrb[0].mxu0
      %v1474 = vpop.f32.mrb[0].mxu0
      %v1475 = vadd.f32 0.0, %v1474
      %v1476 = vpop.f32.mrb[0].mxu0
      %1477 = vmatprep.mubr.bf16.mxu0 0
      %1478 = vmatmul.mubr.bf16.gmra.mrb[0].mxu0 %v1406
      %v1479 = vpop.f32.mrb[0].mxu0
      %v1480 = vadd.f32 0.0, %v1479
      %v1481 = vpop.f32.mrb[0].mxu0
      %v1482 = vpop.f32.mrb[0].mxu0
      %v1483 = vadd.f32 0.0, %v1482
      %v1484 = vpop.f32.mrb[0].mxu0
      %1485 = vmatprep.mubr.bf16.mxu0 0
      %1486 = vmatmul.mubr.bf16.gmra.mrb[0].mxu0 %v1409
      %v1487 = vpop.f32.mrb[0].mxu0
      %v1488 = vadd.f32 0.0, %v1487
      %v1489 = vpop.f32.mrb[0].mxu0
      %v1490 = vpop.f32.mrb[0].mxu0
      %v1491 = vadd.f32 0.0, %v1490
      %v1492 = vpop.f32.mrb[0].mxu0
      %1493 = vmatprep.mubr.bf16.mxu0 0
      %1494 = vmatmul.mubr.bf16.gmra.mrb[0].mxu0 %v1412
      %v1495 = vpop.f32.mrb[0].mxu0
      %v1496 = vadd.f32 0.0, %v1495
      %v1497 = vpop.f32.mrb[0].mxu0
      %v1498 = vpop.f32.mrb[0].mxu0
      %v1499 = vadd.f32 0.0, %v1498
      %v1500 = vpop.f32.mrb[0].mxu0
      %1501 = vmatprep.mubr.bf16.mxu0 0
      %1502 = vmatmul.mubr.bf16.gmra.mrb[0].mxu0 %v1415
      %v1503 = vpop.f32.mrb[0].mxu0
      %v1504 = vadd.f32 0.0, %v1503
      %v1505 = vpop.f32.mrb[0].mxu0
      %v1506 = vpop.f32.mrb[0].mxu0
      %v1507 = vadd.f32 0.0, %v1506
      %v1508 = vpop.f32.mrb[0].mxu0
      %1509 = vmatprep.mubr.bf16.mxu0 0
      %1510 = vmatmul.mubr.bf16.gmra.mrb[0].mxu0 %v1418
      %v1511 = vpop.f32.mrb[0].mxu0
      %v1512 = vadd.f32 0.0, %v1511
      %v1513 = vpop.f32.mrb[0].mxu0
      %v1514 = vpop.f32.mrb[0].mxu0
      %v1515 = vadd.f32 0.0, %v1514
      %v1516 = vpop.f32.mrb[0].mxu0
      %1517 = vmatprep.mubr.bf16.mxu0 0
      %1518 = vmatmul.mubr.bf16.gmra.mrb[0].mxu0 %v1421
      %v1519 = vpop.f32.mrb[0].mxu0
      %v1520 = vadd.f32 0.0, %v1519
      %v1521 = vpop.f32.mrb[0].mxu0
      %v1522 = vpop.f32.mrb[0].mxu0
      %v1523 = vadd.f32 0.0, %v1522
      %v1524 = vpop.f32.mrb[0].mxu0
      %1525 = vmatprep.mubr.bf16.mxu0 0
      %1526 = vmatmul.mubr.bf16.gmra.mrb[0].mxu0 %v1424
      %v1527 = vpop.f32.mrb[0].mxu0
      %v1528 = vadd.f32 0.0, %v1527
      %v1529 = vpop.f32.mrb[0].mxu0
      %v1530 = vpop.f32.mrb[0].mxu0
      %v1531 = vadd.f32 0.0, %v1530
      %v1532 = vpop.f32.mrb[0].mxu0
      %1533 = vdwg.mxu0
      %v1534 = vadd.f32 %v1349, %v1464
      %v1535 = vadd.f32 %v1350, %v1467
      %v1536 = vadd.f32 %v1351, %v1472
      %v1537 = vadd.f32 %v1352, %v1475
      %v1538 = vadd.f32 %v1353, %v1480
      %v1539 = vadd.f32 %v1354, %v1483
      %v1540 = vadd.f32 %v1355, %v1488
      %v1541 = vadd.f32 %v1356, %v1491
      %v1542 = vadd.f32 %v1357, %v1496
      %v1543 = vadd.f32 %v1358, %v1499
      %v1544 = vadd.f32 %v1359, %v1504
      %v1545 = vadd.f32 %v1360, %v1507
      %v1546 = vadd.f32 %v1361, %v1512
      %v1547 = vadd.f32 %v1362, %v1515
      %v1548 = vadd.f32 %v1363, %v1520
      %v1549 = vadd.f32 %v1364, %v1523
      %v1550 = vadd.f32 %v1365, %v1528
      %v1551 = vadd.f32 %v1366, %v1531
      %vm1552 = vsmask.f32 5376
      %v1553 = vrot.slane %v633, 2
      %v1554 = vrot.slane %v636, 3
      %v1555 = vor.u32 %v1553, %v1554
      %v1556 = vrot.slane %v642, 2
      %v1557 = vrot.slane %v645, 3
      %v1558 = vor.u32 %v1556, %v1557
      %v1559 = vsel %vm1552, %v1555, %v1558
      %v1560 = vrot.slane %v651, 2
      %v1561 = vrot.slane %v654, 3
      %v1562 = vor.u32 %v1560, %v1561
      %v1563 = vsel %vm1552, %v1558, %v1562
      %v1564 = vrot.slane %v660, 2
      %v1565 = vrot.slane %v663, 3
      %v1566 = vor.u32 %v1564, %v1565
      %v1567 = vsel %vm1552, %v1562, %v1566
      %v1568 = vrot.slane %v669, 2
      %v1569 = vrot.slane %v672, 3
      %v1570 = vor.u32 %v1568, %v1569
      %v1571 = vsel %vm1552, %v1566, %v1570
      %v1572 = vrot.slane %v678, 2
      %v1573 = vrot.slane %v681, 3
      %v1574 = vor.u32 %v1572, %v1573
      %v1575 = vsel %vm1552, %v1570, %v1574
      %v1576 = vrot.slane %v687, 2
      %v1577 = vrot.slane %v690, 3
      %v1578 = vor.u32 %v1576, %v1577
      %v1579 = vsel %vm1552, %v1574, %v1578
      %v1580 = vrot.slane %v696, 2
      %v1581 = vrot.slane %v699, 3
      %v1582 = vor.u32 %v1580, %v1581
      %v1583 = vsel %vm1552, %v1578, %v1582
      %v1584 = vrot.slane %v705, 2
      %v1585 = vrot.slane %v708, 3
      %v1586 = vor.u32 %v1584, %v1585
      %v1587 = vsel %vm1552, %v1582, %v1586
      %v1588 = vshrl.u32 %v456, 16
      %v1590 = vrot.slane %v1588, 2
      %v1591 = vrot.slane %v1395, 3
      %v1592 = vor.u32 %v1590, %v1591
      %v1593 = vsel %vm1552, %v1586, %v1592
      %v1595 = vsel %vm486, %v1559, 0
      %v1598 = vsel %vm486, %v1563, 0
      %v1601 = vsel %vm486, %v1567, 0
      %v1604 = vsel %vm486, %v1571, 0
      %v1607 = vsel %vm486, %v1575, 0
      %v1610 = vsel %vm486, %v1579, 0
      %v1613 = vsel %vm486, %v1583, 0
      %v1616 = vsel %vm486, %v1587, 0
      %v1619 = vsel %vm486, %v1593, 0
      %v1622 = vsel %vm514, %v463, 0
      %1624 = vmatprep.subr.bf16.mxu0 0
      %1625 = vmatpush1.bf16.msra.mxu0 %v1622
      %1626 = vmatprep.subr.bf16.mxu0 0
      %1627 = vmatpush1.bf16.msra.mxu0 0
      %1628 = vmatprep.subr.bf16.mxu0 0
      %1629 = vmatpush1.bf16.msra.mxu0 0
      %1630 = vmatprep.subr.bf16.mxu0 0
      %1631 = vmatpush1.bf16.msra.mxu0 0
      %1632 = vmatprep.subr.bf16.mxu0 0
      %1633 = vmatpush1.bf16.msra.mxu0 0
      %1634 = vmatprep.subr.bf16.mxu0 0
      %1635 = vmatpush1.bf16.msra.mxu0 0
      %1636 = vmatprep.subr.bf16.mxu0 0
      %1637 = vmatpush1.bf16.msra.mxu0 0
      %1638 = vmatprep.subr.bf16.mxu0 0
      %1639 = vmatpush1.bf16.msra.mxu0 0
      %1640 = vmatprep.subr.bf16.mxu0 0
      %1641 = vmatpush1.bf16.msra.mxu0 0
      %1642 = vmatprep.subr.bf16.mxu0 0
      %1643 = vmatpush1.bf16.msra.mxu0 0
      %1644 = vmatprep.subr.bf16.mxu0 0
      %1645 = vmatpush1.bf16.msra.mxu0 0
      %1646 = vmatprep.subr.bf16.mxu0 0
      %1647 = vmatpush1.bf16.msra.mxu0 0
      %1648 = vmatprep.subr.bf16.mxu0 0
      %1649 = vmatpush1.bf16.msra.mxu0 0
      %1650 = vmatprep.subr.bf16.mxu0 0
      %1651 = vmatpush1.bf16.msra.mxu0 0
      %1652 = vmatprep.subr.bf16.mxu0 0
      %1653 = vmatpush1.bf16.msra.mxu0 0
      %1654 = vmatprep.subr.bf16.mxu0 0
      %1655 = vmatpush1.bf16.msra.mxu0 0
      %1656 = vmatprep.mubr.bf16.mxu0 0
      %1657 = vmatmul.mubr.bf16.gmra.mrb[0].mxu0 %v1595
      %v1658 = vpop.f32.mrb[0].mxu0
      %v1659 = vadd.f32 0.0, %v1658
      %v1660 = vpop.f32.mrb[0].mxu0
      %v1661 = vpop.f32.mrb[0].mxu0
      %v1662 = vadd.f32 0.0, %v1661
      %v1663 = vpop.f32.mrb[0].mxu0
      %1664 = vmatprep.mubr.bf16.mxu0 0
      %1665 = vmatmul.mubr.bf16.gmra.mrb[0].mxu0 %v1598
      %v1666 = vpop.f32.mrb[0].mxu0
      %v1667 = vadd.f32 0.0, %v1666
      %v1668 = vpop.f32.mrb[0].mxu0
      %v1669 = vpop.f32.mrb[0].mxu0
      %v1670 = vadd.f32 0.0, %v1669
      %v1671 = vpop.f32.mrb[0].mxu0
      %1672 = vmatprep.mubr.bf16.mxu0 0
      %1673 = vmatmul.mubr.bf16.gmra.mrb[0].mxu0 %v1601
      %v1674 = vpop.f32.mrb[0].mxu0
      %v1675 = vadd.f32 0.0, %v1674
      %v1676 = vpop.f32.mrb[0].mxu0
      %v1677 = vpop.f32.mrb[0].mxu0
      %v1678 = vadd.f32 0.0, %v1677
      %v1679 = vpop.f32.mrb[0].mxu0
      %1680 = vmatprep.mubr.bf16.mxu0 0
      %1681 = vmatmul.mubr.bf16.gmra.mrb[0].mxu0 %v1604
      %v1682 = vpop.f32.mrb[0].mxu0
      %v1683 = vadd.f32 0.0, %v1682
      %v1684 = vpop.f32.mrb[0].mxu0
      %v1685 = vpop.f32.mrb[0].mxu0
      %v1686 = vadd.f32 0.0, %v1685
      %v1687 = vpop.f32.mrb[0].mxu0
      %1688 = vmatprep.mubr.bf16.mxu0 0
      %1689 = vmatmul.mubr.bf16.gmra.mrb[0].mxu0 %v1607
      %v1690 = vpop.f32.mrb[0].mxu0
      %v1691 = vadd.f32 0.0, %v1690
      %v1692 = vpop.f32.mrb[0].mxu0
      %v1693 = vpop.f32.mrb[0].mxu0
      %v1694 = vadd.f32 0.0, %v1693
      %v1695 = vpop.f32.mrb[0].mxu0
      %1696 = vmatprep.mubr.bf16.mxu0 0
      %1697 = vmatmul.mubr.bf16.gmra.mrb[0].mxu0 %v1610
      %v1698 = vpop.f32.mrb[0].mxu0
      %v1699 = vadd.f32 0.0, %v1698
      %v1700 = vpop.f32.mrb[0].mxu0
      %v1701 = vpop.f32.mrb[0].mxu0
      %v1702 = vadd.f32 0.0, %v1701
      %v1703 = vpop.f32.mrb[0].mxu0
      %1704 = vmatprep.mubr.bf16.mxu0 0
      %1705 = vmatmul.mubr.bf16.gmra.mrb[0].mxu0 %v1613
      %v1706 = vpop.f32.mrb[0].mxu0
      %v1707 = vadd.f32 0.0, %v1706
      %v1708 = vpop.f32.mrb[0].mxu0
      %v1709 = vpop.f32.mrb[0].mxu0
      %v1710 = vadd.f32 0.0, %v1709
      %v1711 = vpop.f32.mrb[0].mxu0
      %1712 = vmatprep.mubr.bf16.mxu0 0
      %1713 = vmatmul.mubr.bf16.gmra.mrb[0].mxu0 %v1616
      %v1714 = vpop.f32.mrb[0].mxu0
      %v1715 = vadd.f32 0.0, %v1714
      %v1716 = vpop.f32.mrb[0].mxu0
      %v1717 = vpop.f32.mrb[0].mxu0
      %v1718 = vadd.f32 0.0, %v1717
      %v1719 = vpop.f32.mrb[0].mxu0
      %1720 = vmatprep.mubr.bf16.mxu0 0
      %1721 = vmatmul.mubr.bf16.gmra.mrb[0].mxu0 %v1619
      %v1722 = vpop.f32.mrb[0].mxu0
      %v1723 = vadd.f32 0.0, %v1722
      %v1724 = vpop.f32.mrb[0].mxu0
      %v1725 = vpop.f32.mrb[0].mxu0
      %v1726 = vadd.f32 0.0, %v1725
      %v1727 = vpop.f32.mrb[0].mxu0
      %1728 = vdwg.mxu0
      %v1729 = vadd.f32 %v1534, %v1659
      %v1730 = vadd.f32 %v1535, %v1662
      %v1731 = vadd.f32 %v1536, %v1667
      %v1732 = vadd.f32 %v1537, %v1670
      %v1733 = vadd.f32 %v1538, %v1675
      %v1734 = vadd.f32 %v1539, %v1678
      %v1735 = vadd.f32 %v1540, %v1683
      %v1736 = vadd.f32 %v1541, %v1686
      %v1737 = vadd.f32 %v1542, %v1691
      %v1738 = vadd.f32 %v1543, %v1694
      %v1739 = vadd.f32 %v1544, %v1699
      %v1740 = vadd.f32 %v1545, %v1702
      %v1741 = vadd.f32 %v1546, %v1707
      %v1742 = vadd.f32 %v1547, %v1710
      %v1743 = vadd.f32 %v1548, %v1715
      %v1744 = vadd.f32 %v1549, %v1718
      %v1745 = vadd.f32 %v1550, %v1723
      %v1746 = vadd.f32 %v1551, %v1726
      %vm1747 = vcmask 1044480
      %v1748 = vrot.slane %v443, 3
      %v1749 = vrot.slane %v444, 3
      %v1750 = vsel %vm1747, %v1748, %v1749
      %v1751 = vrot.slane %v445, 3
      %v1752 = vsel %vm1747, %v1749, %v1751
      %v1753 = vrot.slane %v446, 3
      %v1754 = vsel %vm1747, %v1751, %v1753
      %v1755 = vrot.slane %v447, 3
      %v1756 = vsel %vm1747, %v1753, %v1755
      %v1757 = vrot.slane %v448, 3
      %v1758 = vsel %vm1747, %v1755, %v1757
      %v1759 = vrot.slane %v449, 3
      %v1760 = vsel %vm1747, %v1757, %v1759
      %v1761 = vrot.slane %v450, 3
      %v1762 = vsel %vm1747, %v1759, %v1761
      %v1763 = vrot.slane %v451, 3
      %v1764 = vsel %vm1747, %v1761, %v1763
      %v1765 = vrot.slane %v456, 3
      %v1766 = vsel %vm1747, %v1763, %v1765
      %v1768 = vsel %vm486, %v1750, 0
      %v1771 = vsel %vm486, %v1752, 0
      %v1774 = vsel %vm486, %v1754, 0
      %v1777 = vsel %vm486, %v1756, 0
      %v1780 = vsel %vm486, %v1758, 0
      %v1783 = vsel %vm486, %v1760, 0
      %v1786 = vsel %vm486, %v1762, 0
      %v1789 = vsel %vm486, %v1764, 0
      %v1792 = vsel %vm486, %v1766, 0
      %v1795 = vsel %vm514, %v464, 0
      %1797 = vmatprep.subr.bf16.mxu0 0
      %1798 = vmatpush1.bf16.msra.mxu0 %v1795
      %1799 = vmatprep.subr.bf16.mxu0 0
      %1800 = vmatpush1.bf16.msra.mxu0 0
      %1801 = vmatprep.subr.bf16.mxu0 0
      %1802 = vmatpush1.bf16.msra.mxu0 0
      %1803 = vmatprep.subr.bf16.mxu0 0
      %1804 = vmatpush1.bf16.msra.mxu0 0
      %1805 = vmatprep.subr.bf16.mxu0 0
      %1806 = vmatpush1.bf16.msra.mxu0 0
      %1807 = vmatprep.subr.bf16.mxu0 0
      %1808 = vmatpush1.bf16.msra.mxu0 0
      %1809 = vmatprep.subr.bf16.mxu0 0
      %1810 = vmatpush1.bf16.msra.mxu0 0
      %1811 = vmatprep.subr.bf16.mxu0 0
      %1812 = vmatpush1.bf16.msra.mxu0 0
      %1813 = vmatprep.subr.bf16.mxu0 0
      %1814 = vmatpush1.bf16.msra.mxu0 0
      %1815 = vmatprep.subr.bf16.mxu0 0
      %1816 = vmatpush1.bf16.msra.mxu0 0
      %1817 = vmatprep.subr.bf16.mxu0 0
      %1818 = vmatpush1.bf16.msra.mxu0 0
      %1819 = vmatprep.subr.bf16.mxu0 0
      %1820 = vmatpush1.bf16.msra.mxu0 0
      %1821 = vmatprep.subr.bf16.mxu0 0
      %1822 = vmatpush1.bf16.msra.mxu0 0
      %1823 = vmatprep.subr.bf16.mxu0 0
      %1824 = vmatpush1.bf16.msra.mxu0 0
      %1825 = vmatprep.subr.bf16.mxu0 0
      %1826 = vmatpush1.bf16.msra.mxu0 0
      %1827 = vmatprep.subr.bf16.mxu0 0
      %1828 = vmatpush1.bf16.msra.mxu0 0
      %1829 = vmatprep.mubr.bf16.mxu0 0
      %1830 = vmatmul.mubr.bf16.gmra.mrb[0].mxu0 %v1768
      %v1831 = vpop.f32.mrb[0].mxu0
      %v1832 = vadd.f32 0.0, %v1831
      %v1833 = vpop.f32.mrb[0].mxu0
      %v1834 = vpop.f32.mrb[0].mxu0
      %v1835 = vadd.f32 0.0, %v1834
      %v1836 = vpop.f32.mrb[0].mxu0
      %1837 = vmatprep.mubr.bf16.mxu0 0
      %1838 = vmatmul.mubr.bf16.gmra.mrb[0].mxu0 %v1771
      %v1839 = vpop.f32.mrb[0].mxu0
      %v1840 = vadd.f32 0.0, %v1839
      %v1841 = vpop.f32.mrb[0].mxu0
      %v1842 = vpop.f32.mrb[0].mxu0
      %v1843 = vadd.f32 0.0, %v1842
      %v1844 = vpop.f32.mrb[0].mxu0
      %1845 = vmatprep.mubr.bf16.mxu0 0
      %1846 = vmatmul.mubr.bf16.gmra.mrb[0].mxu0 %v1774
      %v1847 = vpop.f32.mrb[0].mxu0
      %v1848 = vadd.f32 0.0, %v1847
      %v1849 = vpop.f32.mrb[0].mxu0
      %v1850 = vpop.f32.mrb[0].mxu0
      %v1851 = vadd.f32 0.0, %v1850
      %v1852 = vpop.f32.mrb[0].mxu0
      %1853 = vmatprep.mubr.bf16.mxu0 0
      %1854 = vmatmul.mubr.bf16.gmra.mrb[0].mxu0 %v1777
      %v1855 = vpop.f32.mrb[0].mxu0
      %v1856 = vadd.f32 0.0, %v1855
      %v1857 = vpop.f32.mrb[0].mxu0
      %v1858 = vpop.f32.mrb[0].mxu0
      %v1859 = vadd.f32 0.0, %v1858
      %v1860 = vpop.f32.mrb[0].mxu0
      %1861 = vmatprep.mubr.bf16.mxu0 0
      %1862 = vmatmul.mubr.bf16.gmra.mrb[0].mxu0 %v1780
      %v1863 = vpop.f32.mrb[0].mxu0
      %v1864 = vadd.f32 0.0, %v1863
      %v1865 = vpop.f32.mrb[0].mxu0
      %v1866 = vpop.f32.mrb[0].mxu0
      %v1867 = vadd.f32 0.0, %v1866
      %v1868 = vpop.f32.mrb[0].mxu0
      %1869 = vmatprep.mubr.bf16.mxu0 0
      %1870 = vmatmul.mubr.bf16.gmra.mrb[0].mxu0 %v1783
      %v1871 = vpop.f32.mrb[0].mxu0
      %v1872 = vadd.f32 0.0, %v1871
      %v1873 = vpop.f32.mrb[0].mxu0
      %v1874 = vpop.f32.mrb[0].mxu0
      %v1875 = vadd.f32 0.0, %v1874
      %v1876 = vpop.f32.mrb[0].mxu0
      %1877 = vmatprep.mubr.bf16.mxu0 0
      %1878 = vmatmul.mubr.bf16.gmra.mrb[0].mxu0 %v1786
      %v1879 = vpop.f32.mrb[0].mxu0
      %v1880 = vadd.f32 0.0, %v1879
      %v1881 = vpop.f32.mrb[0].mxu0
      %v1882 = vpop.f32.mrb[0].mxu0
      %v1883 = vadd.f32 0.0, %v1882
      %v1884 = vpop.f32.mrb[0].mxu0
      %1885 = vmatprep.mubr.bf16.mxu0 0
      %1886 = vmatmul.mubr.bf16.gmra.mrb[0].mxu0 %v1789
      %v1887 = vpop.f32.mrb[0].mxu0
      %v1888 = vadd.f32 0.0, %v1887
      %v1889 = vpop.f32.mrb[0].mxu0
      %v1890 = vpop.f32.mrb[0].mxu0
      %v1891 = vadd.f32 0.0, %v1890
      %v1892 = vpop.f32.mrb[0].mxu0
      %1893 = vmatprep.mubr.bf16.mxu0 0
      %1894 = vmatmul.mubr.bf16.gmra.mrb[0].mxu0 %v1792
      %v1895 = vpop.f32.mrb[0].mxu0
      %v1896 = vadd.f32 0.0, %v1895
      %v1897 = vpop.f32.mrb[0].mxu0
      %v1898 = vpop.f32.mrb[0].mxu0
      %v1899 = vadd.f32 0.0, %v1898
      %v1900 = vpop.f32.mrb[0].mxu0
      %1901 = vdwg.mxu0
      %v1902 = vadd.f32 %v1729, %v1832
      %v1903 = vadd.f32 %v1730, %v1835
      %v1904 = vadd.f32 %v1731, %v1840
      %v1905 = vadd.f32 %v1732, %v1843
      %v1906 = vadd.f32 %v1733, %v1848
      %v1907 = vadd.f32 %v1734, %v1851
      %v1908 = vadd.f32 %v1735, %v1856
      %v1909 = vadd.f32 %v1736, %v1859
      %v1910 = vadd.f32 %v1737, %v1864
      %v1911 = vadd.f32 %v1738, %v1867
      %v1912 = vadd.f32 %v1739, %v1872
      %v1913 = vadd.f32 %v1740, %v1875
      %v1914 = vadd.f32 %v1741, %v1880
      %v1915 = vadd.f32 %v1742, %v1883
      %v1916 = vadd.f32 %v1743, %v1888
      %v1917 = vadd.f32 %v1744, %v1891
      %v1918 = vadd.f32 %v1745, %v1896
      %v1919 = vadd.f32 %v1746, %v1899
      %vm1920 = vsmask.f32 4352
      %v1921 = vrot.slane %v633, 3
      %v1922 = vrot.slane %v636, 4
      %v1923 = vor.u32 %v1921, %v1922
      %v1924 = vrot.slane %v642, 3
      %v1925 = vrot.slane %v645, 4
      %v1926 = vor.u32 %v1924, %v1925
      %v1927 = vsel %vm1920, %v1923, %v1926
      %v1928 = vrot.slane %v651, 3
      %v1929 = vrot.slane %v654, 4
      %v1930 = vor.u32 %v1928, %v1929
      %v1931 = vsel %vm1920, %v1926, %v1930
      %v1932 = vrot.slane %v660, 3
      %v1933 = vrot.slane %v663, 4
      %v1934 = vor.u32 %v1932, %v1933
      %v1935 = vsel %vm1920, %v1930, %v1934
      %v1936 = vrot.slane %v669, 3
      %v1937 = vrot.slane %v672, 4
      %v1938 = vor.u32 %v1936, %v1937
      %v1939 = vsel %vm1920, %v1934, %v1938
      %v1940 = vrot.slane %v678, 3
      %v1941 = vrot.slane %v681, 4
      %v1942 = vor.u32 %v1940, %v1941
      %v1943 = vsel %vm1920, %v1938, %v1942
      %v1944 = vrot.slane %v687, 3
      %v1945 = vrot.slane %v690, 4
      %v1946 = vor.u32 %v1944, %v1945
      %v1947 = vsel %vm1920, %v1942, %v1946
      %v1948 = vrot.slane %v696, 3
      %v1949 = vrot.slane %v699, 4
      %v1950 = vor.u32 %v1948, %v1949
      %v1951 = vsel %vm1920, %v1946, %v1950
      %v1952 = vrot.slane %v705, 3
      %v1953 = vrot.slane %v708, 4
      %v1954 = vor.u32 %v1952, %v1953
      %v1955 = vsel %vm1920, %v1950, %v1954
      %v1956 = vrot.slane %v1588, 3
      %v1957 = vrot.slane %v1395, 4
      %v1958 = vor.u32 %v1956, %v1957
      %v1959 = vsel %vm1920, %v1954, %v1958
      %v1961 = vsel %vm486, %v1927, 0
      %v1964 = vsel %vm486, %v1931, 0
      %v1967 = vsel %vm486, %v1935, 0
      %v1970 = vsel %vm486, %v1939, 0
      %v1973 = vsel %vm486, %v1943, 0
      %v1976 = vsel %vm486, %v1947, 0
      %v1979 = vsel %vm486, %v1951, 0
      %v1982 = vsel %vm486, %v1955, 0
      %v1985 = vsel %vm486, %v1959, 0
      %v1988 = vsel %vm514, %v465, 0
      %1990 = vmatprep.subr.bf16.mxu0 0
      %1991 = vmatpush1.bf16.msra.mxu0 %v1988
      %1992 = vmatprep.subr.bf16.mxu0 0
      %1993 = vmatpush1.bf16.msra.mxu0 0
      %1994 = vmatprep.subr.bf16.mxu0 0
      %1995 = vmatpush1.bf16.msra.mxu0 0
      %1996 = vmatprep.subr.bf16.mxu0 0
      %1997 = vmatpush1.bf16.msra.mxu0 0
      %1998 = vmatprep.subr.bf16.mxu0 0
      %1999 = vmatpush1.bf16.msra.mxu0 0
      %2000 = vmatprep.subr.bf16.mxu0 0
      %2001 = vmatpush1.bf16.msra.mxu0 0
      %2002 = vmatprep.subr.bf16.mxu0 0
      %2003 = vmatpush1.bf16.msra.mxu0 0
      %2004 = vmatprep.subr.bf16.mxu0 0
      %2005 = vmatpush1.bf16.msra.mxu0 0
      %2006 = vmatprep.subr.bf16.mxu0 0
      %2007 = vmatpush1.bf16.msra.mxu0 0
      %2008 = vmatprep.subr.bf16.mxu0 0
      %2009 = vmatpush1.bf16.msra.mxu0 0
      %2010 = vmatprep.subr.bf16.mxu0 0
      %2011 = vmatpush1.bf16.msra.mxu0 0
      %2012 = vmatprep.subr.bf16.mxu0 0
      %2013 = vmatpush1.bf16.msra.mxu0 0
      %2014 = vmatprep.subr.bf16.mxu0 0
      %2015 = vmatpush1.bf16.msra.mxu0 0
      %2016 = vmatprep.subr.bf16.mxu0 0
      %2017 = vmatpush1.bf16.msra.mxu0 0
      %2018 = vmatprep.subr.bf16.mxu0 0
      %2019 = vmatpush1.bf16.msra.mxu0 0
      %2020 = vmatprep.subr.bf16.mxu0 0
      %2021 = vmatpush1.bf16.msra.mxu0 0
      %2022 = vmatprep.mubr.bf16.mxu0 0
      %2023 = vmatmul.mubr.bf16.gmra.mrb[0].mxu0 %v1961
      %v2024 = vpop.f32.mrb[0].mxu0
      %v2025 = vadd.f32 0.0, %v2024
      %v2026 = vpop.f32.mrb[0].mxu0
      %v2027 = vpop.f32.mrb[0].mxu0
      %v2028 = vadd.f32 0.0, %v2027
      %v2029 = vpop.f32.mrb[0].mxu0
      %2030 = vmatprep.mubr.bf16.mxu0 0
      %2031 = vmatmul.mubr.bf16.gmra.mrb[0].mxu0 %v1964
      %v2032 = vpop.f32.mrb[0].mxu0
      %v2033 = vadd.f32 0.0, %v2032
      %v2034 = vpop.f32.mrb[0].mxu0
      %v2035 = vpop.f32.mrb[0].mxu0
      %v2036 = vadd.f32 0.0, %v2035
      %v2037 = vpop.f32.mrb[0].mxu0
      %2038 = vmatprep.mubr.bf16.mxu0 0
      %2039 = vmatmul.mubr.bf16.gmra.mrb[0].mxu0 %v1967
      %v2040 = vpop.f32.mrb[0].mxu0
      %v2041 = vadd.f32 0.0, %v2040
      %v2042 = vpop.f32.mrb[0].mxu0
      %v2043 = vpop.f32.mrb[0].mxu0
      %v2044 = vadd.f32 0.0, %v2043
      %v2045 = vpop.f32.mrb[0].mxu0
      %2046 = vmatprep.mubr.bf16.mxu0 0
      %2047 = vmatmul.mubr.bf16.gmra.mrb[0].mxu0 %v1970
      %v2048 = vpop.f32.mrb[0].mxu0
      %v2049 = vadd.f32 0.0, %v2048
      %v2050 = vpop.f32.mrb[0].mxu0
      %v2051 = vpop.f32.mrb[0].mxu0
      %v2052 = vadd.f32 0.0, %v2051
      %v2053 = vpop.f32.mrb[0].mxu0
      %2054 = vmatprep.mubr.bf16.mxu0 0
      %2055 = vmatmul.mubr.bf16.gmra.mrb[0].mxu0 %v1973
      %v2056 = vpop.f32.mrb[0].mxu0
      %v2057 = vadd.f32 0.0, %v2056
      %v2058 = vpop.f32.mrb[0].mxu0
      %v2059 = vpop.f32.mrb[0].mxu0
      %v2060 = vadd.f32 0.0, %v2059
      %v2061 = vpop.f32.mrb[0].mxu0
      %2062 = vmatprep.mubr.bf16.mxu0 0
      %2063 = vmatmul.mubr.bf16.gmra.mrb[0].mxu0 %v1976
      %v2064 = vpop.f32.mrb[0].mxu0
      %v2065 = vadd.f32 0.0, %v2064
      %v2066 = vpop.f32.mrb[0].mxu0
      %v2067 = vpop.f32.mrb[0].mxu0
      %v2068 = vadd.f32 0.0, %v2067
      %v2069 = vpop.f32.mrb[0].mxu0
      %2070 = vmatprep.mubr.bf16.mxu0 0
      %2071 = vmatmul.mubr.bf16.gmra.mrb[0].mxu0 %v1979
      %v2072 = vpop.f32.mrb[0].mxu0
      %v2073 = vadd.f32 0.0, %v2072
      %v2074 = vpop.f32.mrb[0].mxu0
      %v2075 = vpop.f32.mrb[0].mxu0
      %v2076 = vadd.f32 0.0, %v2075
      %v2077 = vpop.f32.mrb[0].mxu0
      %2078 = vmatprep.mubr.bf16.mxu0 0
      %2079 = vmatmul.mubr.bf16.gmra.mrb[0].mxu0 %v1982
      %v2080 = vpop.f32.mrb[0].mxu0
      %v2081 = vadd.f32 0.0, %v2080
      %v2082 = vpop.f32.mrb[0].mxu0
      %v2083 = vpop.f32.mrb[0].mxu0
      %v2084 = vadd.f32 0.0, %v2083
      %v2085 = vpop.f32.mrb[0].mxu0
      %2086 = vmatprep.mubr.bf16.mxu0 0
      %2087 = vmatmul.mubr.bf16.gmra.mrb[0].mxu0 %v1985
      %v2088 = vpop.f32.mrb[0].mxu0
      %v2089 = vadd.f32 0.0, %v2088
      %v2090 = vpop.f32.mrb[0].mxu0
      %v2091 = vpop.f32.mrb[0].mxu0
      %v2092 = vadd.f32 0.0, %v2091
      %v2093 = vpop.f32.mrb[0].mxu0
      %2094 = vdwg.mxu0
      %v2095 = vadd.f32 %v1902, %v2025
      %v2096 = vadd.f32 %v1903, %v2028
      %v2097 = vadd.f32 %v1904, %v2033
      %v2098 = vadd.f32 %v1905, %v2036
      %v2099 = vadd.f32 %v1906, %v2041
      %v2100 = vadd.f32 %v1907, %v2044
      %v2101 = vadd.f32 %v1908, %v2049
      %v2102 = vadd.f32 %v1909, %v2052
      %v2103 = vadd.f32 %v1910, %v2057
      %v2104 = vadd.f32 %v1911, %v2060
      %v2105 = vadd.f32 %v1912, %v2065
      %v2106 = vadd.f32 %v1913, %v2068
      %v2107 = vadd.f32 %v1914, %v2073
      %v2108 = vadd.f32 %v1915, %v2076
      %v2109 = vadd.f32 %v1916, %v2081
      %v2110 = vadd.f32 %v1917, %v2084
      %v2111 = vadd.f32 %v1918, %v2089
      %v2112 = vadd.f32 %v1919, %v2092
      %v2113 = vld [vmem:[%s365] sm:$0xff]
      %v2114 = vld [vmem:[%s365 + $0x8] sm:$0xff]
      %v2115 = vld [vmem:[%s365 + $0x10] sm:$0xff]
      %v2116 = vld [vmem:[%s365 + $0x18] sm:$0xff]
      %v2117 = vld [vmem:[%s365 + $0x20] sm:$0xff]
      %v2118 = vld [vmem:[%s365 + $0x28] sm:$0xff]
      %v2119 = vld [vmem:[%s365 + $0x30] sm:$0xff]
      %v2120 = vld [vmem:[%s365 + $0x38] sm:$0xff]
      %v2121 = vld [vmem:[%s365 + $0x40] sm:$0xff]
      %v2122 = vld [vmem:[%s365 + $0x48] sm:$0xff]
      %v2123 = vld [vmem:[%s365 + $0x50] sm:$0xff]
      %v2124 = vld [vmem:[%s365 + $0x58] sm:$0xff]
      %v2125 = vld [vmem:[%s365 + $0x60] sm:$0xff]
      %v2126 = vld [vmem:[%s365 + $0x68] sm:$0xff]
      %v2127 = vld [vmem:[%s365 + $0x70] sm:$0xff]
      %v2128 = vld [vmem:[%s365 + $0x78] sm:$0xff]
      %v2129 = vld [vmem:[%s365 + $0x80] sm:$0xff]
      %v2130 = vld [vmem:[%s365 + $0x88] sm:$0xff]
      %2132 = vset.pattern.permute.xlu0 0
      %2133 = vperm.xlu0 %2132, %v2113
      %v2134 = vpop.permute.xlu0 %2133
      %2137 = vset.pattern.permute.xlu0 0
      %2138 = vperm.xlu0 %2137, %v2114
      %v2139 = vpop.permute.xlu0 %2138
      %2142 = vset.pattern.permute.xlu0 0
      %2143 = vperm.xlu0 %2142, %v2115
      %v2144 = vpop.permute.xlu0 %2143
      %2147 = vset.pattern.permute.xlu0 0
      %2148 = vperm.xlu0 %2147, %v2116
      %v2149 = vpop.permute.xlu0 %2148
      %2152 = vset.pattern.permute.xlu0 0
      %2153 = vperm.xlu0 %2152, %v2117
      %v2154 = vpop.permute.xlu0 %2153
      %2157 = vset.pattern.permute.xlu0 0
      %2158 = vperm.xlu0 %2157, %v2118
      %v2159 = vpop.permute.xlu0 %2158
      %2162 = vset.pattern.permute.xlu0 0
      %2163 = vperm.xlu0 %2162, %v2119
      %v2164 = vpop.permute.xlu0 %2163
      %2167 = vset.pattern.permute.xlu0 0
      %2168 = vperm.xlu0 %2167, %v2120
      %v2169 = vpop.permute.xlu0 %2168
      %2172 = vset.pattern.permute.xlu0 0
      %2173 = vperm.xlu0 %2172, %v2121
      %v2174 = vpop.permute.xlu0 %2173
      %2177 = vset.pattern.permute.xlu0 0
      %2178 = vperm.xlu0 %2177, %v2122
      %v2179 = vpop.permute.xlu0 %2178
      %2182 = vset.pattern.permute.xlu0 0
      %2183 = vperm.xlu0 %2182, %v2123
      %v2184 = vpop.permute.xlu0 %2183
      %2187 = vset.pattern.permute.xlu0 0
      %2188 = vperm.xlu0 %2187, %v2124
      %v2189 = vpop.permute.xlu0 %2188
      %2192 = vset.pattern.permute.xlu0 0
      %2193 = vperm.xlu0 %2192, %v2125
      %v2194 = vpop.permute.xlu0 %2193
      %2197 = vset.pattern.permute.xlu0 0
      %2198 = vperm.xlu0 %2197, %v2126
      %v2199 = vpop.permute.xlu0 %2198
      %2202 = vset.pattern.permute.xlu0 0
      %2203 = vperm.xlu0 %2202, %v2127
      %v2204 = vpop.permute.xlu0 %2203
      %2207 = vset.pattern.permute.xlu0 0
      %2208 = vperm.xlu0 %2207, %v2128
      %v2209 = vpop.permute.xlu0 %2208
      %2212 = vset.pattern.permute.xlu0 0
      %2213 = vperm.xlu0 %2212, %v2129
      %v2214 = vpop.permute.xlu0 %2213
      %2217 = vset.pattern.permute.xlu0 0
      %2218 = vperm.xlu0 %2217, %v2130
      %v2219 = vpop.permute.xlu0 %2218
      %v2221 = vmul.f32 %v2095, %v2134
      %v2222 = vmul.f32 %v2096, %v2139
      %v2223 = vmul.f32 %v2097, %v2144
      %v2224 = vmul.f32 %v2098, %v2149
      %v2225 = vmul.f32 %v2099, %v2154
      %v2226 = vmul.f32 %v2100, %v2159
      %v2227 = vmul.f32 %v2101, %v2164
      %v2228 = vmul.f32 %v2102, %v2169
      %v2229 = vmul.f32 %v2103, %v2174
      %v2230 = vmul.f32 %v2104, %v2179
      %v2231 = vmul.f32 %v2105, %v2184
      %v2232 = vmul.f32 %v2106, %v2189
      %v2233 = vmul.f32 %v2107, %v2194
      %v2234 = vmul.f32 %v2108, %v2199
      %v2235 = vmul.f32 %v2109, %v2204
      %v2236 = vmul.f32 %v2110, %v2209
      %v2237 = vmul.f32 %v2111, %v2214
      %v2238 = vmul.f32 %v2112, %v2219
      %v2239 = vpack.c.bf16 %v2222, %v2221
      %v2240 = vpack.c.bf16 %v2224, %v2223
      %v2241 = vpack.c.bf16 %v2226, %v2225
      %v2242 = vpack.c.bf16 %v2228, %v2227
      %v2243 = vpack.c.bf16 %v2230, %v2229
      %v2244 = vpack.c.bf16 %v2232, %v2231
      %v2245 = vpack.c.bf16 %v2234, %v2233
      %v2246 = vpack.c.bf16 %v2236, %v2235
      %v2247 = vpack.c.bf16 %v2238, %v2237
      %v2257 = vunpack.c.l.b16 %v2239
      %v2258 = vunpack.c.h.b16 %v2239
      %v2259 = vunpack.c.l.b16 %v2240
      %v2260 = vunpack.c.h.b16 %v2240
      %v2261 = vunpack.c.l.b16 %v2241
      %v2262 = vunpack.c.h.b16 %v2241
      %v2263 = vunpack.c.l.b16 %v2242
      %v2264 = vunpack.c.h.b16 %v2242
      %v2265 = vunpack.c.l.b16 %v2243
      %v2266 = vunpack.c.h.b16 %v2243
      %v2267 = vunpack.c.l.b16 %v2244
      %v2268 = vunpack.c.h.b16 %v2244
      %v2269 = vunpack.c.l.b16 %v2245
      %v2270 = vunpack.c.h.b16 %v2245
      %v2271 = vunpack.c.l.b16 %v2246
      %v2272 = vunpack.c.h.b16 %v2246
      %v2273 = vunpack.c.l.b16 %v2247
      %v2274 = vunpack.c.h.b16 %v2247
      %v2275 = vpack.c.b16 %v2257, %v2257
      %v2276 = vpack.c.b16 %v2258, %v2258
      %v2277 = vpack.c.b16 %v2259, %v2259
      %v2278 = vpack.c.b16 %v2260, %v2260
      %v2279 = vpack.c.b16 %v2261, %v2261
      %v2280 = vpack.c.b16 %v2262, %v2262
      %v2281 = vpack.c.b16 %v2263, %v2263
      %v2282 = vpack.c.b16 %v2264, %v2264
      %v2283 = vpack.c.b16 %v2265, %v2265
      %v2284 = vpack.c.b16 %v2266, %v2266
      %v2285 = vpack.c.b16 %v2267, %v2267
      %v2286 = vpack.c.b16 %v2268, %v2268
      %v2287 = vpack.c.b16 %v2269, %v2269
      %v2288 = vpack.c.b16 %v2270, %v2270
      %v2289 = vpack.c.b16 %v2271, %v2271
      %v2290 = vpack.c.b16 %v2272, %v2272
      %v2291 = vpack.c.b16 %v2273, %v2273
      %v2292 = vpack.c.b16 %v2274, %v2274
      %vm2311 = vcmask 60416
      %2312 = vst.msk [vmem:[%s371] sm:$0xf] %vm2311, %v2275
      %2313 = vst.msk [vmem:[%s371 + $0x4] sm:$0xf] %vm2311, %v2276
      %2314 = vst.msk [vmem:[%s371 + $0x8] sm:$0xf] %vm2311, %v2277
      %2315 = vst.msk [vmem:[%s371 + $0xc] sm:$0xf] %vm2311, %v2278
      %2316 = vst.msk [vmem:[%s371 + $0x10] sm:$0xf] %vm2311, %v2279
      %2317 = vst.msk [vmem:[%s371 + $0x14] sm:$0xf] %vm2311, %v2280
      %2318 = vst.msk [vmem:[%s371 + $0x18] sm:$0xf] %vm2311, %v2281
      %2319 = vst.msk [vmem:[%s371 + $0x1c] sm:$0xf] %vm2311, %v2282
      %2320 = vst.msk [vmem:[%s371 + $0x20] sm:$0xf] %vm2311, %v2283
      %2321 = vst.msk [vmem:[%s371 + $0x24] sm:$0xf] %vm2311, %v2284
      %2322 = vst.msk [vmem:[%s371 + $0x28] sm:$0xf] %vm2311, %v2285
      %2323 = vst.msk [vmem:[%s371 + $0x2c] sm:$0xf] %vm2311, %v2286
      %2324 = vst.msk [vmem:[%s371 + $0x30] sm:$0xf] %vm2311, %v2287
      %2325 = vst.msk [vmem:[%s371 + $0x34] sm:$0xf] %vm2311, %v2288
      %2326 = vst.msk [vmem:[%s371 + $0x38] sm:$0xf] %vm2311, %v2289
      %2327 = vst.msk [vmem:[%s371 + $0x3c] sm:$0xf] %vm2311, %v2290
      %2328 = vst.msk [vmem:[%s371 + $0x40] sm:$0xf] %vm2311, %v2291
      %2329 = vst.msk [vmem:[%s371 + $0x44] sm:$0xf] %vm2311, %v2292
      %v2330 = vsel %vm486, %v2221, 0.0
      %v2331 = vsel %vm486, %v2222, 0.0
      %v2332 = vadd.f32 %v2330, %v2331
      %v2333 = vsel %vm486, %v2223, 0.0
      %v2334 = vadd.f32 %v2332, %v2333
      %v2335 = vsel %vm486, %v2224, 0.0
      %v2336 = vadd.f32 %v2334, %v2335
      %v2337 = vsel %vm486, %v2225, 0.0
      %v2338 = vadd.f32 %v2336, %v2337
      %v2339 = vsel %vm486, %v2226, 0.0
      %v2340 = vadd.f32 %v2338, %v2339
      %v2341 = vsel %vm486, %v2227, 0.0
      %v2342 = vadd.f32 %v2340, %v2341
      %v2343 = vsel %vm486, %v2228, 0.0
      %v2344 = vadd.f32 %v2342, %v2343
      %v2345 = vsel %vm486, %v2229, 0.0
      %v2346 = vadd.f32 %v2344, %v2345
      %v2347 = vsel %vm486, %v2230, 0.0
      %v2348 = vadd.f32 %v2346, %v2347
      %v2349 = vsel %vm486, %v2231, 0.0
      %v2350 = vadd.f32 %v2348, %v2349
      %v2351 = vsel %vm486, %v2232, 0.0
      %v2352 = vadd.f32 %v2350, %v2351
      %v2353 = vsel %vm486, %v2233, 0.0
      %v2354 = vadd.f32 %v2352, %v2353
      %v2355 = vsel %vm486, %v2234, 0.0
      %v2356 = vadd.f32 %v2354, %v2355
      %v2357 = vsel %vm486, %v2235, 0.0
      %v2358 = vadd.f32 %v2356, %v2357
      %v2359 = vsel %vm486, %v2236, 0.0
      %v2360 = vadd.f32 %v2358, %v2359
      %v2361 = vsel %vm486, %v2237, 0.0
      %v2362 = vadd.f32 %v2360, %v2361
      %v2363 = vsel %vm486, %v2238, 0.0
      %v2364 = vadd.f32 %v2362, %v2363
      %v2365 = vrot.slane %v2364, 4
      %v2366 = vadd.f32 %v2364, %v2365
      %v2367 = vrot.slane %v2366, 2
      %v2368 = vadd.f32 %v2366, %v2367
      %v2369 = vrot.slane %v2368, 1
      %v2370 = vadd.f32 %v2368, %v2369
      %vm2371 = vcmask 57344
      %2372 = vst.msk [vmem:[%s375] sm:$0x1] %vm2371, %v2370
      %v2373 = vmul.f32 %v2221, %v2221
      %v2374 = vmul.f32 %v2222, %v2222
      %v2375 = vmul.f32 %v2223, %v2223
      %v2376 = vmul.f32 %v2224, %v2224
      %v2377 = vmul.f32 %v2225, %v2225
      %v2378 = vmul.f32 %v2226, %v2226
      %v2379 = vmul.f32 %v2227, %v2227
      %v2380 = vmul.f32 %v2228, %v2228
      %v2381 = vmul.f32 %v2229, %v2229
      %v2382 = vmul.f32 %v2230, %v2230
      %v2383 = vmul.f32 %v2231, %v2231
      %v2384 = vmul.f32 %v2232, %v2232
      %v2385 = vmul.f32 %v2233, %v2233
      %v2386 = vmul.f32 %v2234, %v2234
      %v2387 = vmul.f32 %v2235, %v2235
      %v2388 = vmul.f32 %v2236, %v2236
      %v2389 = vmul.f32 %v2237, %v2237
      %v2390 = vmul.f32 %v2238, %v2238
      %v2391 = vsel %vm486, %v2373, 0.0
      %v2392 = vsel %vm486, %v2374, 0.0
      %v2393 = vadd.f32 %v2391, %v2392
      %v2394 = vsel %vm486, %v2375, 0.0
      %v2395 = vadd.f32 %v2393, %v2394
      %v2396 = vsel %vm486, %v2376, 0.0
      %v2397 = vadd.f32 %v2395, %v2396
      %v2398 = vsel %vm486, %v2377, 0.0
      %v2399 = vadd.f32 %v2397, %v2398
      %v2400 = vsel %vm486, %v2378, 0.0
      %v2401 = vadd.f32 %v2399, %v2400
      %v2402 = vsel %vm486, %v2379, 0.0
      %v2403 = vadd.f32 %v2401, %v2402
      %v2404 = vsel %vm486, %v2380, 0.0
      %v2405 = vadd.f32 %v2403, %v2404
      %v2406 = vsel %vm486, %v2381, 0.0
      %v2407 = vadd.f32 %v2405, %v2406
      %v2408 = vsel %vm486, %v2382, 0.0
      %v2409 = vadd.f32 %v2407, %v2408
      %v2410 = vsel %vm486, %v2383, 0.0
      %v2411 = vadd.f32 %v2409, %v2410
      %v2412 = vsel %vm486, %v2384, 0.0
      %v2413 = vadd.f32 %v2411, %v2412
      %v2414 = vsel %vm486, %v2385, 0.0
      %v2415 = vadd.f32 %v2413, %v2414
      %v2416 = vsel %vm486, %v2386, 0.0
      %v2417 = vadd.f32 %v2415, %v2416
      %v2418 = vsel %vm486, %v2387, 0.0
      %v2419 = vadd.f32 %v2417, %v2418
      %v2420 = vsel %vm486, %v2388, 0.0
      %v2421 = vadd.f32 %v2419, %v2420
      %v2422 = vsel %vm486, %v2389, 0.0
      %v2423 = vadd.f32 %v2421, %v2422
      %v2424 = vsel %vm486, %v2390, 0.0
      %v2425 = vadd.f32 %v2423, %v2424
      %v2426 = vrot.slane %v2425, 4
      %v2427 = vadd.f32 %v2425, %v2426
      %v2428 = vrot.slane %v2427, 2
      %v2429 = vadd.f32 %v2427, %v2428
      %v2430 = vrot.slane %v2429, 1
      %v2431 = vadd.f32 %v2429, %v2430
      %2432 = vst.msk [vmem:[%s378] sm:$0x1] %vm2371, %v2431
      %s2433 = smul.u32 18, %s19
      %p2434 = scmp.lt.s32.totalorder %s2433, 35
      %s2435 = scalar_select %p2434, %s2433, 35
      %s2436 = smul.addr %s2435, 4
      %s2437 = scalar_lea.vmem %s5, %s2436
      %p2438 = scmp.lt.s32.totalorder %s19, 1
      %s2439 = scalar_select %p2438, %s19, 1
      %s2440 = scalar_lea.vmem %s6, %s2439
      %p2441 = scmp.lt.s32.totalorder %s19, 1
      %s2442 = scalar_select %p2441, %s19, 1
      %s2443 = scalar_lea.vmem %s7, %s2442
      // Predicated region
      $region41: #{frontend_forward.8} parent=39 // pred_check
        %p2444 = pneg %p166
      $region42: #{frontend_forward.8} parent=39 // pred_check_branch
        %2446 = sbr.rel (%p2444) target = $region44
      $region43: #{frontend_forward.8} parent=39 // pred_region
        %s2447 = smul.u32 18, %s19
      $region44: #{frontend_forward.8} parent=39 // pred_fallthru
        _
      // Predicated region
      $region45: #{frontend_forward.8} parent=39 // pred_check
        %p2448 = pneg %p192
      $region46: #{frontend_forward.8} parent=39 // pred_check_branch
        %2450 = sbr.rel (%p2448) target = $region48
      $region47: #{frontend_forward.8} parent=39 // pred_region
        _
      $region48: #{frontend_forward.8} parent=39 // pred_fallthru
        _
      // Predicated region
      $region49: #{frontend_forward.8} parent=39 // pred_check
        %p2451 = pneg %p218
      $region50: #{frontend_forward.8} parent=39 // pred_check_branch
        %2453 = sbr.rel (%p2451) target = $region52
      $region51: #{frontend_forward.8} parent=39 // pred_region
        _
      $region52: #{frontend_forward.8} parent=39 // pred_fallthru
        _
    $region40: #{frontend_forward.8} parent=5 // pred_fallthru
      _
    %p2454 = scmp.le.s32.totalorder 2, %s14
    // Predicated region
    $region53: #{frontend_forward.8} parent=5 // pred_check
      %p2455 = pneg %p2454
    $region54: #{frontend_forward.8} parent=5 // pred_check_branch
      %2457 = sbr.rel (%p2455) target = $region56
    $region55: #{frontend_forward.8} parent=5 // pred_region
      %s2458 = ssub.s32 %s14, 2
      // Predicated region
      $region57: #{frontend_forward.8} parent=55 // pred_check
        %p2459 = pneg %p172
      $region58: #{frontend_forward.8} parent=55 // pred_check_branch
        %2461 = sbr.rel (%p2459) target = $region60
      $region59: #{frontend_forward.8} parent=55 // pred_region
        %s2462 = smul.u32 18, %s20
        %p2463 = scmp.lt.s32.totalorder %s2462, 35
        %s2464 = scalar_select %p2463, %s2462, 35
        %s2465 = smul.addr %s2464, 4
        %s2466 = scalar_lea.vmem %s5, %s2465
      $region60: #{frontend_forward.8} parent=55 // pred_fallthru
        _
      // Predicated region
      $region61: #{frontend_forward.8} parent=55 // pred_check
        %p2467 = pneg %p198
      $region62: #{frontend_forward.8} parent=55 // pred_check_branch
        %2469 = sbr.rel (%p2467) target = $region64
      $region63: #{frontend_forward.8} parent=55 // pred_region
        %p2470 = scmp.lt.s32.totalorder %s20, 1
        %s2471 = scalar_select %p2470, %s20, 1
        %s2472 = scalar_lea.vmem %s6, %s2471
      $region64: #{frontend_forward.8} parent=55 // pred_fallthru
        _
      // Predicated region
      $region65: #{frontend_forward.8} parent=55 // pred_check
        %p2473 = pneg %p224
      $region66: #{frontend_forward.8} parent=55 // pred_check_branch
        %2475 = sbr.rel (%p2473) target = $region68
      $region67: #{frontend_forward.8} parent=55 // pred_region
        %p2476 = scmp.lt.s32.totalorder %s20, 1
        %s2477 = scalar_select %p2476, %s20, 1
        %s2478 = scalar_lea.vmem %s7, %s2477
      $region68: #{frontend_forward.8} parent=55 // pred_fallthru
        _
    $region56: #{frontend_forward.8} parent=5 // pred_fallthru
      _
  $region6: #{frontend_forward.8} parent=0 // loop_footer
    %s18 = sadd.s32 1, %s14
  $region7: #{frontend_forward.8} parent=0 // loop_footer_branch
    %13 = sbr.rel target = $region3
  $region8: #{frontend_forward.8} parent=0 // loop_exit
    _

</llo_original>
